<compile_context>
chip_gen: v5e
topology: v5e:2x2
jax: 0.10.0
libtpu: 0.0.40
codegen_flags: <defaults>
</compile_context>

<pallas_src>
import functools

import jax
import jax.numpy as jnp
from jax import lax
from jax.experimental import pallas as pl
from jax.experimental.pallas import tpu as pltpu

HIDDEN = 64  # conv1 output channels, fixed by the module definition


def rb_kernel(x_ref, w1_ref, b1_ref, w2_ref, bc_ref, wsc_ref, o_ref,
              *, H, W, Cin, Cp):
    # x_ref: (1, H, W, Cin) raw (un-relu'd) input, unpadded.
    x = x_ref[0]

    # ---- relu(x), then build the 1-pixel zero halo in-register (bf16) ----
    xr = jnp.maximum(x, 0.0).astype(jnp.bfloat16)
    zc1 = jnp.zeros((H, 1, Cin), jnp.bfloat16)
    zr1 = jnp.zeros((1, W + 2, Cin), jnp.bfloat16)
    xp = jnp.concatenate(
        [zr1, jnp.concatenate([zc1, xr, zc1], axis=1), zr1], axis=0)

    # ---- conv1: 3x3, Cin -> 64.  K per tap is tiny, so accumulate 9 shifted
    #      (H*W, Cin) @ (Cin, 64) bf16 matmuls into an f32 accumulator. ----
    acc1 = jnp.zeros((H * W, HIDDEN), jnp.float32)
    for dy in range(3):
        for dx in range(3):
            patch = xp[dy:dy + H, dx:dx + W, :].reshape(H * W, Cin)
            acc1 += jnp.dot(patch, w1_ref[dy, dx],
                            preferred_element_type=jnp.float32)
    h1 = jnp.maximum(acc1 + b1_ref[0], 0.0)  # relu, f32

    # ---- conv2: 3x3, 64 -> Cout (padded to Cp lanes).  Build the im2col
    #      patch once (K = 9*64) and issue a single bf16 MXU matmul. ----
    h1b = h1.astype(jnp.bfloat16).reshape(H, W, HIDDEN)
    zc2 = jnp.zeros((H, 1, HIDDEN), jnp.bfloat16)
    zr2 = jnp.zeros((1, W + 2, HIDDEN), jnp.bfloat16)
    hp = jnp.concatenate(
        [zr2, jnp.concatenate([zc2, h1b, zc2], axis=1), zr2], axis=0)
    p2 = jnp.concatenate(
        [hp[dy:dy + H, dx:dx + W, :] for dy in range(3) for dx in range(3)],
        axis=-1).reshape(H * W, 9 * HIDDEN)
    y = jnp.dot(p2, w2_ref[...],
                preferred_element_type=jnp.float32) + bc_ref[0]

    # ---- shortcut on the raw (un-relu'd) input: 1x1 conv (identity weights
    #      when Cin == Cout), exact f32 path. ----
    xc = x.reshape(H * W, Cin)
    y = y + jnp.dot(xc, wsc_ref[...], preferred_element_type=jnp.float32)

    # Lane-dense store: Cp is a multiple of 128, so this is an unmasked,
    # fully contiguous write.
    o_ref[0] = y.reshape(H, W, Cp)


def rb_forward(x_nchw, params):
    """x_nchw: (B, Cin, H, W) float32 -> (B, Cout, H, W) float32."""
    w1, b1, w2, b2, wsc, bsc = params
    B, Cin, H, W = x_nchw.shape
    Cout = w2.shape[-1]
    Cp = ((Cout + 127) // 128) * 128  # lane-dense padded output channels

    x_nhwc = jnp.transpose(x_nchw, (0, 2, 3, 1))

    # Weight preprocessing (tiny, wrapper-side):
    w1b = w1.astype(jnp.bfloat16)                                # (3,3,Cin,64)
    w2r = w2.reshape(9 * HIDDEN, Cout)                           # (576, Cout)
    w2p = jnp.pad(w2r, ((0, 0), (0, Cp - Cout))).astype(jnp.bfloat16)
    if wsc is None:                      # identity shortcut (Cin == Cout)
        wsc_eff = jnp.eye(Cin, dtype=jnp.float32)
        bc = b2
    else:
        wsc_eff = wsc
        bc = b2 + bsc                    # fold both biases into one add
    wscp = jnp.pad(wsc_eff, ((0, 0), (0, Cp - Cout))).astype(jnp.float32)
    bcp = jnp.pad(bc, (0, Cp - Cout)).reshape(1, Cp)
    b1r = b1.reshape(1, HIDDEN)

    kernel = functools.partial(rb_kernel, H=H, W=W, Cin=Cin, Cp=Cp)

    out_padded = pl.pallas_call(
        kernel,
        out_shape=jax.ShapeDtypeStruct((B, H, W, Cp), jnp.float32),
        grid_spec=pltpu.PrefetchScalarGridSpec(
            num_scalar_prefetch=0,
            grid=(B,),
            in_specs=[
                pl.BlockSpec((1, H, W, Cin), lambda b: (b, 0, 0, 0)),
                pl.BlockSpec((3, 3, Cin, HIDDEN), lambda b: (0, 0, 0, 0)),
                pl.BlockSpec((1, HIDDEN), lambda b: (0, 0)),
                pl.BlockSpec((9 * HIDDEN, Cp), lambda b: (0, 0)),
                pl.BlockSpec((1, Cp), lambda b: (0, 0)),
                pl.BlockSpec((Cin, Cp), lambda b: (0, 0)),
            ],
            out_specs=pl.BlockSpec((1, H, W, Cp), lambda b: (b, 0, 0, 0)),
        ),
        compiler_params=pltpu.CompilerParams(
            dimension_semantics=("parallel",),        # batch images independent
            vmem_limit_bytes=32 * 1024 * 1024),
    )(x_nhwc, w1b, b1r, w2p, bcp, wscp)

    out_nhwc = out_padded[..., :Cout]
    return jnp.transpose(out_nhwc, (0, 3, 1, 2))


def rb_reference(x_nchw, params):
    """Pure-JAX f32 reference (lax conv) for validation."""
    w1, b1, w2, b2, wsc, bsc = params
    x = jnp.transpose(x_nchw, (0, 2, 3, 1))
    dn = ('NHWC', 'HWIO', 'NHWC')
    xr = jnp.maximum(x, 0.0)
    h = lax.conv_general_dilated(xr, w1, (1, 1), 'SAME',
                                 dimension_numbers=dn) + b1
    h = jnp.maximum(h, 0.0)
    y = lax.conv_general_dilated(h, w2, (1, 1), 'SAME',
                                 dimension_numbers=dn) + b2
    if wsc is not None:
        sc = lax.conv_general_dilated(
            x, wsc.reshape(1, 1, wsc.shape[0], wsc.shape[1]), (1, 1), 'SAME',
            dimension_numbers=dn) + bsc
    else:
        sc = x
    return jnp.transpose(y + sc, (0, 3, 1, 2))


def init_params(key, cin, cout):
    """Deterministic synthetic weights (HWIO layout). wsc/bsc None if cin==cout."""
    ks = jax.random.split(key, 6)
    s1 = 1.0 / (cin * 9) ** 0.5
    s2 = 1.0 / (HIDDEN * 9) ** 0.5
    w1 = jax.random.uniform(ks[0], (3, 3, cin, HIDDEN), jnp.float32, -s1, s1)
    b1 = jax.random.uniform(ks[1], (HIDDEN,), jnp.float32, -s1, s1)
    w2 = jax.random.uniform(ks[2], (3, 3, HIDDEN, cout), jnp.float32, -s2, s2)
    b2 = jax.random.uniform(ks[3], (cout,), jnp.float32, -s2, s2)
    if cin != cout:
        ssc = 1.0 / cin ** 0.5
        wsc = jax.random.uniform(ks[4], (cin, cout), jnp.float32, -ssc, ssc)
        bsc = jax.random.uniform(ks[5], (cout,), jnp.float32, -ssc, ssc)
    else:
        wsc, bsc = None, None
    return (w1, b1, w2, b2, wsc, bsc)


def _run_case(key, B, Cin, Cout, H, W):
    kx, kp = jax.random.split(key)
    x = jax.random.normal(kx, (B, Cin, H, W), jnp.float32)
    params = init_params(kp, Cin, Cout)
    out = jax.block_until_ready(rb_forward(x, params))
    ref = jax.block_until_ready(rb_reference(x, params))
    assert out.shape == (B, Cout, H, W), out.shape
    # bf16 MXU operands (f32 accumulation) -> loosened tolerance vs f32 ref.
    assert jnp.allclose(out, ref, atol=3e-2, rtol=3e-2), \
        float(jnp.max(jnp.abs(out - ref)))


if __name__ == "__main__":
    key = jax.random.PRNGKey(0)
    k1, k2 = jax.random.split(key)

    # Case 1: Cin != Cout -> 1x1-conv shortcut.
    _run_case(k1, B=2, Cin=4, Cout=8, H=16, W=16)
    # Case 2: Cin == Cout -> identity shortcut.
    _run_case(k2, B=2, Cin=8, Cout=8, H=16, W=16)

    print("KERNEL_OK")
</pallas_src>

<mosaic_0001>
module attributes {stable_mosaic.version = 11 : i64} {
  func.func @rb_kernel(%arg0: i32, %arg1: memref<1x16x16x4xf32, #tpu.memory_space<vmem>>, %arg2: memref<3x3x4x64xbf16, #tpu.memory_space<vmem>>, %arg3: memref<1x64xf32, #tpu.memory_space<vmem>>, %arg4: memref<576x128xbf16, #tpu.memory_space<vmem>>, %arg5: memref<1x128xf32, #tpu.memory_space<vmem>>, %arg6: memref<4x128xf32, #tpu.memory_space<vmem>>, %arg7: memref<1x16x16x128xf32, #tpu.memory_space<vmem>>) attributes {dimension_semantics = [#tpu.dimension_semantics<parallel>], iteration_bounds = array<i64: 2>, scalar_prefetch = 0 : i64, scratch_operands = 0 : i64, tpu.core_type = #tpu.core_type<tc>, window_params = [{transform_indices = @transform_0, window_bounds = array<i64: 1, 16, 16, 4>}, {pipeline_mode = #tpu.pipeline_mode<synchronous>, transform_indices = @transform_1, window_bounds = array<i64: 3, 3, 4, 64>}, {pipeline_mode = #tpu.pipeline_mode<synchronous>, transform_indices = @transform_2, window_bounds = array<i64: 1, 64>}, {pipeline_mode = #tpu.pipeline_mode<synchronous>, transform_indices = @transform_3, window_bounds = array<i64: 576, 128>}, {pipeline_mode = #tpu.pipeline_mode<synchronous>, transform_indices = @transform_4, window_bounds = array<i64: 1, 128>}, {pipeline_mode = #tpu.pipeline_mode<synchronous>, transform_indices = @transform_5, window_bounds = array<i64: 4, 128>}, {transform_indices = @transform_6, window_bounds = array<i64: 1, 16, 16, 128>}]} {
    %c0 = arith.constant 0 : index
    %c0_0 = arith.constant 0 : index
    %c0_1 = arith.constant 0 : index
    %c0_2 = arith.constant 0 : index
    %0 = vector.load %arg1[%c0, %c0_0, %c0_1, %c0_2] : memref<1x16x16x4xf32, #tpu.memory_space<vmem>>, vector<1x16x16x4xf32>
    %1 = vector.shape_cast %0 : vector<1x16x16x4xf32> to vector<16x16x4xf32>
    %cst = arith.constant 0.000000e+00 : f32
    %2 = vector.broadcast %cst : f32 to vector<16x16x4xf32>
    %3 = arith.maximumf %1, %2 : vector<16x16x4xf32>
    %4 = arith.truncf %3 : vector<16x16x4xf32> to vector<16x16x4xbf16>
    %cst_3 = arith.constant 0.000000e+00 : bf16
    %5 = vector.broadcast %cst_3 : bf16 to vector<16x1x4xbf16>
    %cst_4 = arith.constant 0.000000e+00 : bf16
    %6 = vector.broadcast %cst_4 : bf16 to vector<1x18x4xbf16>
    %7 = tpu.concatenate %5, %4, %5 in 1 : vector<16x1x4xbf16>, vector<16x16x4xbf16>, vector<16x1x4xbf16> -> vector<16x18x4xbf16>
    %8 = tpu.concatenate %6, %7, %6 in 0 : vector<1x18x4xbf16>, vector<16x18x4xbf16>, vector<1x18x4xbf16> -> vector<18x18x4xbf16>
    %cst_5 = arith.constant 0.000000e+00 : f32
    %9 = vector.broadcast %cst_5 : f32 to vector<256x64xf32>
    %10 = vector.extract_strided_slice %8 {offsets = [0, 0, 0], sizes = [16, 16, 4], strides = [1, 1, 1]} : vector<18x18x4xbf16> to vector<16x16x4xbf16>
    %11 = vector.shape_cast %10 : vector<16x16x4xbf16> to vector<256x4xbf16>
    %c0_6 = arith.constant 0 : index
    %c0_7 = arith.constant 0 : index
    %c0_8 = arith.constant 0 : index
    %c0_9 = arith.constant 0 : index
    %12 = vector.load %arg2[%c0_6, %c0_7, %c0_8, %c0_9] : memref<3x3x4x64xbf16, #tpu.memory_space<vmem>>, vector<1x1x4x64xbf16>
    %13 = vector.shape_cast %12 : vector<1x1x4x64xbf16> to vector<4x64xbf16>
    %cst_10 = arith.constant dense<0.000000e+00> : vector<256x64xf32>
    %14 = tpu.matmul %11, %13, %cst_10 {dimension_numbers = #tpu.dot_dimension_numbers<[1], [0], [0], [1], [0, 0, 1, 1], [], []>} : vector<256x4xbf16>, vector<4x64xbf16>, vector<256x64xf32> -> vector<256x64xf32>
    %15 = arith.addf %9, %14 : vector<256x64xf32>
    %16 = vector.extract_strided_slice %8 {offsets = [0, 1, 0], sizes = [16, 16, 4], strides = [1, 1, 1]} : vector<18x18x4xbf16> to vector<16x16x4xbf16>
    %17 = vector.shape_cast %16 : vector<16x16x4xbf16> to vector<256x4xbf16>
    %c0_11 = arith.constant 0 : index
    %c1 = arith.constant 1 : index
    %c0_12 = arith.constant 0 : index
    %c0_13 = arith.constant 0 : index
    %18 = vector.load %arg2[%c0_11, %c1, %c0_12, %c0_13] : memref<3x3x4x64xbf16, #tpu.memory_space<vmem>>, vector<1x1x4x64xbf16>
    %19 = vector.shape_cast %18 : vector<1x1x4x64xbf16> to vector<4x64xbf16>
    %cst_14 = arith.constant dense<0.000000e+00> : vector<256x64xf32>
    %20 = tpu.matmul %17, %19, %cst_14 {dimension_numbers = #tpu.dot_dimension_numbers<[1], [0], [0], [1], [0, 0, 1, 1], [], []>} : vector<256x4xbf16>, vector<4x64xbf16>, vector<256x64xf32> -> vector<256x64xf32>
    %21 = arith.addf %15, %20 : vector<256x64xf32>
    %22 = vector.extract_strided_slice %8 {offsets = [0, 2, 0], sizes = [16, 16, 4], strides = [1, 1, 1]} : vector<18x18x4xbf16> to vector<16x16x4xbf16>
    %23 = vector.shape_cast %22 : vector<16x16x4xbf16> to vector<256x4xbf16>
    %c0_15 = arith.constant 0 : index
    %c2 = arith.constant 2 : index
    %c0_16 = arith.constant 0 : index
    %c0_17 = arith.constant 0 : index
    %24 = vector.load %arg2[%c0_15, %c2, %c0_16, %c0_17] : memref<3x3x4x64xbf16, #tpu.memory_space<vmem>>, vector<1x1x4x64xbf16>
    %25 = vector.shape_cast %24 : vector<1x1x4x64xbf16> to vector<4x64xbf16>
    %cst_18 = arith.constant dense<0.000000e+00> : vector<256x64xf32>
    %26 = tpu.matmul %23, %25, %cst_18 {dimension_numbers = #tpu.dot_dimension_numbers<[1], [0], [0], [1], [0, 0, 1, 1], [], []>} : vector<256x4xbf16>, vector<4x64xbf16>, vector<256x64xf32> -> vector<256x64xf32>
    %27 = arith.addf %21, %26 : vector<256x64xf32>
    %28 = vector.extract_strided_slice %8 {offsets = [1, 0, 0], sizes = [16, 16, 4], strides = [1, 1, 1]} : vector<18x18x4xbf16> to vector<16x16x4xbf16>
    %29 = vector.shape_cast %28 : vector<16x16x4xbf16> to vector<256x4xbf16>
    %c1_19 = arith.constant 1 : index
    %c0_20 = arith.constant 0 : index
    %c0_21 = arith.constant 0 : index
    %c0_22 = arith.constant 0 : index
    %30 = vector.load %arg2[%c1_19, %c0_20, %c0_21, %c0_22] : memref<3x3x4x64xbf16, #tpu.memory_space<vmem>>, vector<1x1x4x64xbf16>
    %31 = vector.shape_cast %30 : vector<1x1x4x64xbf16> to vector<4x64xbf16>
    %cst_23 = arith.constant dense<0.000000e+00> : vector<256x64xf32>
    %32 = tpu.matmul %29, %31, %cst_23 {dimension_numbers = #tpu.dot_dimension_numbers<[1], [0], [0], [1], [0, 0, 1, 1], [], []>} : vector<256x4xbf16>, vector<4x64xbf16>, vector<256x64xf32> -> vector<256x64xf32>
    %33 = arith.addf %27, %32 : vector<256x64xf32>
    %34 = vector.extract_strided_slice %8 {offsets = [1, 1, 0], sizes = [16, 16, 4], strides = [1, 1, 1]} : vector<18x18x4xbf16> to vector<16x16x4xbf16>
    %35 = vector.shape_cast %34 : vector<16x16x4xbf16> to vector<256x4xbf16>
    %c1_24 = arith.constant 1 : index
    %c1_25 = arith.constant 1 : index
    %c0_26 = arith.constant 0 : index
    %c0_27 = arith.constant 0 : index
    %36 = vector.load %arg2[%c1_24, %c1_25, %c0_26, %c0_27] : memref<3x3x4x64xbf16, #tpu.memory_space<vmem>>, vector<1x1x4x64xbf16>
    %37 = vector.shape_cast %36 : vector<1x1x4x64xbf16> to vector<4x64xbf16>
    %cst_28 = arith.constant dense<0.000000e+00> : vector<256x64xf32>
    %38 = tpu.matmul %35, %37, %cst_28 {dimension_numbers = #tpu.dot_dimension_numbers<[1], [0], [0], [1], [0, 0, 1, 1], [], []>} : vector<256x4xbf16>, vector<4x64xbf16>, vector<256x64xf32> -> vector<256x64xf32>
    %39 = arith.addf %33, %38 : vector<256x64xf32>
    %40 = vector.extract_strided_slice %8 {offsets = [1, 2, 0], sizes = [16, 16, 4], strides = [1, 1, 1]} : vector<18x18x4xbf16> to vector<16x16x4xbf16>
    %41 = vector.shape_cast %40 : vector<16x16x4xbf16> to vector<256x4xbf16>
    %c1_29 = arith.constant 1 : index
    %c2_30 = arith.constant 2 : index
    %c0_31 = arith.constant 0 : index
    %c0_32 = arith.constant 0 : index
    %42 = vector.load %arg2[%c1_29, %c2_30, %c0_31, %c0_32] : memref<3x3x4x64xbf16, #tpu.memory_space<vmem>>, vector<1x1x4x64xbf16>
    %43 = vector.shape_cast %42 : vector<1x1x4x64xbf16> to vector<4x64xbf16>
    %cst_33 = arith.constant dense<0.000000e+00> : vector<256x64xf32>
    %44 = tpu.matmul %41, %43, %cst_33 {dimension_numbers = #tpu.dot_dimension_numbers<[1], [0], [0], [1], [0, 0, 1, 1], [], []>} : vector<256x4xbf16>, vector<4x64xbf16>, vector<256x64xf32> -> vector<256x64xf32>
    %45 = arith.addf %39, %44 : vector<256x64xf32>
    %46 = vector.extract_strided_slice %8 {offsets = [2, 0, 0], sizes = [16, 16, 4], strides = [1, 1, 1]} : vector<18x18x4xbf16> to vector<16x16x4xbf16>
    %47 = vector.shape_cast %46 : vector<16x16x4xbf16> to vector<256x4xbf16>
    %c2_34 = arith.constant 2 : index
    %c0_35 = arith.constant 0 : index
    %c0_36 = arith.constant 0 : index
    %c0_37 = arith.constant 0 : index
    %48 = vector.load %arg2[%c2_34, %c0_35, %c0_36, %c0_37] : memref<3x3x4x64xbf16, #tpu.memory_space<vmem>>, vector<1x1x4x64xbf16>
    %49 = vector.shape_cast %48 : vector<1x1x4x64xbf16> to vector<4x64xbf16>
    %cst_38 = arith.constant dense<0.000000e+00> : vector<256x64xf32>
    %50 = tpu.matmul %47, %49, %cst_38 {dimension_numbers = #tpu.dot_dimension_numbers<[1], [0], [0], [1], [0, 0, 1, 1], [], []>} : vector<256x4xbf16>, vector<4x64xbf16>, vector<256x64xf32> -> vector<256x64xf32>
    %51 = arith.addf %45, %50 : vector<256x64xf32>
    %52 = vector.extract_strided_slice %8 {offsets = [2, 1, 0], sizes = [16, 16, 4], strides = [1, 1, 1]} : vector<18x18x4xbf16> to vector<16x16x4xbf16>
    %53 = vector.shape_cast %52 : vector<16x16x4xbf16> to vector<256x4xbf16>
    %c2_39 = arith.constant 2 : index
    %c1_40 = arith.constant 1 : index
    %c0_41 = arith.constant 0 : index
    %c0_42 = arith.constant 0 : index
    %54 = vector.load %arg2[%c2_39, %c1_40, %c0_41, %c0_42] : memref<3x3x4x64xbf16, #tpu.memory_space<vmem>>, vector<1x1x4x64xbf16>
    %55 = vector.shape_cast %54 : vector<1x1x4x64xbf16> to vector<4x64xbf16>
    %cst_43 = arith.constant dense<0.000000e+00> : vector<256x64xf32>
    %56 = tpu.matmul %53, %55, %cst_43 {dimension_numbers = #tpu.dot_dimension_numbers<[1], [0], [0], [1], [0, 0, 1, 1], [], []>} : vector<256x4xbf16>, vector<4x64xbf16>, vector<256x64xf32> -> vector<256x64xf32>
    %57 = arith.addf %51, %56 : vector<256x64xf32>
    %58 = vector.extract_strided_slice %8 {offsets = [2, 2, 0], sizes = [16, 16, 4], strides = [1, 1, 1]} : vector<18x18x4xbf16> to vector<16x16x4xbf16>
    %59 = vector.shape_cast %58 : vector<16x16x4xbf16> to vector<256x4xbf16>
    %c2_44 = arith.constant 2 : index
    %c2_45 = arith.constant 2 : index
    %c0_46 = arith.constant 0 : index
    %c0_47 = arith.constant 0 : index
    %60 = vector.load %arg2[%c2_44, %c2_45, %c0_46, %c0_47] : memref<3x3x4x64xbf16, #tpu.memory_space<vmem>>, vector<1x1x4x64xbf16>
    %61 = vector.shape_cast %60 : vector<1x1x4x64xbf16> to vector<4x64xbf16>
    %cst_48 = arith.constant dense<0.000000e+00> : vector<256x64xf32>
    %62 = tpu.matmul %59, %61, %cst_48 {dimension_numbers = #tpu.dot_dimension_numbers<[1], [0], [0], [1], [0, 0, 1, 1], [], []>} : vector<256x4xbf16>, vector<4x64xbf16>, vector<256x64xf32> -> vector<256x64xf32>
    %63 = arith.addf %57, %62 : vector<256x64xf32>
    %c0_49 = arith.constant 0 : index
    %c0_50 = arith.constant 0 : index
    %64 = vector.load %arg3[%c0_49, %c0_50] : memref<1x64xf32, #tpu.memory_space<vmem>>, vector<1x64xf32>
    %65 = vector.shape_cast %64 : vector<1x64xf32> to vector<64xf32>
    %66 = vector.shape_cast %65 : vector<64xf32> to vector<1x64xf32>
    %67 = vector.broadcast %66 : vector<1x64xf32> to vector<256x64xf32>
    %68 = arith.addf %63, %67 : vector<256x64xf32>
    %cst_51 = arith.constant 0.000000e+00 : f32
    %69 = vector.broadcast %cst_51 : f32 to vector<256x64xf32>
    %70 = arith.maximumf %68, %69 : vector<256x64xf32>
    %71 = arith.truncf %70 : vector<256x64xf32> to vector<256x64xbf16>
    %72 = vector.shape_cast %71 : vector<256x64xbf16> to vector<16x16x64xbf16>
    %cst_52 = arith.constant 0.000000e+00 : bf16
    %73 = vector.broadcast %cst_52 : bf16 to vector<16x1x64xbf16>
    %cst_53 = arith.constant 0.000000e+00 : bf16
    %74 = vector.broadcast %cst_53 : bf16 to vector<1x18x64xbf16>
    %75 = tpu.concatenate %73, %72, %73 in 1 : vector<16x1x64xbf16>, vector<16x16x64xbf16>, vector<16x1x64xbf16> -> vector<16x18x64xbf16>
    %76 = tpu.concatenate %74, %75, %74 in 0 : vector<1x18x64xbf16>, vector<16x18x64xbf16>, vector<1x18x64xbf16> -> vector<18x18x64xbf16>
    %77 = vector.extract_strided_slice %76 {offsets = [0, 0, 0], sizes = [16, 16, 64], strides = [1, 1, 1]} : vector<18x18x64xbf16> to vector<16x16x64xbf16>
    %78 = vector.extract_strided_slice %76 {offsets = [0, 1, 0], sizes = [16, 16, 64], strides = [1, 1, 1]} : vector<18x18x64xbf16> to vector<16x16x64xbf16>
    %79 = vector.extract_strided_slice %76 {offsets = [0, 2, 0], sizes = [16, 16, 64], strides = [1, 1, 1]} : vector<18x18x64xbf16> to vector<16x16x64xbf16>
    %80 = vector.extract_strided_slice %76 {offsets = [1, 0, 0], sizes = [16, 16, 64], strides = [1, 1, 1]} : vector<18x18x64xbf16> to vector<16x16x64xbf16>
    %81 = vector.extract_strided_slice %76 {offsets = [1, 1, 0], sizes = [16, 16, 64], strides = [1, 1, 1]} : vector<18x18x64xbf16> to vector<16x16x64xbf16>
    %82 = vector.extract_strided_slice %76 {offsets = [1, 2, 0], sizes = [16, 16, 64], strides = [1, 1, 1]} : vector<18x18x64xbf16> to vector<16x16x64xbf16>
    %83 = vector.extract_strided_slice %76 {offsets = [2, 0, 0], sizes = [16, 16, 64], strides = [1, 1, 1]} : vector<18x18x64xbf16> to vector<16x16x64xbf16>
    %84 = vector.extract_strided_slice %76 {offsets = [2, 1, 0], sizes = [16, 16, 64], strides = [1, 1, 1]} : vector<18x18x64xbf16> to vector<16x16x64xbf16>
    %85 = vector.extract_strided_slice %76 {offsets = [2, 2, 0], sizes = [16, 16, 64], strides = [1, 1, 1]} : vector<18x18x64xbf16> to vector<16x16x64xbf16>
    %86 = tpu.concatenate %77, %78, %79, %80, %81, %82, %83, %84, %85 in 2 : vector<16x16x64xbf16>, vector<16x16x64xbf16>, vector<16x16x64xbf16>, vector<16x16x64xbf16>, vector<16x16x64xbf16>, vector<16x16x64xbf16>, vector<16x16x64xbf16>, vector<16x16x64xbf16>, vector<16x16x64xbf16> -> vector<16x16x576xbf16>
    %87 = vector.shape_cast %86 : vector<16x16x576xbf16> to vector<256x576xbf16>
    %c0_54 = arith.constant 0 : index
    %c0_55 = arith.constant 0 : index
    %88 = vector.load %arg4[%c0_54, %c0_55] : memref<576x128xbf16, #tpu.memory_space<vmem>>, vector<576x128xbf16>
    %cst_56 = arith.constant dense<0.000000e+00> : vector<256x128xf32>
    %89 = tpu.matmul %87, %88, %cst_56 {dimension_numbers = #tpu.dot_dimension_numbers<[1], [0], [0], [1], [0, 0, 1, 1], [], []>} : vector<256x576xbf16>, vector<576x128xbf16>, vector<256x128xf32> -> vector<256x128xf32>
    %c0_57 = arith.constant 0 : index
    %c0_58 = arith.constant 0 : index
    %90 = vector.load %arg5[%c0_57, %c0_58] : memref<1x128xf32, #tpu.memory_space<vmem>>, vector<1x128xf32>
    %91 = vector.shape_cast %90 : vector<1x128xf32> to vector<128xf32>
    %92 = vector.shape_cast %91 : vector<128xf32> to vector<1x128xf32>
    %93 = vector.broadcast %92 : vector<1x128xf32> to vector<256x128xf32>
    %94 = arith.addf %89, %93 : vector<256x128xf32>
    %95 = vector.shape_cast %1 : vector<16x16x4xf32> to vector<256x4xf32>
    %c0_59 = arith.constant 0 : index
    %c0_60 = arith.constant 0 : index
    %96 = vector.load %arg6[%c0_59, %c0_60] : memref<4x128xf32, #tpu.memory_space<vmem>>, vector<4x128xf32>
    %cst_61 = arith.constant dense<0.000000e+00> : vector<256x128xf32>
    %97 = tpu.matmul %95, %96, %cst_61 {dimension_numbers = #tpu.dot_dimension_numbers<[1], [0], [0], [1], [0, 0, 1, 1], [], []>} : vector<256x4xf32>, vector<4x128xf32>, vector<256x128xf32> -> vector<256x128xf32>
    %98 = arith.addf %94, %97 : vector<256x128xf32>
    %99 = vector.shape_cast %98 : vector<256x128xf32> to vector<16x16x128xf32>
    %c0_62 = arith.constant 0 : index
    %c0_63 = arith.constant 0 : index
    %c0_64 = arith.constant 0 : index
    %c0_65 = arith.constant 0 : index
    %100 = vector.load %arg7[%c0_62, %c0_63, %c0_64, %c0_65] : memref<1x16x16x128xf32, #tpu.memory_space<vmem>>, vector<1x16x16x128xf32>
    %101 = vector.shape_cast %100 : vector<1x16x16x128xf32> to vector<16x16x128xf32>
    %102 = vector.shape_cast %99 : vector<16x16x128xf32> to vector<1x16x16x128xf32>
    tpu.vector_store %arg7[%c0_62, %c0_63, %c0_64, %c0_65], %102 {strides = array<i32>} : memref<1x16x16x128xf32, #tpu.memory_space<vmem>>, vector<1x16x16x128xf32>,
    return
  }
  func.func @transform_0(%arg0: i32) -> (i32, i32, i32, i32) {
    %c0_i32 = arith.constant 0 : i32
    %c0_i32_0 = arith.constant 0 : i32
    %c0_i32_1 = arith.constant 0 : i32
    %c0_i32_2 = arith.constant 0 : i32
    return %arg0, %c0_i32, %c0_i32_0, %c0_i32_1 : i32, i32, i32, i32
  }
  func.func @transform_1(%arg0: i32) -> (i32, i32, i32, i32) {
    %c0_i32 = arith.constant 0 : i32
    %c0_i32_0 = arith.constant 0 : i32
    %c0_i32_1 = arith.constant 0 : i32
    %c0_i32_2 = arith.constant 0 : i32
    %c0_i32_3 = arith.constant 0 : i32
    return %c0_i32, %c0_i32_0, %c0_i32_1, %c0_i32_2 : i32, i32, i32, i32
  }
  func.func @transform_2(%arg0: i32) -> (i32, i32) {
    %c0_i32 = arith.constant 0 : i32
    %c0_i32_0 = arith.constant 0 : i32
    %c0_i32_1 = arith.constant 0 : i32
    return %c0_i32, %c0_i32_0 : i32, i32
  }
  func.func @transform_3(%arg0: i32) -> (i32, i32) {
    %c0_i32 = arith.constant 0 : i32
    %c0_i32_0 = arith.constant 0 : i32
    %c0_i32_1 = arith.constant 0 : i32
    return %c0_i32, %c0_i32_0 : i32, i32
  }
  func.func @transform_4(%arg0: i32) -> (i32, i32) {
    %c0_i32 = arith.constant 0 : i32
    %c0_i32_0 = arith.constant 0 : i32
    %c0_i32_1 = arith.constant 0 : i32
    return %c0_i32, %c0_i32_0 : i32, i32
  }
  func.func @transform_5(%arg0: i32) -> (i32, i32) {
    %c0_i32 = arith.constant 0 : i32
    %c0_i32_0 = arith.constant 0 : i32
    %c0_i32_1 = arith.constant 0 : i32
    return %c0_i32, %c0_i32_0 : i32, i32
  }
  func.func @transform_6(%arg0: i32) -> (i32, i32, i32, i32) {
    %c0_i32 = arith.constant 0 : i32
    %c0_i32_0 = arith.constant 0 : i32
    %c0_i32_1 = arith.constant 0 : i32
    %c0_i32_2 = arith.constant 0 : i32
    return %arg0, %c0_i32, %c0_i32_0, %c0_i32_1 : i32, i32, i32, i32
  }
}

</mosaic_0001>

<llo_original>
// kernel: tpu_custom_call.1
$region0: #{tpu_custom_call.1}
  #allocation0 [shape = 'u32[]', space=smem, size = 0x4, offset = 0x4, fixed_abs, tag = 'smem constant byte address 0x4 - core index']
  #allocation1 [shape = 'u32[72,128]{1,0:T(1,128)}', space=vmem, size = 0x9000, scoped, tag = 'internal scratch']
  %s0 = inlined_call_operand.vmem [shape: f32[2,16,16,4], index: 0, kind: input, shape index: {}]
  %s1 = inlined_call_operand.vmem [shape: bf16[3,3,4,64], index: 1, kind: input, shape index: {}]
  %s2 = inlined_call_operand.vmem [shape: f32[1,64], index: 2, kind: input, shape index: {}]
  %s3 = inlined_call_operand.vmem [shape: bf16[576,128], index: 3, kind: input, shape index: {}]
  %s4 = inlined_call_operand.vmem [shape: f32[1,128], index: 4, kind: input, shape index: {}]
  %s5 = inlined_call_operand.vmem [shape: f32[4,128], index: 5, kind: input, shape index: {}]
  %s6 = inlined_call_operand.hbm [shape: f32[2,16,16,128], index: 6, kind: output, shape index: {}]
  %s7 = sld [smem:[#allocation0]]
  $region57: #{tpu_custom_call.1} parent=0
    _
  %s9 = ssub.s32 1, %s7
  %s10 = scalar_select 0, %s9, %s7
  $region1: #{tpu_custom_call.1} parent=0
    #allocation2 [shape = 'u8[262144]{0}', space=vmem, size = 0x40000, scoped, tag = 'output window, operand 0']
    #allocation3 [shape = 's32[2]{0}', space=sflag, size = 0x8, scoped, tag = 'scoped memory for tpu_custom_call.1']
    %11 = vsyncpa [#allocation3], 0
    %s12 = scalar_lea.sflag [#allocation3], 1
    %13 = vsyncpa %s12, 0
    loop: start=0, step=1, limit=4
    $region2: #{tpu_custom_call.1} parent=1 // loop_pre_header
      _
    $region3: #{tpu_custom_call.1} parent=1 // loop_header
      %s15 = sphi 0, %s19
      %p16 = scmp.ge.s32.totalorder %s15, 4
      %s25 = sphi 0, %s27
      %s28 = sphi 0, %s25
      %s29 = sphi 0, %s28
      %s45 = sphi 0, %s29
      %s49 = sphi 0, %s49
      %s51 = sphi 0, %s49
      %s52 = sphi 0, %s51
      %s66 = sphi 0, %s52
      %s70 = sphi 0, %s70
      %s72 = sphi 0, %s70
      %s73 = sphi 0, %s72
      %s87 = sphi 0, %s73
      %s91 = sphi 0, %s91
      %s93 = sphi 0, %s91
      %s94 = sphi 0, %s93
      %s108 = sphi 0, %s94
      %s112 = sphi 0, %s112
      %s114 = sphi 0, %s112
      %s115 = sphi 0, %s114
      %s129 = sphi 0, %s115
      %s133 = sphi 0, %s133
      %s135 = sphi 0, %s133
      %s136 = sphi 0, %s135
      %s150 = sphi 0, %s136
      %s156 = sphi 0, %s158
      %s159 = sphi 0, %s156
      %s160 = sphi 0, %s159
      %s176 = sphi 0, %s160
    $region4: #{tpu_custom_call.1} parent=1 // loop_header_branch
      %18 = sbr.rel (%p16) target = $region8
    $region5: #{tpu_custom_call.1} parent=1 // loop_body
      %s20 = ssub.s32 %s15, 1
      %s21 = ssub.s32 %s15, 2
      %s22 = sadd.s32 %s15, 1
      %s23 = ssub.s32 %s15, %s22
      %p24 = scmp.eq.s32.totalorder %s23, 0
      %s26 = sadd.s32 %s25, 1
      %s27 = scalar_select %p24, %s25, %s26
      %p30 = pneg %p24
      %p31 = scmp.eq.s32.totalorder %s15, 1
      %p32 = por %p30, %p31
      %p33 = scmp.ne.s32.totalorder %s25, %s28
      %p34 = scmp.eq.s32.totalorder %s15, 0
      %p35 = por %p33, %p34
      %p36 = scmp.ne.s32.totalorder %s25, %s28
      %p37 = scmp.eq.s32.totalorder %s20, 1
      %p38 = por %p36, %p37
      %p39 = scmp.ne.s32.totalorder %s28, %s29
      %p40 = scmp.eq.s32.totalorder %s20, 0
      %p41 = por %p39, %p40
      %p42 = scmp.ne.s32.totalorder %s28, %s29
      %p43 = scmp.eq.s32.totalorder %s21, 1
      %p44 = por %p42, %p43
      %p46 = scmp.ne.s32.totalorder %s29, %s45
      %p47 = scmp.eq.s32.totalorder %s21, 0
      %p48 = por %p46, %p47
      %s50 = sadd.s32 %s49, 1
      %p53 = scmp.eq.s32.totalorder %s15, 1
      %p54 = scmp.ne.s32.totalorder %s49, %s51
      %p55 = scmp.eq.s32.totalorder %s15, 0
      %p56 = por %p54, %p55
      %p57 = scmp.ne.s32.totalorder %s49, %s51
      %p58 = scmp.eq.s32.totalorder %s20, 1
      %p59 = por %p57, %p58
      %p60 = scmp.ne.s32.totalorder %s51, %s52
      %p61 = scmp.eq.s32.totalorder %s20, 0
      %p62 = por %p60, %p61
      %p63 = scmp.ne.s32.totalorder %s51, %s52
      %p64 = scmp.eq.s32.totalorder %s21, 1
      %p65 = por %p63, %p64
      %p67 = scmp.ne.s32.totalorder %s52, %s66
      %p68 = scmp.eq.s32.totalorder %s21, 0
      %p69 = por %p67, %p68
      %s71 = sadd.s32 %s70, 1
      %p74 = scmp.eq.s32.totalorder %s15, 1
      %p75 = scmp.ne.s32.totalorder %s70, %s72
      %p76 = scmp.eq.s32.totalorder %s15, 0
      %p77 = por %p75, %p76
      %p78 = scmp.ne.s32.totalorder %s70, %s72
      %p79 = scmp.eq.s32.totalorder %s20, 1
      %p80 = por %p78, %p79
      %p81 = scmp.ne.s32.totalorder %s72, %s73
      %p82 = scmp.eq.s32.totalorder %s20, 0
      %p83 = por %p81, %p82
      %p84 = scmp.ne.s32.totalorder %s72, %s73
      %p85 = scmp.eq.s32.totalorder %s21, 1
      %p86 = por %p84, %p85
      %p88 = scmp.ne.s32.totalorder %s73, %s87
      %p89 = scmp.eq.s32.totalorder %s21, 0
      %p90 = por %p88, %p89
      %s92 = sadd.s32 %s91, 1
      %p95 = scmp.eq.s32.totalorder %s15, 1
      %p96 = scmp.ne.s32.totalorder %s91, %s93
      %p97 = scmp.eq.s32.totalorder %s15, 0
      %p98 = por %p96, %p97
      %p99 = scmp.ne.s32.totalorder %s91, %s93
      %p100 = scmp.eq.s32.totalorder %s20, 1
      %p101 = por %p99, %p100
      %p102 = scmp.ne.s32.totalorder %s93, %s94
      %p103 = scmp.eq.s32.totalorder %s20, 0
      %p104 = por %p102, %p103
      %p105 = scmp.ne.s32.totalorder %s93, %s94
      %p106 = scmp.eq.s32.totalorder %s21, 1
      %p107 = por %p105, %p106
      %p109 = scmp.ne.s32.totalorder %s94, %s108
      %p110 = scmp.eq.s32.totalorder %s21, 0
      %p111 = por %p109, %p110
      %s113 = sadd.s32 %s112, 1
      %p116 = scmp.eq.s32.totalorder %s15, 1
      %p117 = scmp.ne.s32.totalorder %s112, %s114
      %p118 = scmp.eq.s32.totalorder %s15, 0
      %p119 = por %p117, %p118
      %p120 = scmp.ne.s32.totalorder %s112, %s114
      %p121 = scmp.eq.s32.totalorder %s20, 1
      %p122 = por %p120, %p121
      %p123 = scmp.ne.s32.totalorder %s114, %s115
      %p124 = scmp.eq.s32.totalorder %s20, 0
      %p125 = por %p123, %p124
      %p126 = scmp.ne.s32.totalorder %s114, %s115
      %p127 = scmp.eq.s32.totalorder %s21, 1
      %p128 = por %p126, %p127
      %p130 = scmp.ne.s32.totalorder %s115, %s129
      %p131 = scmp.eq.s32.totalorder %s21, 0
      %p132 = por %p130, %p131
      %s134 = sadd.s32 %s133, 1
      %p137 = scmp.eq.s32.totalorder %s15, 1
      %p138 = scmp.ne.s32.totalorder %s133, %s135
      %p139 = scmp.eq.s32.totalorder %s15, 0
      %p140 = por %p138, %p139
      %p141 = scmp.ne.s32.totalorder %s133, %s135
      %p142 = scmp.eq.s32.totalorder %s20, 1
      %p143 = por %p141, %p142
      %p144 = scmp.ne.s32.totalorder %s135, %s136
      %p145 = scmp.eq.s32.totalorder %s20, 0
      %p146 = por %p144, %p145
      %p147 = scmp.ne.s32.totalorder %s135, %s136
      %p148 = scmp.eq.s32.totalorder %s21, 1
      %p149 = por %p147, %p148
      %p151 = scmp.ne.s32.totalorder %s136, %s150
      %p152 = scmp.eq.s32.totalorder %s21, 0
      %p153 = por %p151, %p152
      %s154 = ssub.s32 %s15, %s22
      %p155 = scmp.eq.s32.totalorder %s154, 0
      %s157 = sadd.s32 %s156, 1
      %s158 = scalar_select %p155, %s156, %s157
      %p161 = pneg %p155
      %p162 = scmp.eq.s32.totalorder %s15, 1
      %p163 = por %p161, %p162
      %p164 = scmp.ne.s32.totalorder %s156, %s159
      %p165 = scmp.eq.s32.totalorder %s15, 0
      %p166 = por %p164, %p165
      %p167 = scmp.ne.s32.totalorder %s156, %s159
      %p168 = scmp.eq.s32.totalorder %s20, 1
      %p169 = por %p167, %p168
      %p170 = scmp.ne.s32.totalorder %s159, %s160
      %p171 = scmp.eq.s32.totalorder %s20, 0
      %p172 = por %p170, %p171
      %p173 = scmp.ne.s32.totalorder %s159, %s160
      %p174 = scmp.eq.s32.totalorder %s21, 1
      %p175 = por %p173, %p174
      %p177 = scmp.ne.s32.totalorder %s160, %s176
      %p178 = scmp.eq.s32.totalorder %s21, 0
      %p179 = por %p177, %p178
      %p180 = scmp.le.s32.totalorder 1, %s15
      %p181 = scmp.lt.s32.totalorder %s15, 3
      %p182 = pnand %p180, %p181
      %p183 = pneg %p182
      // Predicated region
      $region9: #{tpu_custom_call.1} parent=5 // pred_check
        _
      $region10: #{tpu_custom_call.1} parent=5 // pred_check_branch
        %185 = sbr.rel (%p182) target = $region12
      $region11: #{tpu_custom_call.1} parent=5 // pred_region
        %s186 = ssub.s32 %s15, 1
        // Predicated region
        $region13: #{tpu_custom_call.1} parent=11 // pred_check
          %p187 = pneg %p62
        $region14: #{tpu_custom_call.1} parent=11 // pred_check_branch
          %189 = sbr.rel (%p187) target = $region16
        $region15: #{tpu_custom_call.1} parent=11 // pred_region
          _
        $region16: #{tpu_custom_call.1} parent=11 // pred_fallthru
          _
        // Predicated region
        $region17: #{tpu_custom_call.1} parent=11 // pred_check
          %p190 = pneg %p83
        $region18: #{tpu_custom_call.1} parent=11 // pred_check_branch
          %192 = sbr.rel (%p190) target = $region20
        $region19: #{tpu_custom_call.1} parent=11 // pred_region
          _
        $region20: #{tpu_custom_call.1} parent=11 // pred_fallthru
          _
        // Predicated region
        $region21: #{tpu_custom_call.1} parent=11 // pred_check
          %p193 = pneg %p104
        $region22: #{tpu_custom_call.1} parent=11 // pred_check_branch
          %195 = sbr.rel (%p193) target = $region24
        $region23: #{tpu_custom_call.1} parent=11 // pred_region
          _
        $region24: #{tpu_custom_call.1} parent=11 // pred_fallthru
          _
        // Predicated region
        $region25: #{tpu_custom_call.1} parent=11 // pred_check
          %p196 = pneg %p125
        $region26: #{tpu_custom_call.1} parent=11 // pred_check_branch
          %198 = sbr.rel (%p196) target = $region28
        $region27: #{tpu_custom_call.1} parent=11 // pred_region
          _
        $region28: #{tpu_custom_call.1} parent=11 // pred_fallthru
          _
        // Predicated region
        $region29: #{tpu_custom_call.1} parent=11 // pred_check
          %p199 = pneg %p146
        $region30: #{tpu_custom_call.1} parent=11 // pred_check_branch
          %201 = sbr.rel (%p199) target = $region32
        $region31: #{tpu_custom_call.1} parent=11 // pred_region
          _
        $region32: #{tpu_custom_call.1} parent=11 // pred_fallthru
          _
      $region12: #{tpu_custom_call.1} parent=5 // pred_fallthru
        _
      %p202 = scmp.lt.s32.totalorder %s15, 2
      // Predicated region
      $region33: #{tpu_custom_call.1} parent=5 // pred_check
        %p203 = pneg %p202
      $region34: #{tpu_custom_call.1} parent=5 // pred_check_branch
        %205 = sbr.rel (%p203) target = $region36
      $region35: #{tpu_custom_call.1} parent=5 // pred_region
        // Predicated region
        $region37: #{tpu_custom_call.1} parent=35 // pred_check
          %p206 = pneg %p35
        $region38: #{tpu_custom_call.1} parent=35 // pred_check_branch
          %208 = sbr.rel (%p206) target = $region40
        $region39: #{tpu_custom_call.1} parent=35 // pred_region
          %p209 = scmp.lt.s32.totalorder %s15, 1
          %s210 = scalar_select %p209, %s15, 1
          %s211 = smul.addr %s210, 32
          %s212 = smul.addr %s211, 8
          %s213 = scalar_lea.vmem %s0, %s212
        $region40: #{tpu_custom_call.1} parent=35 // pred_fallthru
          _
      $region36: #{tpu_custom_call.1} parent=5 // pred_fallthru
        _
      %p214 = scmp.le.s32.totalorder 1, %s15
      %p215 = scmp.lt.s32.totalorder %s15, 3
      %p216 = pnand %p214, %p215
      %p217 = pneg %p216
      // Predicated region
      $region41: #{tpu_custom_call.1} parent=5 // pred_check
        _
      $region42: #{tpu_custom_call.1} parent=5 // pred_check_branch
        %219 = sbr.rel (%p216) target = $region44
      $region43: #{tpu_custom_call.1} parent=5 // pred_region
        %s220 = ssub.s32 %s15, 1
        %p221 = scmp.lt.s32.totalorder %s20, 1
        %s222 = scalar_select %p221, %s20, 1
        %s223 = smul.addr %s222, 32
        %s224 = smul.addr %s223, 8
        %s225 = scalar_lea.vmem %s0, %s224
        %p226 = pneg %p41
        %p227 = pneg %p38
        %p228 = pneg %p62
        %p229 = pneg %p59
        %p230 = pneg %p83
        %p231 = pneg %p80
        %p232 = pneg %p104
        %p233 = pneg %p101
        %p234 = pneg %p125
        %p235 = pneg %p122
        %p236 = pneg %p146
        %p237 = pneg %p143
        %p238 = pneg %p172
        %p239 = pneg %p169
        %s240 = sand.u32 %s159, 1
        %s241 = scalar_lea.sflag [#allocation3], %s240
        %s242 = sand.u32 %s159, 1
        %s243 = smul.addr %s242, 256
        %s244 = scalar_lea.vmem [#allocation2], %s243
        %p245 = scmp.lt.s32.totalorder %s20, 1
        %s246 = scalar_select %p245, %s20, 1
        %s247 = smul.addr %s246, 32
        %s248 = smul.addr %s247, 8
        %s249 = scalar_lea.vmem %s0, %s248
        %v251 = vld [vmem:[%s249] sm:$0xff]
        %v252 = vld [vmem:[%s249 + $0x8] sm:$0xff]
        %v253 = vld [vmem:[%s249 + $0x10] sm:$0xff]
        %v254 = vld [vmem:[%s249 + $0x18] sm:$0xff]
        %v255 = vld [vmem:[%s249 + $0x20] sm:$0xff]
        %v256 = vld [vmem:[%s249 + $0x28] sm:$0xff]
        %v257 = vld [vmem:[%s249 + $0x30] sm:$0xff]
        %v258 = vld [vmem:[%s249 + $0x38] sm:$0xff]
        %v259 = vld [vmem:[%s249 + $0x40] sm:$0xff]
        %v260 = vld [vmem:[%s249 + $0x48] sm:$0xff]
        %v261 = vld [vmem:[%s249 + $0x50] sm:$0xff]
        %v262 = vld [vmem:[%s249 + $0x58] sm:$0xff]
        %v263 = vld [vmem:[%s249 + $0x60] sm:$0xff]
        %v264 = vld [vmem:[%s249 + $0x68] sm:$0xff]
        %v265 = vld [vmem:[%s249 + $0x70] sm:$0xff]
        %v266 = vld [vmem:[%s249 + $0x78] sm:$0xff]
        %v267 = vld [vmem:[%s249 + $0x80] sm:$0xff]
        %v268 = vld [vmem:[%s249 + $0x88] sm:$0xff]
        %v269 = vld [vmem:[%s249 + $0x90] sm:$0xff]
        %v270 = vld [vmem:[%s249 + $0x98] sm:$0xff]
        %v271 = vld [vmem:[%s249 + $0xa0] sm:$0xff]
        %v272 = vld [vmem:[%s249 + $0xa8] sm:$0xff]
        %v273 = vld [vmem:[%s249 + $0xb0] sm:$0xff]
        %v274 = vld [vmem:[%s249 + $0xb8] sm:$0xff]
        %v275 = vld [vmem:[%s249 + $0xc0] sm:$0xff]
        %v276 = vld [vmem:[%s249 + $0xc8] sm:$0xff]
        %v277 = vld [vmem:[%s249 + $0xd0] sm:$0xff]
        %v278 = vld [vmem:[%s249 + $0xd8] sm:$0xff]
        %v279 = vld [vmem:[%s249 + $0xe0] sm:$0xff]
        %v280 = vld [vmem:[%s249 + $0xe8] sm:$0xff]
        %v281 = vld [vmem:[%s249 + $0xf0] sm:$0xff]
        %v282 = vld [vmem:[%s249 + $0xf8] sm:$0xff]
        %v283 = vmax.f32 %v251, 0.0
        %v284 = vmax.f32 %v252, 0.0
        %v285 = vmax.f32 %v253, 0.0
        %v286 = vmax.f32 %v254, 0.0
        %v287 = vmax.f32 %v255, 0.0
        %v288 = vmax.f32 %v256, 0.0
        %v289 = vmax.f32 %v257, 0.0
        %v290 = vmax.f32 %v258, 0.0
        %v291 = vmax.f32 %v259, 0.0
        %v292 = vmax.f32 %v260, 0.0
        %v293 = vmax.f32 %v261, 0.0
        %v294 = vmax.f32 %v262, 0.0
        %v295 = vmax.f32 %v263, 0.0
        %v296 = vmax.f32 %v264, 0.0
        %v297 = vmax.f32 %v265, 0.0
        %v298 = vmax.f32 %v266, 0.0
        %v299 = vmax.f32 %v267, 0.0
        %v300 = vmax.f32 %v268, 0.0
        %v301 = vmax.f32 %v269, 0.0
        %v302 = vmax.f32 %v270, 0.0
        %v303 = vmax.f32 %v271, 0.0
        %v304 = vmax.f32 %v272, 0.0
        %v305 = vmax.f32 %v273, 0.0
        %v306 = vmax.f32 %v274, 0.0
        %v307 = vmax.f32 %v275, 0.0
        %v308 = vmax.f32 %v276, 0.0
        %v309 = vmax.f32 %v277, 0.0
        %v310 = vmax.f32 %v278, 0.0
        %v311 = vmax.f32 %v279, 0.0
        %v312 = vmax.f32 %v280, 0.0
        %v313 = vmax.f32 %v281, 0.0
        %v314 = vmax.f32 %v282, 0.0
        %v315 = vpack.c.bf16 %v283, %v283
        %v316 = vpack.c.bf16 %v284, %v284
        %v317 = vpack.c.bf16 %v285, %v285
        %v318 = vpack.c.bf16 %v286, %v286
        %v319 = vpack.c.bf16 %v287, %v287
        %v320 = vpack.c.bf16 %v288, %v288
        %v321 = vpack.c.bf16 %v289, %v289
        %v322 = vpack.c.bf16 %v290, %v290
        %v323 = vpack.c.bf16 %v291, %v291
        %v324 = vpack.c.bf16 %v292, %v292
        %v325 = vpack.c.bf16 %v293, %v293
        %v326 = vpack.c.bf16 %v294, %v294
        %v327 = vpack.c.bf16 %v295, %v295
        %v328 = vpack.c.bf16 %v296, %v296
        %v329 = vpack.c.bf16 %v297, %v297
        %v330 = vpack.c.bf16 %v298, %v298
        %v331 = vpack.c.bf16 %v299, %v299
        %v332 = vpack.c.bf16 %v300, %v300
        %v333 = vpack.c.bf16 %v301, %v301
        %v334 = vpack.c.bf16 %v302, %v302
        %v335 = vpack.c.bf16 %v303, %v303
        %v336 = vpack.c.bf16 %v304, %v304
        %v337 = vpack.c.bf16 %v305, %v305
        %v338 = vpack.c.bf16 %v306, %v306
        %v339 = vpack.c.bf16 %v307, %v307
        %v340 = vpack.c.bf16 %v308, %v308
        %v341 = vpack.c.bf16 %v309, %v309
        %v342 = vpack.c.bf16 %v310, %v310
        %v343 = vpack.c.bf16 %v311, %v311
        %v344 = vpack.c.bf16 %v312, %v312
        %v345 = vpack.c.bf16 %v313, %v313
        %v346 = vpack.c.bf16 %v314, %v314
        %v379 = vunpack.c.l.b16 %v315
        %v380 = vunpack.c.l.b16 %v316
        %v381 = vunpack.c.l.b16 %v317
        %v382 = vunpack.c.l.b16 %v318
        %v383 = vunpack.c.l.b16 %v319
        %v384 = vunpack.c.l.b16 %v320
        %v385 = vunpack.c.l.b16 %v321
        %v386 = vunpack.c.l.b16 %v322
        %v387 = vunpack.c.l.b16 %v323
        %v388 = vunpack.c.l.b16 %v324
        %v389 = vunpack.c.l.b16 %v325
        %v390 = vunpack.c.l.b16 %v326
        %v391 = vunpack.c.l.b16 %v327
        %v392 = vunpack.c.l.b16 %v328
        %v393 = vunpack.c.l.b16 %v329
        %v394 = vunpack.c.l.b16 %v330
        %v395 = vunpack.c.l.b16 %v331
        %v396 = vunpack.c.l.b16 %v332
        %v397 = vunpack.c.l.b16 %v333
        %v398 = vunpack.c.l.b16 %v334
        %v399 = vunpack.c.l.b16 %v335
        %v400 = vunpack.c.l.b16 %v336
        %v401 = vunpack.c.l.b16 %v337
        %v402 = vunpack.c.l.b16 %v338
        %v403 = vunpack.c.l.b16 %v339
        %v404 = vunpack.c.l.b16 %v340
        %v405 = vunpack.c.l.b16 %v341
        %v406 = vunpack.c.l.b16 %v342
        %v407 = vunpack.c.l.b16 %v343
        %v408 = vunpack.c.l.b16 %v344
        %v409 = vunpack.c.l.b16 %v345
        %v410 = vunpack.c.l.b16 %v346
        %v411 = vpack.c.b16 %v380, %v379
        %v412 = vpack.c.b16 %v382, %v381
        %v413 = vpack.c.b16 %v384, %v383
        %v414 = vpack.c.b16 %v386, %v385
        %v415 = vpack.c.b16 %v388, %v387
        %v416 = vpack.c.b16 %v390, %v389
        %v417 = vpack.c.b16 %v392, %v391
        %v418 = vpack.c.b16 %v394, %v393
        %v419 = vpack.c.b16 %v396, %v395
        %v420 = vpack.c.b16 %v398, %v397
        %v421 = vpack.c.b16 %v400, %v399
        %v422 = vpack.c.b16 %v402, %v401
        %v423 = vpack.c.b16 %v404, %v403
        %v424 = vpack.c.b16 %v406, %v405
        %v425 = vpack.c.b16 %v408, %v407
        %v426 = vpack.c.b16 %v410, %v409
        %v428 = vshrl.u32 %v411, 16
        %v430 = vrot.slane %v428, 7
        %v431 = vshll.u32 %v411, 16
        %v433 = vor.u32 %v430, %v431
        %v435 = vshrl.u32 %v412, 16
        %v437 = vrot.slane %v435, 7
        %v438 = vshll.u32 %v412, 16
        %v440 = vor.u32 %v437, %v438
        %v442 = vshrl.u32 %v413, 16
        %v444 = vrot.slane %v442, 7
        %v445 = vshll.u32 %v413, 16
        %v447 = vor.u32 %v444, %v445
        %v449 = vshrl.u32 %v414, 16
        %v451 = vrot.slane %v449, 7
        %v452 = vshll.u32 %v414, 16
        %v454 = vor.u32 %v451, %v452
        %v456 = vshrl.u32 %v415, 16
        %v458 = vrot.slane %v456, 7
        %v459 = vshll.u32 %v415, 16
        %v461 = vor.u32 %v458, %v459
        %v463 = vshrl.u32 %v416, 16
        %v465 = vrot.slane %v463, 7
        %v466 = vshll.u32 %v416, 16
        %v468 = vor.u32 %v465, %v466
        %v470 = vshrl.u32 %v417, 16
        %v472 = vrot.slane %v470, 7
        %v473 = vshll.u32 %v417, 16
        %v475 = vor.u32 %v472, %v473
        %v477 = vshrl.u32 %v418, 16
        %v479 = vrot.slane %v477, 7
        %v480 = vshll.u32 %v418, 16
        %v482 = vor.u32 %v479, %v480
        %v484 = vshrl.u32 %v419, 16
        %v486 = vrot.slane %v484, 7
        %v487 = vshll.u32 %v419, 16
        %v489 = vor.u32 %v486, %v487
        %v491 = vshrl.u32 %v420, 16
        %v493 = vrot.slane %v491, 7
        %v494 = vshll.u32 %v420, 16
        %v496 = vor.u32 %v493, %v494
        %v498 = vshrl.u32 %v421, 16
        %v500 = vrot.slane %v498, 7
        %v501 = vshll.u32 %v421, 16
        %v503 = vor.u32 %v500, %v501
        %v505 = vshrl.u32 %v422, 16
        %v507 = vrot.slane %v505, 7
        %v508 = vshll.u32 %v422, 16
        %v510 = vor.u32 %v507, %v508
        %v512 = vshrl.u32 %v423, 16
        %v514 = vrot.slane %v512, 7
        %v515 = vshll.u32 %v423, 16
        %v517 = vor.u32 %v514, %v515
        %v519 = vshrl.u32 %v424, 16
        %v521 = vrot.slane %v519, 7
        %v522 = vshll.u32 %v424, 16
        %v524 = vor.u32 %v521, %v522
        %v526 = vshrl.u32 %v425, 16
        %v528 = vrot.slane %v526, 7
        %v529 = vshll.u32 %v425, 16
        %v531 = vor.u32 %v528, %v529
        %v533 = vshrl.u32 %v426, 16
        %v535 = vrot.slane %v533, 7
        %v536 = vshll.u32 %v426, 16
        %v538 = vor.u32 %v535, %v536
        %vm571 = vcmask 1040384
        %vm572 = vsmask.f32 256
        %vm573 = vmand %vm571, %vm572
        %v574 = vsel %vm573, 0, %v433
        %v575 = vsel %vm573, 0, %v440
        %v576 = vsel %vm573, 0, %v447
        %v577 = vsel %vm573, 0, %v454
        %v578 = vsel %vm573, 0, %v461
        %v579 = vsel %vm573, 0, %v468
        %v580 = vsel %vm573, 0, %v475
        %v581 = vsel %vm573, 0, %v482
        %v582 = vsel %vm573, 0, %v489
        %v583 = vsel %vm573, 0, %v496
        %v584 = vsel %vm573, 0, %v503
        %v585 = vsel %vm573, 0, %v510
        %v586 = vsel %vm573, 0, %v517
        %v587 = vsel %vm573, 0, %v524
        %v588 = vsel %vm573, 0, %v531
        %v589 = vsel %vm573, 0, %v538
        %v590 = vsel %vm573, %v430, 0
        %v591 = vsel %vm573, %v437, 0
        %v592 = vsel %vm573, %v444, 0
        %v593 = vsel %vm573, %v451, 0
        %v594 = vsel %vm573, %v458, 0
        %v595 = vsel %vm573, %v465, 0
        %v596 = vsel %vm573, %v472, 0
        %v597 = vsel %vm573, %v479, 0
        %v598 = vsel %vm573, %v486, 0
        %v599 = vsel %vm573, %v493, 0
        %v600 = vsel %vm573, %v500, 0
        %v601 = vsel %vm573, %v507, 0
        %v602 = vsel %vm573, %v514, 0
        %v603 = vsel %vm573, %v521, 0
        %v604 = vsel %vm573, %v528, 0
        %v605 = vsel %vm573, %v535, 0
        %v606 = vld [vmem:[%s1] sm:$0x3]
        %vm607 = vsmask.f32 7424
        %v609 = vshrl.u32 0, 16
        %v611 = vshll.u32 0, 16
        %v613 = vrot.slane %v611, 1
        %v614 = vor.u32 %v609, %v613
        %v615 = vsel %vm607, %v614, %v613
        %v617 = vshrl.u32 %v574, 16
        %v619 = vshll.u32 %v574, 16
        %v621 = vrot.slane %v619, 1
        %v622 = vor.u32 %v617, %v621
        %v624 = vshll.u32 %v590, 16
        %v626 = vrot.slane %v624, 1
        %v627 = vsel %vm607, %v622, %v626
        %v629 = vshrl.u32 %v575, 16
        %v631 = vshll.u32 %v575, 16
        %v633 = vrot.slane %v631, 1
        %v634 = vor.u32 %v629, %v633
        %v636 = vshll.u32 %v591, 16
        %v638 = vrot.slane %v636, 1
        %v639 = vsel %vm607, %v634, %v638
        %v641 = vshrl.u32 %v576, 16
        %v643 = vshll.u32 %v576, 16
        %v645 = vrot.slane %v643, 1
        %v646 = vor.u32 %v641, %v645
        %v648 = vshll.u32 %v592, 16
        %v650 = vrot.slane %v648, 1
        %v651 = vsel %vm607, %v646, %v650
        %v653 = vshrl.u32 %v577, 16
        %v655 = vshll.u32 %v577, 16
        %v657 = vrot.slane %v655, 1
        %v658 = vor.u32 %v653, %v657
        %v660 = vshll.u32 %v593, 16
        %v662 = vrot.slane %v660, 1
        %v663 = vsel %vm607, %v658, %v662
        %v665 = vshrl.u32 %v578, 16
        %v667 = vshll.u32 %v578, 16
        %v669 = vrot.slane %v667, 1
        %v670 = vor.u32 %v665, %v669
        %v672 = vshll.u32 %v594, 16
        %v674 = vrot.slane %v672, 1
        %v675 = vsel %vm607, %v670, %v674
        %v677 = vshrl.u32 %v579, 16
        %v679 = vshll.u32 %v579, 16
        %v681 = vrot.slane %v679, 1
        %v682 = vor.u32 %v677, %v681
        %v684 = vshll.u32 %v595, 16
        %v686 = vrot.slane %v684, 1
        %v687 = vsel %vm607, %v682, %v686
        %v689 = vshrl.u32 %v580, 16
        %v691 = vshll.u32 %v580, 16
        %v693 = vrot.slane %v691, 1
        %v694 = vor.u32 %v689, %v693
        %v696 = vshll.u32 %v596, 16
        %v698 = vrot.slane %v696, 1
        %v699 = vsel %vm607, %v694, %v698
        %v701 = vshrl.u32 %v581, 16
        %v703 = vshll.u32 %v581, 16
        %v705 = vrot.slane %v703, 1
        %v706 = vor.u32 %v701, %v705
        %v708 = vshll.u32 %v597, 16
        %v710 = vrot.slane %v708, 1
        %v711 = vsel %vm607, %v706, %v710
        %v713 = vshrl.u32 %v582, 16
        %v715 = vshll.u32 %v582, 16
        %v717 = vrot.slane %v715, 1
        %v718 = vor.u32 %v713, %v717
        %v720 = vshll.u32 %v598, 16
        %v722 = vrot.slane %v720, 1
        %v723 = vsel %vm607, %v718, %v722
        %v725 = vshrl.u32 %v583, 16
        %v727 = vshll.u32 %v583, 16
        %v729 = vrot.slane %v727, 1
        %v730 = vor.u32 %v725, %v729
        %v732 = vshll.u32 %v599, 16
        %v734 = vrot.slane %v732, 1
        %v735 = vsel %vm607, %v730, %v734
        %v737 = vshrl.u32 %v584, 16
        %v739 = vshll.u32 %v584, 16
        %v741 = vrot.slane %v739, 1
        %v742 = vor.u32 %v737, %v741
        %v744 = vshll.u32 %v600, 16
        %v746 = vrot.slane %v744, 1
        %v747 = vsel %vm607, %v742, %v746
        %v749 = vshrl.u32 %v585, 16
        %v751 = vshll.u32 %v585, 16
        %v753 = vrot.slane %v751, 1
        %v754 = vor.u32 %v749, %v753
        %v756 = vshll.u32 %v601, 16
        %v758 = vrot.slane %v756, 1
        %v759 = vsel %vm607, %v754, %v758
        %v761 = vshrl.u32 %v586, 16
        %v763 = vshll.u32 %v586, 16
        %v765 = vrot.slane %v763, 1
        %v766 = vor.u32 %v761, %v765
        %v768 = vshll.u32 %v602, 16
        %v770 = vrot.slane %v768, 1
        %v771 = vsel %vm607, %v766, %v770
        %v773 = vshrl.u32 %v587, 16
        %v775 = vshll.u32 %v587, 16
        %v777 = vrot.slane %v775, 1
        %v778 = vor.u32 %v773, %v777
        %v780 = vshll.u32 %v603, 16
        %v782 = vrot.slane %v780, 1
        %v783 = vsel %vm607, %v778, %v782
        %v785 = vshrl.u32 %v588, 16
        %v787 = vshll.u32 %v588, 16
        %v789 = vrot.slane %v787, 1
        %v790 = vor.u32 %v785, %v789
        %v792 = vshll.u32 %v604, 16
        %v794 = vrot.slane %v792, 1
        %v795 = vsel %vm607, %v790, %v794
        %s796 = scalar_lea.vmem %s1, 2
        %v797 = vld [vmem:[%s796] sm:$0x3]
        %vm798 = vcmask 31744
        %v800 = vsel %vm798, %v615, 0
        %v803 = vsel %vm798, %v627, 0
        %v806 = vsel %vm798, %v639, 0
        %v809 = vsel %vm798, %v651, 0
        %v812 = vsel %vm798, %v663, 0
        %v815 = vsel %vm798, %v675, 0
        %v818 = vsel %vm798, %v687, 0
        %v821 = vsel %vm798, %v699, 0
        %v824 = vsel %vm798, %v711, 0
        %v827 = vsel %vm798, %v723, 0
        %v830 = vsel %vm798, %v735, 0
        %v833 = vsel %vm798, %v747, 0
        %v836 = vsel %vm798, %v759, 0
        %v839 = vsel %vm798, %v771, 0
        %v842 = vsel %vm798, %v783, 0
        %v845 = vsel %vm798, %v795, 0
        %vm847 = vcmask 1041408
        %v849 = vsel %vm847, %v797, 0
        %851 = vmatpush.bf16.msra.mxu0 0
        %852 = vmatpush.bf16.msra.mxu0 0
        %853 = vmatpush.bf16.msra.mxu0 0
        %854 = vmatpush.bf16.msra.mxu0 0
        %855 = vmatpush.bf16.msra.mxu0 0
        %856 = vmatpush.bf16.msra.mxu0 0
        %857 = vmatpush.bf16.msra.mxu0 0
        %858 = vmatpush.bf16.msra.mxu0 %v849
        %859 = vmatmul.bf16.gmra.mxu0 %v800
        %v860 = vpop.f32.mrf.mxu0
        %v861 = vadd.f32 0.0, %v860
        %v862 = vpop.f32.mrf.mxu0
        %v863 = vadd.f32 0.0, %v862
        %864 = vmatmul.bf16.gmra.mxu0 %v803
        %v865 = vpop.f32.mrf.mxu0
        %v866 = vadd.f32 0.0, %v865
        %v867 = vpop.f32.mrf.mxu0
        %v868 = vadd.f32 0.0, %v867
        %869 = vmatmul.bf16.gmra.mxu0 %v806
        %v870 = vpop.f32.mrf.mxu0
        %v871 = vadd.f32 0.0, %v870
        %v872 = vpop.f32.mrf.mxu0
        %v873 = vadd.f32 0.0, %v872
        %874 = vmatmul.bf16.gmra.mxu0 %v809
        %v875 = vpop.f32.mrf.mxu0
        %v876 = vadd.f32 0.0, %v875
        %v877 = vpop.f32.mrf.mxu0
        %v878 = vadd.f32 0.0, %v877
        %879 = vmatmul.bf16.gmra.mxu0 %v812
        %v880 = vpop.f32.mrf.mxu0
        %v881 = vadd.f32 0.0, %v880
        %v882 = vpop.f32.mrf.mxu0
        %v883 = vadd.f32 0.0, %v882
        %884 = vmatmul.bf16.gmra.mxu0 %v815
        %v885 = vpop.f32.mrf.mxu0
        %v886 = vadd.f32 0.0, %v885
        %v887 = vpop.f32.mrf.mxu0
        %v888 = vadd.f32 0.0, %v887
        %889 = vmatmul.bf16.gmra.mxu0 %v818
        %v890 = vpop.f32.mrf.mxu0
        %v891 = vadd.f32 0.0, %v890
        %v892 = vpop.f32.mrf.mxu0
        %v893 = vadd.f32 0.0, %v892
        %894 = vmatmul.bf16.gmra.mxu0 %v821
        %v895 = vpop.f32.mrf.mxu0
        %v896 = vadd.f32 0.0, %v895
        %v897 = vpop.f32.mrf.mxu0
        %v898 = vadd.f32 0.0, %v897
        %899 = vmatmul.bf16.gmra.mxu0 %v824
        %v900 = vpop.f32.mrf.mxu0
        %v901 = vadd.f32 0.0, %v900
        %v902 = vpop.f32.mrf.mxu0
        %v903 = vadd.f32 0.0, %v902
        %904 = vmatmul.bf16.gmra.mxu0 %v827
        %v905 = vpop.f32.mrf.mxu0
        %v906 = vadd.f32 0.0, %v905
        %v907 = vpop.f32.mrf.mxu0
        %v908 = vadd.f32 0.0, %v907
        %909 = vmatmul.bf16.gmra.mxu0 %v830
        %v910 = vpop.f32.mrf.mxu0
        %v911 = vadd.f32 0.0, %v910
        %v912 = vpop.f32.mrf.mxu0
        %v913 = vadd.f32 0.0, %v912
        %914 = vmatmul.bf16.gmra.mxu0 %v833
        %v915 = vpop.f32.mrf.mxu0
        %v916 = vadd.f32 0.0, %v915
        %v917 = vpop.f32.mrf.mxu0
        %v918 = vadd.f32 0.0, %v917
        %919 = vmatmul.bf16.gmra.mxu0 %v836
        %v920 = vpop.f32.mrf.mxu0
        %v921 = vadd.f32 0.0, %v920
        %v922 = vpop.f32.mrf.mxu0
        %v923 = vadd.f32 0.0, %v922
        %924 = vmatmul.bf16.gmra.mxu0 %v839
        %v925 = vpop.f32.mrf.mxu0
        %v926 = vadd.f32 0.0, %v925
        %v927 = vpop.f32.mrf.mxu0
        %v928 = vadd.f32 0.0, %v927
        %929 = vmatmul.bf16.gmra.mxu0 %v842
        %v930 = vpop.f32.mrf.mxu0
        %v931 = vadd.f32 0.0, %v930
        %v932 = vpop.f32.mrf.mxu0
        %v933 = vadd.f32 0.0, %v932
        %934 = vmatmul.bf16.gmra.mxu0 %v845
        %v935 = vpop.f32.mrf.mxu0
        %v936 = vadd.f32 0.0, %v935
        %v937 = vpop.f32.mrf.mxu0
        %v938 = vadd.f32 0.0, %v937
        %939 = vdwg.mxu0
        %v940 = vsel %vm798, 0, 0
        %v942 = vsel %vm798, %v574, 0
        %v944 = vsel %vm798, %v575, 0
        %v946 = vsel %vm798, %v576, 0
        %v948 = vsel %vm798, %v577, 0
        %v950 = vsel %vm798, %v578, 0
        %v952 = vsel %vm798, %v579, 0
        %v954 = vsel %vm798, %v580, 0
        %v956 = vsel %vm798, %v581, 0
        %v958 = vsel %vm798, %v582, 0
        %v960 = vsel %vm798, %v583, 0
        %v962 = vsel %vm798, %v584, 0
        %v964 = vsel %vm798, %v585, 0
        %v966 = vsel %vm798, %v586, 0
        %v968 = vsel %vm798, %v587, 0
        %v970 = vsel %vm798, %v588, 0
        %v973 = vsel %vm847, %v606, 0
        %975 = vmatpush.bf16.msra.mxu0 0
        %976 = vmatpush.bf16.msra.mxu0 0
        %977 = vmatpush.bf16.msra.mxu0 0
        %978 = vmatpush.bf16.msra.mxu0 0
        %979 = vmatpush.bf16.msra.mxu0 0
        %980 = vmatpush.bf16.msra.mxu0 0
        %981 = vmatpush.bf16.msra.mxu0 0
        %982 = vmatpush.bf16.msra.mxu0 %v973
        %983 = vmatmul.bf16.gmra.mxu0 %v940
        %v984 = vpop.f32.mrf.mxu0
        %v985 = vadd.f32 %v861, %v984
        %v986 = vpop.f32.mrf.mxu0
        %v987 = vadd.f32 %v863, %v986
        %988 = vmatmul.bf16.gmra.mxu0 %v942
        %v989 = vpop.f32.mrf.mxu0
        %v990 = vadd.f32 %v866, %v989
        %v991 = vpop.f32.mrf.mxu0
        %v992 = vadd.f32 %v868, %v991
        %993 = vmatmul.bf16.gmra.mxu0 %v944
        %v994 = vpop.f32.mrf.mxu0
        %v995 = vadd.f32 %v871, %v994
        %v996 = vpop.f32.mrf.mxu0
        %v997 = vadd.f32 %v873, %v996
        %998 = vmatmul.bf16.gmra.mxu0 %v946
        %v999 = vpop.f32.mrf.mxu0
        %v1000 = vadd.f32 %v876, %v999
        %v1001 = vpop.f32.mrf.mxu0
        %v1002 = vadd.f32 %v878, %v1001
        %1003 = vmatmul.bf16.gmra.mxu0 %v948
        %v1004 = vpop.f32.mrf.mxu0
        %v1005 = vadd.f32 %v881, %v1004
        %v1006 = vpop.f32.mrf.mxu0
        %v1007 = vadd.f32 %v883, %v1006
        %1008 = vmatmul.bf16.gmra.mxu0 %v950
        %v1009 = vpop.f32.mrf.mxu0
        %v1010 = vadd.f32 %v886, %v1009
        %v1011 = vpop.f32.mrf.mxu0
        %v1012 = vadd.f32 %v888, %v1011
        %1013 = vmatmul.bf16.gmra.mxu0 %v952
        %v1014 = vpop.f32.mrf.mxu0
        %v1015 = vadd.f32 %v891, %v1014
        %v1016 = vpop.f32.mrf.mxu0
        %v1017 = vadd.f32 %v893, %v1016
        %1018 = vmatmul.bf16.gmra.mxu0 %v954
        %v1019 = vpop.f32.mrf.mxu0
        %v1020 = vadd.f32 %v896, %v1019
        %v1021 = vpop.f32.mrf.mxu0
        %v1022 = vadd.f32 %v898, %v1021
        %1023 = vmatmul.bf16.gmra.mxu0 %v956
        %v1024 = vpop.f32.mrf.mxu0
        %v1025 = vadd.f32 %v901, %v1024
        %v1026 = vpop.f32.mrf.mxu0
        %v1027 = vadd.f32 %v903, %v1026
        %1028 = vmatmul.bf16.gmra.mxu0 %v958
        %v1029 = vpop.f32.mrf.mxu0
        %v1030 = vadd.f32 %v906, %v1029
        %v1031 = vpop.f32.mrf.mxu0
        %v1032 = vadd.f32 %v908, %v1031
        %1033 = vmatmul.bf16.gmra.mxu0 %v960
        %v1034 = vpop.f32.mrf.mxu0
        %v1035 = vadd.f32 %v911, %v1034
        %v1036 = vpop.f32.mrf.mxu0
        %v1037 = vadd.f32 %v913, %v1036
        %1038 = vmatmul.bf16.gmra.mxu0 %v962
        %v1039 = vpop.f32.mrf.mxu0
        %v1040 = vadd.f32 %v916, %v1039
        %v1041 = vpop.f32.mrf.mxu0
        %v1042 = vadd.f32 %v918, %v1041
        %1043 = vmatmul.bf16.gmra.mxu0 %v964
        %v1044 = vpop.f32.mrf.mxu0
        %v1045 = vadd.f32 %v921, %v1044
        %v1046 = vpop.f32.mrf.mxu0
        %v1047 = vadd.f32 %v923, %v1046
        %1048 = vmatmul.bf16.gmra.mxu0 %v966
        %v1049 = vpop.f32.mrf.mxu0
        %v1050 = vadd.f32 %v926, %v1049
        %v1051 = vpop.f32.mrf.mxu0
        %v1052 = vadd.f32 %v928, %v1051
        %1053 = vmatmul.bf16.gmra.mxu0 %v968
        %v1054 = vpop.f32.mrf.mxu0
        %v1055 = vadd.f32 %v931, %v1054
        %v1056 = vpop.f32.mrf.mxu0
        %v1057 = vadd.f32 %v933, %v1056
        %1058 = vmatmul.bf16.gmra.mxu0 %v970
        %v1059 = vpop.f32.mrf.mxu0
        %v1060 = vadd.f32 %v936, %v1059
        %v1061 = vpop.f32.mrf.mxu0
        %v1062 = vadd.f32 %v938, %v1061
        %1063 = vdwg.mxu0
        %vm1095 = vcmask 1046528
        %v1096 = vrot.slane 0, 1
        %v1097 = vsel %vm1095, %v1096, %v1096
        %v1098 = vrot.slane %v574, 1
        %v1099 = vrot.slane %v590, 1
        %v1100 = vsel %vm1095, %v1098, %v1099
        %v1101 = vrot.slane %v575, 1
        %v1102 = vrot.slane %v591, 1
        %v1103 = vsel %vm1095, %v1101, %v1102
        %v1104 = vrot.slane %v576, 1
        %v1105 = vrot.slane %v592, 1
        %v1106 = vsel %vm1095, %v1104, %v1105
        %v1107 = vrot.slane %v577, 1
        %v1108 = vrot.slane %v593, 1
        %v1109 = vsel %vm1095, %v1107, %v1108
        %v1110 = vrot.slane %v578, 1
        %v1111 = vrot.slane %v594, 1
        %v1112 = vsel %vm1095, %v1110, %v1111
        %v1113 = vrot.slane %v579, 1
        %v1114 = vrot.slane %v595, 1
        %v1115 = vsel %vm1095, %v1113, %v1114
        %v1116 = vrot.slane %v580, 1
        %v1117 = vrot.slane %v596, 1
        %v1118 = vsel %vm1095, %v1116, %v1117
        %v1119 = vrot.slane %v581, 1
        %v1120 = vrot.slane %v597, 1
        %v1121 = vsel %vm1095, %v1119, %v1120
        %v1122 = vrot.slane %v582, 1
        %v1123 = vrot.slane %v598, 1
        %v1124 = vsel %vm1095, %v1122, %v1123
        %v1125 = vrot.slane %v583, 1
        %v1126 = vrot.slane %v599, 1
        %v1127 = vsel %vm1095, %v1125, %v1126
        %v1128 = vrot.slane %v584, 1
        %v1129 = vrot.slane %v600, 1
        %v1130 = vsel %vm1095, %v1128, %v1129
        %v1131 = vrot.slane %v585, 1
        %v1132 = vrot.slane %v601, 1
        %v1133 = vsel %vm1095, %v1131, %v1132
        %v1134 = vrot.slane %v586, 1
        %v1135 = vrot.slane %v602, 1
        %v1136 = vsel %vm1095, %v1134, %v1135
        %v1137 = vrot.slane %v587, 1
        %v1138 = vrot.slane %v603, 1
        %v1139 = vsel %vm1095, %v1137, %v1138
        %v1140 = vrot.slane %v588, 1
        %v1141 = vrot.slane %v604, 1
        %v1142 = vsel %vm1095, %v1140, %v1141
        %s1143 = scalar_lea.vmem %s1, 4
        %v1144 = vld [vmem:[%s1143] sm:$0x3]
        %v1146 = vsel %vm798, %v1097, 0
        %v1149 = vsel %vm798, %v1100, 0
        %v1152 = vsel %vm798, %v1103, 0
        %v1155 = vsel %vm798, %v1106, 0
        %v1158 = vsel %vm798, %v1109, 0
        %v1161 = vsel %vm798, %v1112, 0
        %v1164 = vsel %vm798, %v1115, 0
        %v1167 = vsel %vm798, %v1118, 0
        %v1170 = vsel %vm798, %v1121, 0
        %v1173 = vsel %vm798, %v1124, 0
        %v1176 = vsel %vm798, %v1127, 0
        %v1179 = vsel %vm798, %v1130, 0
        %v1182 = vsel %vm798, %v1133, 0
        %v1185 = vsel %vm798, %v1136, 0
        %v1188 = vsel %vm798, %v1139, 0
        %v1191 = vsel %vm798, %v1142, 0
        %v1194 = vsel %vm847, %v1144, 0
        %1196 = vmatpush.bf16.msra.mxu0 0
        %1197 = vmatpush.bf16.msra.mxu0 0
        %1198 = vmatpush.bf16.msra.mxu0 0
        %1199 = vmatpush.bf16.msra.mxu0 0
        %1200 = vmatpush.bf16.msra.mxu0 0
        %1201 = vmatpush.bf16.msra.mxu0 0
        %1202 = vmatpush.bf16.msra.mxu0 0
        %1203 = vmatpush.bf16.msra.mxu0 %v1194
        %1204 = vmatmul.bf16.gmra.mxu0 %v1146
        %v1205 = vpop.f32.mrf.mxu0
        %v1206 = vadd.f32 0.0, %v1205
        %v1207 = vpop.f32.mrf.mxu0
        %v1208 = vadd.f32 0.0, %v1207
        %1209 = vmatmul.bf16.gmra.mxu0 %v1149
        %v1210 = vpop.f32.mrf.mxu0
        %v1211 = vadd.f32 0.0, %v1210
        %v1212 = vpop.f32.mrf.mxu0
        %v1213 = vadd.f32 0.0, %v1212
        %1214 = vmatmul.bf16.gmra.mxu0 %v1152
        %v1215 = vpop.f32.mrf.mxu0
        %v1216 = vadd.f32 0.0, %v1215
        %v1217 = vpop.f32.mrf.mxu0
        %v1218 = vadd.f32 0.0, %v1217
        %1219 = vmatmul.bf16.gmra.mxu0 %v1155
        %v1220 = vpop.f32.mrf.mxu0
        %v1221 = vadd.f32 0.0, %v1220
        %v1222 = vpop.f32.mrf.mxu0
        %v1223 = vadd.f32 0.0, %v1222
        %1224 = vmatmul.bf16.gmra.mxu0 %v1158
        %v1225 = vpop.f32.mrf.mxu0
        %v1226 = vadd.f32 0.0, %v1225
        %v1227 = vpop.f32.mrf.mxu0
        %v1228 = vadd.f32 0.0, %v1227
        %1229 = vmatmul.bf16.gmra.mxu0 %v1161
        %v1230 = vpop.f32.mrf.mxu0
        %v1231 = vadd.f32 0.0, %v1230
        %v1232 = vpop.f32.mrf.mxu0
        %v1233 = vadd.f32 0.0, %v1232
        %1234 = vmatmul.bf16.gmra.mxu0 %v1164
        %v1235 = vpop.f32.mrf.mxu0
        %v1236 = vadd.f32 0.0, %v1235
        %v1237 = vpop.f32.mrf.mxu0
        %v1238 = vadd.f32 0.0, %v1237
        %1239 = vmatmul.bf16.gmra.mxu0 %v1167
        %v1240 = vpop.f32.mrf.mxu0
        %v1241 = vadd.f32 0.0, %v1240
        %v1242 = vpop.f32.mrf.mxu0
        %v1243 = vadd.f32 0.0, %v1242
        %1244 = vmatmul.bf16.gmra.mxu0 %v1170
        %v1245 = vpop.f32.mrf.mxu0
        %v1246 = vadd.f32 0.0, %v1245
        %v1247 = vpop.f32.mrf.mxu0
        %v1248 = vadd.f32 0.0, %v1247
        %1249 = vmatmul.bf16.gmra.mxu0 %v1173
        %v1250 = vpop.f32.mrf.mxu0
        %v1251 = vadd.f32 0.0, %v1250
        %v1252 = vpop.f32.mrf.mxu0
        %v1253 = vadd.f32 0.0, %v1252
        %1254 = vmatmul.bf16.gmra.mxu0 %v1176
        %v1255 = vpop.f32.mrf.mxu0
        %v1256 = vadd.f32 0.0, %v1255
        %v1257 = vpop.f32.mrf.mxu0
        %v1258 = vadd.f32 0.0, %v1257
        %1259 = vmatmul.bf16.gmra.mxu0 %v1179
        %v1260 = vpop.f32.mrf.mxu0
        %v1261 = vadd.f32 0.0, %v1260
        %v1262 = vpop.f32.mrf.mxu0
        %v1263 = vadd.f32 0.0, %v1262
        %1264 = vmatmul.bf16.gmra.mxu0 %v1182
        %v1265 = vpop.f32.mrf.mxu0
        %v1266 = vadd.f32 0.0, %v1265
        %v1267 = vpop.f32.mrf.mxu0
        %v1268 = vadd.f32 0.0, %v1267
        %1269 = vmatmul.bf16.gmra.mxu0 %v1185
        %v1270 = vpop.f32.mrf.mxu0
        %v1271 = vadd.f32 0.0, %v1270
        %v1272 = vpop.f32.mrf.mxu0
        %v1273 = vadd.f32 0.0, %v1272
        %1274 = vmatmul.bf16.gmra.mxu0 %v1188
        %v1275 = vpop.f32.mrf.mxu0
        %v1276 = vadd.f32 0.0, %v1275
        %v1277 = vpop.f32.mrf.mxu0
        %v1278 = vadd.f32 0.0, %v1277
        %1279 = vmatmul.bf16.gmra.mxu0 %v1191
        %v1280 = vpop.f32.mrf.mxu0
        %v1281 = vadd.f32 0.0, %v1280
        %v1282 = vpop.f32.mrf.mxu0
        %v1283 = vadd.f32 0.0, %v1282
        %1284 = vdwg.mxu0
        %v1285 = vadd.f32 %v985, %v1206
        %v1286 = vadd.f32 %v987, %v1208
        %v1287 = vadd.f32 %v990, %v1211
        %v1288 = vadd.f32 %v992, %v1213
        %v1289 = vadd.f32 %v995, %v1216
        %v1290 = vadd.f32 %v997, %v1218
        %v1291 = vadd.f32 %v1000, %v1221
        %v1292 = vadd.f32 %v1002, %v1223
        %v1293 = vadd.f32 %v1005, %v1226
        %v1294 = vadd.f32 %v1007, %v1228
        %v1295 = vadd.f32 %v1010, %v1231
        %v1296 = vadd.f32 %v1012, %v1233
        %v1297 = vadd.f32 %v1015, %v1236
        %v1298 = vadd.f32 %v1017, %v1238
        %v1299 = vadd.f32 %v1020, %v1241
        %v1300 = vadd.f32 %v1022, %v1243
        %v1301 = vadd.f32 %v1025, %v1246
        %v1302 = vadd.f32 %v1027, %v1248
        %v1303 = vadd.f32 %v1030, %v1251
        %v1304 = vadd.f32 %v1032, %v1253
        %v1305 = vadd.f32 %v1035, %v1256
        %v1306 = vadd.f32 %v1037, %v1258
        %v1307 = vadd.f32 %v1040, %v1261
        %v1308 = vadd.f32 %v1042, %v1263
        %v1309 = vadd.f32 %v1045, %v1266
        %v1310 = vadd.f32 %v1047, %v1268
        %v1311 = vadd.f32 %v1050, %v1271
        %v1312 = vadd.f32 %v1052, %v1273
        %v1313 = vadd.f32 %v1055, %v1276
        %v1314 = vadd.f32 %v1057, %v1278
        %v1315 = vadd.f32 %v1060, %v1281
        %v1316 = vadd.f32 %v1062, %v1283
        %s1317 = scalar_lea.vmem %s1, 6
        %v1318 = vld [vmem:[%s1317] sm:$0x3]
        %v1320 = vsel %vm798, %v589, 0
        %v1323 = vsel %vm847, %v1318, 0
        %1325 = vmatpush.bf16.msra.mxu0 0
        %1326 = vmatpush.bf16.msra.mxu0 0
        %1327 = vmatpush.bf16.msra.mxu0 0
        %1328 = vmatpush.bf16.msra.mxu0 0
        %1329 = vmatpush.bf16.msra.mxu0 0
        %1330 = vmatpush.bf16.msra.mxu0 0
        %1331 = vmatpush.bf16.msra.mxu0 0
        %1332 = vmatpush.bf16.msra.mxu0 %v1323
        %1333 = vmatmul.bf16.gmra.mxu0 %v942
        %v1334 = vpop.f32.mrf.mxu0
        %v1335 = vadd.f32 0.0, %v1334
        %v1336 = vpop.f32.mrf.mxu0
        %v1337 = vadd.f32 0.0, %v1336
        %1338 = vmatmul.bf16.gmra.mxu0 %v944
        %v1339 = vpop.f32.mrf.mxu0
        %v1340 = vadd.f32 0.0, %v1339
        %v1341 = vpop.f32.mrf.mxu0
        %v1342 = vadd.f32 0.0, %v1341
        %1343 = vmatmul.bf16.gmra.mxu0 %v946
        %v1344 = vpop.f32.mrf.mxu0
        %v1345 = vadd.f32 0.0, %v1344
        %v1346 = vpop.f32.mrf.mxu0
        %v1347 = vadd.f32 0.0, %v1346
        %1348 = vmatmul.bf16.gmra.mxu0 %v948
        %v1349 = vpop.f32.mrf.mxu0
        %v1350 = vadd.f32 0.0, %v1349
        %v1351 = vpop.f32.mrf.mxu0
        %v1352 = vadd.f32 0.0, %v1351
        %1353 = vmatmul.bf16.gmra.mxu0 %v950
        %v1354 = vpop.f32.mrf.mxu0
        %v1355 = vadd.f32 0.0, %v1354
        %v1356 = vpop.f32.mrf.mxu0
        %v1357 = vadd.f32 0.0, %v1356
        %1358 = vmatmul.bf16.gmra.mxu0 %v952
        %v1359 = vpop.f32.mrf.mxu0
        %v1360 = vadd.f32 0.0, %v1359
        %v1361 = vpop.f32.mrf.mxu0
        %v1362 = vadd.f32 0.0, %v1361
        %1363 = vmatmul.bf16.gmra.mxu0 %v954
        %v1364 = vpop.f32.mrf.mxu0
        %v1365 = vadd.f32 0.0, %v1364
        %v1366 = vpop.f32.mrf.mxu0
        %v1367 = vadd.f32 0.0, %v1366
        %1368 = vmatmul.bf16.gmra.mxu0 %v956
        %v1369 = vpop.f32.mrf.mxu0
        %v1370 = vadd.f32 0.0, %v1369
        %v1371 = vpop.f32.mrf.mxu0
        %v1372 = vadd.f32 0.0, %v1371
        %1373 = vmatmul.bf16.gmra.mxu0 %v958
        %v1374 = vpop.f32.mrf.mxu0
        %v1375 = vadd.f32 0.0, %v1374
        %v1376 = vpop.f32.mrf.mxu0
        %v1377 = vadd.f32 0.0, %v1376
        %1378 = vmatmul.bf16.gmra.mxu0 %v960
        %v1379 = vpop.f32.mrf.mxu0
        %v1380 = vadd.f32 0.0, %v1379
        %v1381 = vpop.f32.mrf.mxu0
        %v1382 = vadd.f32 0.0, %v1381
        %1383 = vmatmul.bf16.gmra.mxu0 %v962
        %v1384 = vpop.f32.mrf.mxu0
        %v1385 = vadd.f32 0.0, %v1384
        %v1386 = vpop.f32.mrf.mxu0
        %v1387 = vadd.f32 0.0, %v1386
        %1388 = vmatmul.bf16.gmra.mxu0 %v964
        %v1389 = vpop.f32.mrf.mxu0
        %v1390 = vadd.f32 0.0, %v1389
        %v1391 = vpop.f32.mrf.mxu0
        %v1392 = vadd.f32 0.0, %v1391
        %1393 = vmatmul.bf16.gmra.mxu0 %v966
        %v1394 = vpop.f32.mrf.mxu0
        %v1395 = vadd.f32 0.0, %v1394
        %v1396 = vpop.f32.mrf.mxu0
        %v1397 = vadd.f32 0.0, %v1396
        %1398 = vmatmul.bf16.gmra.mxu0 %v968
        %v1399 = vpop.f32.mrf.mxu0
        %v1400 = vadd.f32 0.0, %v1399
        %v1401 = vpop.f32.mrf.mxu0
        %v1402 = vadd.f32 0.0, %v1401
        %1403 = vmatmul.bf16.gmra.mxu0 %v970
        %v1404 = vpop.f32.mrf.mxu0
        %v1405 = vadd.f32 0.0, %v1404
        %v1406 = vpop.f32.mrf.mxu0
        %v1407 = vadd.f32 0.0, %v1406
        %1408 = vmatmul.bf16.gmra.mxu0 %v1320
        %v1409 = vpop.f32.mrf.mxu0
        %v1410 = vadd.f32 0.0, %v1409
        %v1411 = vpop.f32.mrf.mxu0
        %v1412 = vadd.f32 0.0, %v1411
        %1413 = vdwg.mxu0
        %v1414 = vadd.f32 %v1285, %v1335
        %v1415 = vadd.f32 %v1286, %v1337
        %v1416 = vadd.f32 %v1287, %v1340
        %v1417 = vadd.f32 %v1288, %v1342
        %v1418 = vadd.f32 %v1289, %v1345
        %v1419 = vadd.f32 %v1290, %v1347
        %v1420 = vadd.f32 %v1291, %v1350
        %v1421 = vadd.f32 %v1292, %v1352
        %v1422 = vadd.f32 %v1293, %v1355
        %v1423 = vadd.f32 %v1294, %v1357
        %v1424 = vadd.f32 %v1295, %v1360
        %v1425 = vadd.f32 %v1296, %v1362
        %v1426 = vadd.f32 %v1297, %v1365
        %v1427 = vadd.f32 %v1298, %v1367
        %v1428 = vadd.f32 %v1299, %v1370
        %v1429 = vadd.f32 %v1300, %v1372
        %v1430 = vadd.f32 %v1301, %v1375
        %v1431 = vadd.f32 %v1302, %v1377
        %v1432 = vadd.f32 %v1303, %v1380
        %v1433 = vadd.f32 %v1304, %v1382
        %v1434 = vadd.f32 %v1305, %v1385
        %v1435 = vadd.f32 %v1306, %v1387
        %v1436 = vadd.f32 %v1307, %v1390
        %v1437 = vadd.f32 %v1308, %v1392
        %v1438 = vadd.f32 %v1309, %v1395
        %v1439 = vadd.f32 %v1310, %v1397
        %v1440 = vadd.f32 %v1311, %v1400
        %v1441 = vadd.f32 %v1312, %v1402
        %v1442 = vadd.f32 %v1313, %v1405
        %v1443 = vadd.f32 %v1314, %v1407
        %v1444 = vadd.f32 %v1315, %v1410
        %v1445 = vadd.f32 %v1316, %v1412
        %v1446 = vshrl.u32 %v589, 16
        %v1448 = vshll.u32 %v589, 16
        %v1450 = vrot.slane %v1448, 1
        %v1451 = vor.u32 %v1446, %v1450
        %v1453 = vshll.u32 %v605, 16
        %v1455 = vrot.slane %v1453, 1
        %v1456 = vsel %vm607, %v1451, %v1455
        %s1457 = scalar_lea.vmem %s1, 8
        %v1458 = vld [vmem:[%s1457] sm:$0x3]
        %v1460 = vsel %vm798, %v1456, 0
        %v1463 = vsel %vm847, %v1458, 0
        %1465 = vmatpush.bf16.msra.mxu0 0
        %1466 = vmatpush.bf16.msra.mxu0 0
        %1467 = vmatpush.bf16.msra.mxu0 0
        %1468 = vmatpush.bf16.msra.mxu0 0
        %1469 = vmatpush.bf16.msra.mxu0 0
        %1470 = vmatpush.bf16.msra.mxu0 0
        %1471 = vmatpush.bf16.msra.mxu0 0
        %1472 = vmatpush.bf16.msra.mxu0 %v1463
        %1473 = vmatmul.bf16.gmra.mxu0 %v803
        %v1474 = vpop.f32.mrf.mxu0
        %v1475 = vadd.f32 0.0, %v1474
        %v1476 = vpop.f32.mrf.mxu0
        %v1477 = vadd.f32 0.0, %v1476
        %1478 = vmatmul.bf16.gmra.mxu0 %v806
        %v1479 = vpop.f32.mrf.mxu0
        %v1480 = vadd.f32 0.0, %v1479
        %v1481 = vpop.f32.mrf.mxu0
        %v1482 = vadd.f32 0.0, %v1481
        %1483 = vmatmul.bf16.gmra.mxu0 %v809
        %v1484 = vpop.f32.mrf.mxu0
        %v1485 = vadd.f32 0.0, %v1484
        %v1486 = vpop.f32.mrf.mxu0
        %v1487 = vadd.f32 0.0, %v1486
        %1488 = vmatmul.bf16.gmra.mxu0 %v812
        %v1489 = vpop.f32.mrf.mxu0
        %v1490 = vadd.f32 0.0, %v1489
        %v1491 = vpop.f32.mrf.mxu0
        %v1492 = vadd.f32 0.0, %v1491
        %1493 = vmatmul.bf16.gmra.mxu0 %v815
        %v1494 = vpop.f32.mrf.mxu0
        %v1495 = vadd.f32 0.0, %v1494
        %v1496 = vpop.f32.mrf.mxu0
        %v1497 = vadd.f32 0.0, %v1496
        %1498 = vmatmul.bf16.gmra.mxu0 %v818
        %v1499 = vpop.f32.mrf.mxu0
        %v1500 = vadd.f32 0.0, %v1499
        %v1501 = vpop.f32.mrf.mxu0
        %v1502 = vadd.f32 0.0, %v1501
        %1503 = vmatmul.bf16.gmra.mxu0 %v821
        %v1504 = vpop.f32.mrf.mxu0
        %v1505 = vadd.f32 0.0, %v1504
        %v1506 = vpop.f32.mrf.mxu0
        %v1507 = vadd.f32 0.0, %v1506
        %1508 = vmatmul.bf16.gmra.mxu0 %v824
        %v1509 = vpop.f32.mrf.mxu0
        %v1510 = vadd.f32 0.0, %v1509
        %v1511 = vpop.f32.mrf.mxu0
        %v1512 = vadd.f32 0.0, %v1511
        %1513 = vmatmul.bf16.gmra.mxu0 %v827
        %v1514 = vpop.f32.mrf.mxu0
        %v1515 = vadd.f32 0.0, %v1514
        %v1516 = vpop.f32.mrf.mxu0
        %v1517 = vadd.f32 0.0, %v1516
        %1518 = vmatmul.bf16.gmra.mxu0 %v830
        %v1519 = vpop.f32.mrf.mxu0
        %v1520 = vadd.f32 0.0, %v1519
        %v1521 = vpop.f32.mrf.mxu0
        %v1522 = vadd.f32 0.0, %v1521
        %1523 = vmatmul.bf16.gmra.mxu0 %v833
        %v1524 = vpop.f32.mrf.mxu0
        %v1525 = vadd.f32 0.0, %v1524
        %v1526 = vpop.f32.mrf.mxu0
        %v1527 = vadd.f32 0.0, %v1526
        %1528 = vmatmul.bf16.gmra.mxu0 %v836
        %v1529 = vpop.f32.mrf.mxu0
        %v1530 = vadd.f32 0.0, %v1529
        %v1531 = vpop.f32.mrf.mxu0
        %v1532 = vadd.f32 0.0, %v1531
        %1533 = vmatmul.bf16.gmra.mxu0 %v839
        %v1534 = vpop.f32.mrf.mxu0
        %v1535 = vadd.f32 0.0, %v1534
        %v1536 = vpop.f32.mrf.mxu0
        %v1537 = vadd.f32 0.0, %v1536
        %1538 = vmatmul.bf16.gmra.mxu0 %v842
        %v1539 = vpop.f32.mrf.mxu0
        %v1540 = vadd.f32 0.0, %v1539
        %v1541 = vpop.f32.mrf.mxu0
        %v1542 = vadd.f32 0.0, %v1541
        %1543 = vmatmul.bf16.gmra.mxu0 %v845
        %v1544 = vpop.f32.mrf.mxu0
        %v1545 = vadd.f32 0.0, %v1544
        %v1546 = vpop.f32.mrf.mxu0
        %v1547 = vadd.f32 0.0, %v1546
        %1548 = vmatmul.bf16.gmra.mxu0 %v1460
        %v1549 = vpop.f32.mrf.mxu0
        %v1550 = vadd.f32 0.0, %v1549
        %v1551 = vpop.f32.mrf.mxu0
        %v1552 = vadd.f32 0.0, %v1551
        %1553 = vdwg.mxu0
        %v1554 = vadd.f32 %v1414, %v1475
        %v1555 = vadd.f32 %v1415, %v1477
        %v1556 = vadd.f32 %v1416, %v1480
        %v1557 = vadd.f32 %v1417, %v1482
        %v1558 = vadd.f32 %v1418, %v1485
        %v1559 = vadd.f32 %v1419, %v1487
        %v1560 = vadd.f32 %v1420, %v1490
        %v1561 = vadd.f32 %v1421, %v1492
        %v1562 = vadd.f32 %v1422, %v1495
        %v1563 = vadd.f32 %v1423, %v1497
        %v1564 = vadd.f32 %v1424, %v1500
        %v1565 = vadd.f32 %v1425, %v1502
        %v1566 = vadd.f32 %v1426, %v1505
        %v1567 = vadd.f32 %v1427, %v1507
        %v1568 = vadd.f32 %v1428, %v1510
        %v1569 = vadd.f32 %v1429, %v1512
        %v1570 = vadd.f32 %v1430, %v1515
        %v1571 = vadd.f32 %v1431, %v1517
        %v1572 = vadd.f32 %v1432, %v1520
        %v1573 = vadd.f32 %v1433, %v1522
        %v1574 = vadd.f32 %v1434, %v1525
        %v1575 = vadd.f32 %v1435, %v1527
        %v1576 = vadd.f32 %v1436, %v1530
        %v1577 = vadd.f32 %v1437, %v1532
        %v1578 = vadd.f32 %v1438, %v1535
        %v1579 = vadd.f32 %v1439, %v1537
        %v1580 = vadd.f32 %v1440, %v1540
        %v1581 = vadd.f32 %v1441, %v1542
        %v1582 = vadd.f32 %v1442, %v1545
        %v1583 = vadd.f32 %v1443, %v1547
        %v1584 = vadd.f32 %v1444, %v1550
        %v1585 = vadd.f32 %v1445, %v1552
        %v1588 = vrot.slane %v589, 1
        %v1589 = vrot.slane %v605, 1
        %v1590 = vsel %vm1095, %v1588, %v1589
        %s1591 = scalar_lea.vmem %s1, 10
        %v1592 = vld [vmem:[%s1591] sm:$0x3]
        %v1594 = vsel %vm798, %v1590, 0
        %v1597 = vsel %vm847, %v1592, 0
        %1599 = vmatpush.bf16.msra.mxu0 0
        %1600 = vmatpush.bf16.msra.mxu0 0
        %1601 = vmatpush.bf16.msra.mxu0 0
        %1602 = vmatpush.bf16.msra.mxu0 0
        %1603 = vmatpush.bf16.msra.mxu0 0
        %1604 = vmatpush.bf16.msra.mxu0 0
        %1605 = vmatpush.bf16.msra.mxu0 0
        %1606 = vmatpush.bf16.msra.mxu0 %v1597
        %1607 = vmatmul.bf16.gmra.mxu0 %v1149
        %v1608 = vpop.f32.mrf.mxu0
        %v1609 = vadd.f32 0.0, %v1608
        %v1610 = vpop.f32.mrf.mxu0
        %v1611 = vadd.f32 0.0, %v1610
        %1612 = vmatmul.bf16.gmra.mxu0 %v1152
        %v1613 = vpop.f32.mrf.mxu0
        %v1614 = vadd.f32 0.0, %v1613
        %v1615 = vpop.f32.mrf.mxu0
        %v1616 = vadd.f32 0.0, %v1615
        %1617 = vmatmul.bf16.gmra.mxu0 %v1155
        %v1618 = vpop.f32.mrf.mxu0
        %v1619 = vadd.f32 0.0, %v1618
        %v1620 = vpop.f32.mrf.mxu0
        %v1621 = vadd.f32 0.0, %v1620
        %1622 = vmatmul.bf16.gmra.mxu0 %v1158
        %v1623 = vpop.f32.mrf.mxu0
        %v1624 = vadd.f32 0.0, %v1623
        %v1625 = vpop.f32.mrf.mxu0
        %v1626 = vadd.f32 0.0, %v1625
        %1627 = vmatmul.bf16.gmra.mxu0 %v1161
        %v1628 = vpop.f32.mrf.mxu0
        %v1629 = vadd.f32 0.0, %v1628
        %v1630 = vpop.f32.mrf.mxu0
        %v1631 = vadd.f32 0.0, %v1630
        %1632 = vmatmul.bf16.gmra.mxu0 %v1164
        %v1633 = vpop.f32.mrf.mxu0
        %v1634 = vadd.f32 0.0, %v1633
        %v1635 = vpop.f32.mrf.mxu0
        %v1636 = vadd.f32 0.0, %v1635
        %1637 = vmatmul.bf16.gmra.mxu0 %v1167
        %v1638 = vpop.f32.mrf.mxu0
        %v1639 = vadd.f32 0.0, %v1638
        %v1640 = vpop.f32.mrf.mxu0
        %v1641 = vadd.f32 0.0, %v1640
        %1642 = vmatmul.bf16.gmra.mxu0 %v1170
        %v1643 = vpop.f32.mrf.mxu0
        %v1644 = vadd.f32 0.0, %v1643
        %v1645 = vpop.f32.mrf.mxu0
        %v1646 = vadd.f32 0.0, %v1645
        %1647 = vmatmul.bf16.gmra.mxu0 %v1173
        %v1648 = vpop.f32.mrf.mxu0
        %v1649 = vadd.f32 0.0, %v1648
        %v1650 = vpop.f32.mrf.mxu0
        %v1651 = vadd.f32 0.0, %v1650
        %1652 = vmatmul.bf16.gmra.mxu0 %v1176
        %v1653 = vpop.f32.mrf.mxu0
        %v1654 = vadd.f32 0.0, %v1653
        %v1655 = vpop.f32.mrf.mxu0
        %v1656 = vadd.f32 0.0, %v1655
        %1657 = vmatmul.bf16.gmra.mxu0 %v1179
        %v1658 = vpop.f32.mrf.mxu0
        %v1659 = vadd.f32 0.0, %v1658
        %v1660 = vpop.f32.mrf.mxu0
        %v1661 = vadd.f32 0.0, %v1660
        %1662 = vmatmul.bf16.gmra.mxu0 %v1182
        %v1663 = vpop.f32.mrf.mxu0
        %v1664 = vadd.f32 0.0, %v1663
        %v1665 = vpop.f32.mrf.mxu0
        %v1666 = vadd.f32 0.0, %v1665
        %1667 = vmatmul.bf16.gmra.mxu0 %v1185
        %v1668 = vpop.f32.mrf.mxu0
        %v1669 = vadd.f32 0.0, %v1668
        %v1670 = vpop.f32.mrf.mxu0
        %v1671 = vadd.f32 0.0, %v1670
        %1672 = vmatmul.bf16.gmra.mxu0 %v1188
        %v1673 = vpop.f32.mrf.mxu0
        %v1674 = vadd.f32 0.0, %v1673
        %v1675 = vpop.f32.mrf.mxu0
        %v1676 = vadd.f32 0.0, %v1675
        %1677 = vmatmul.bf16.gmra.mxu0 %v1191
        %v1678 = vpop.f32.mrf.mxu0
        %v1679 = vadd.f32 0.0, %v1678
        %v1680 = vpop.f32.mrf.mxu0
        %v1681 = vadd.f32 0.0, %v1680
        %1682 = vmatmul.bf16.gmra.mxu0 %v1594
        %v1683 = vpop.f32.mrf.mxu0
        %v1684 = vadd.f32 0.0, %v1683
        %v1685 = vpop.f32.mrf.mxu0
        %v1686 = vadd.f32 0.0, %v1685
        %1687 = vdwg.mxu0
        %v1688 = vadd.f32 %v1554, %v1609
        %v1689 = vadd.f32 %v1555, %v1611
        %v1690 = vadd.f32 %v1556, %v1614
        %v1691 = vadd.f32 %v1557, %v1616
        %v1692 = vadd.f32 %v1558, %v1619
        %v1693 = vadd.f32 %v1559, %v1621
        %v1694 = vadd.f32 %v1560, %v1624
        %v1695 = vadd.f32 %v1561, %v1626
        %v1696 = vadd.f32 %v1562, %v1629
        %v1697 = vadd.f32 %v1563, %v1631
        %v1698 = vadd.f32 %v1564, %v1634
        %v1699 = vadd.f32 %v1565, %v1636
        %v1700 = vadd.f32 %v1566, %v1639
        %v1701 = vadd.f32 %v1567, %v1641
        %v1702 = vadd.f32 %v1568, %v1644
        %v1703 = vadd.f32 %v1569, %v1646
        %v1704 = vadd.f32 %v1570, %v1649
        %v1705 = vadd.f32 %v1571, %v1651
        %v1706 = vadd.f32 %v1572, %v1654
        %v1707 = vadd.f32 %v1573, %v1656
        %v1708 = vadd.f32 %v1574, %v1659
        %v1709 = vadd.f32 %v1575, %v1661
        %v1710 = vadd.f32 %v1576, %v1664
        %v1711 = vadd.f32 %v1577, %v1666
        %v1712 = vadd.f32 %v1578, %v1669
        %v1713 = vadd.f32 %v1579, %v1671
        %v1714 = vadd.f32 %v1580, %v1674
        %v1715 = vadd.f32 %v1581, %v1676
        %v1716 = vadd.f32 %v1582, %v1679
        %v1717 = vadd.f32 %v1583, %v1681
        %v1718 = vadd.f32 %v1584, %v1684
        %v1719 = vadd.f32 %v1585, %v1686
        %s1720 = scalar_lea.vmem %s1, 12
        %v1721 = vld [vmem:[%s1720] sm:$0x3]
        %v1723 = vsel %vm847, %v1721, 0
        %1725 = vmatpush.bf16.msra.mxu0 0
        %1726 = vmatpush.bf16.msra.mxu0 0
        %1727 = vmatpush.bf16.msra.mxu0 0
        %1728 = vmatpush.bf16.msra.mxu0 0
        %1729 = vmatpush.bf16.msra.mxu0 0
        %1730 = vmatpush.bf16.msra.mxu0 0
        %1731 = vmatpush.bf16.msra.mxu0 0
        %1732 = vmatpush.bf16.msra.mxu0 %v1723
        %1733 = vmatmul.bf16.gmra.mxu0 %v944
        %v1734 = vpop.f32.mrf.mxu0
        %v1735 = vadd.f32 0.0, %v1734
        %v1736 = vpop.f32.mrf.mxu0
        %v1737 = vadd.f32 0.0, %v1736
        %1738 = vmatmul.bf16.gmra.mxu0 %v946
        %v1739 = vpop.f32.mrf.mxu0
        %v1740 = vadd.f32 0.0, %v1739
        %v1741 = vpop.f32.mrf.mxu0
        %v1742 = vadd.f32 0.0, %v1741
        %1743 = vmatmul.bf16.gmra.mxu0 %v948
        %v1744 = vpop.f32.mrf.mxu0
        %v1745 = vadd.f32 0.0, %v1744
        %v1746 = vpop.f32.mrf.mxu0
        %v1747 = vadd.f32 0.0, %v1746
        %1748 = vmatmul.bf16.gmra.mxu0 %v950
        %v1749 = vpop.f32.mrf.mxu0
        %v1750 = vadd.f32 0.0, %v1749
        %v1751 = vpop.f32.mrf.mxu0
        %v1752 = vadd.f32 0.0, %v1751
        %1753 = vmatmul.bf16.gmra.mxu0 %v952
        %v1754 = vpop.f32.mrf.mxu0
        %v1755 = vadd.f32 0.0, %v1754
        %v1756 = vpop.f32.mrf.mxu0
        %v1757 = vadd.f32 0.0, %v1756
        %1758 = vmatmul.bf16.gmra.mxu0 %v954
        %v1759 = vpop.f32.mrf.mxu0
        %v1760 = vadd.f32 0.0, %v1759
        %v1761 = vpop.f32.mrf.mxu0
        %v1762 = vadd.f32 0.0, %v1761
        %1763 = vmatmul.bf16.gmra.mxu0 %v956
        %v1764 = vpop.f32.mrf.mxu0
        %v1765 = vadd.f32 0.0, %v1764
        %v1766 = vpop.f32.mrf.mxu0
        %v1767 = vadd.f32 0.0, %v1766
        %1768 = vmatmul.bf16.gmra.mxu0 %v958
        %v1769 = vpop.f32.mrf.mxu0
        %v1770 = vadd.f32 0.0, %v1769
        %v1771 = vpop.f32.mrf.mxu0
        %v1772 = vadd.f32 0.0, %v1771
        %1773 = vmatmul.bf16.gmra.mxu0 %v960
        %v1774 = vpop.f32.mrf.mxu0
        %v1775 = vadd.f32 0.0, %v1774
        %v1776 = vpop.f32.mrf.mxu0
        %v1777 = vadd.f32 0.0, %v1776
        %1778 = vmatmul.bf16.gmra.mxu0 %v962
        %v1779 = vpop.f32.mrf.mxu0
        %v1780 = vadd.f32 0.0, %v1779
        %v1781 = vpop.f32.mrf.mxu0
        %v1782 = vadd.f32 0.0, %v1781
        %1783 = vmatmul.bf16.gmra.mxu0 %v964
        %v1784 = vpop.f32.mrf.mxu0
        %v1785 = vadd.f32 0.0, %v1784
        %v1786 = vpop.f32.mrf.mxu0
        %v1787 = vadd.f32 0.0, %v1786
        %1788 = vmatmul.bf16.gmra.mxu0 %v966
        %v1789 = vpop.f32.mrf.mxu0
        %v1790 = vadd.f32 0.0, %v1789
        %v1791 = vpop.f32.mrf.mxu0
        %v1792 = vadd.f32 0.0, %v1791
        %1793 = vmatmul.bf16.gmra.mxu0 %v968
        %v1794 = vpop.f32.mrf.mxu0
        %v1795 = vadd.f32 0.0, %v1794
        %v1796 = vpop.f32.mrf.mxu0
        %v1797 = vadd.f32 0.0, %v1796
        %1798 = vmatmul.bf16.gmra.mxu0 %v970
        %v1799 = vpop.f32.mrf.mxu0
        %v1800 = vadd.f32 0.0, %v1799
        %v1801 = vpop.f32.mrf.mxu0
        %v1802 = vadd.f32 0.0, %v1801
        %1803 = vmatmul.bf16.gmra.mxu0 %v1320
        %v1804 = vpop.f32.mrf.mxu0
        %v1805 = vadd.f32 0.0, %v1804
        %v1806 = vpop.f32.mrf.mxu0
        %v1807 = vadd.f32 0.0, %v1806
        %1808 = vmatmul.bf16.gmra.mxu0 %v940
        %v1809 = vpop.f32.mrf.mxu0
        %v1810 = vadd.f32 0.0, %v1809
        %v1811 = vpop.f32.mrf.mxu0
        %v1812 = vadd.f32 0.0, %v1811
        %1813 = vdwg.mxu0
        %v1814 = vadd.f32 %v1688, %v1735
        %v1815 = vadd.f32 %v1689, %v1737
        %v1816 = vadd.f32 %v1690, %v1740
        %v1817 = vadd.f32 %v1691, %v1742
        %v1818 = vadd.f32 %v1692, %v1745
        %v1819 = vadd.f32 %v1693, %v1747
        %v1820 = vadd.f32 %v1694, %v1750
        %v1821 = vadd.f32 %v1695, %v1752
        %v1822 = vadd.f32 %v1696, %v1755
        %v1823 = vadd.f32 %v1697, %v1757
        %v1824 = vadd.f32 %v1698, %v1760
        %v1825 = vadd.f32 %v1699, %v1762
        %v1826 = vadd.f32 %v1700, %v1765
        %v1827 = vadd.f32 %v1701, %v1767
        %v1828 = vadd.f32 %v1702, %v1770
        %v1829 = vadd.f32 %v1703, %v1772
        %v1830 = vadd.f32 %v1704, %v1775
        %v1831 = vadd.f32 %v1705, %v1777
        %v1832 = vadd.f32 %v1706, %v1780
        %v1833 = vadd.f32 %v1707, %v1782
        %v1834 = vadd.f32 %v1708, %v1785
        %v1835 = vadd.f32 %v1709, %v1787
        %v1836 = vadd.f32 %v1710, %v1790
        %v1837 = vadd.f32 %v1711, %v1792
        %v1838 = vadd.f32 %v1712, %v1795
        %v1839 = vadd.f32 %v1713, %v1797
        %v1840 = vadd.f32 %v1714, %v1800
        %v1841 = vadd.f32 %v1715, %v1802
        %v1842 = vadd.f32 %v1716, %v1805
        %v1843 = vadd.f32 %v1717, %v1807
        %v1844 = vadd.f32 %v1718, %v1810
        %v1845 = vadd.f32 %v1719, %v1812
        %s1846 = scalar_lea.vmem %s1, 14
        %v1847 = vld [vmem:[%s1846] sm:$0x3]
        %v1849 = vsel %vm847, %v1847, 0
        %1851 = vmatpush.bf16.msra.mxu0 0
        %1852 = vmatpush.bf16.msra.mxu0 0
        %1853 = vmatpush.bf16.msra.mxu0 0
        %1854 = vmatpush.bf16.msra.mxu0 0
        %1855 = vmatpush.bf16.msra.mxu0 0
        %1856 = vmatpush.bf16.msra.mxu0 0
        %1857 = vmatpush.bf16.msra.mxu0 0
        %1858 = vmatpush.bf16.msra.mxu0 %v1849
        %1859 = vmatmul.bf16.gmra.mxu0 %v806
        %v1860 = vpop.f32.mrf.mxu0
        %v1861 = vadd.f32 0.0, %v1860
        %v1862 = vpop.f32.mrf.mxu0
        %v1863 = vadd.f32 0.0, %v1862
        %1864 = vmatmul.bf16.gmra.mxu0 %v809
        %v1865 = vpop.f32.mrf.mxu0
        %v1866 = vadd.f32 0.0, %v1865
        %v1867 = vpop.f32.mrf.mxu0
        %v1868 = vadd.f32 0.0, %v1867
        %1869 = vmatmul.bf16.gmra.mxu0 %v812
        %v1870 = vpop.f32.mrf.mxu0
        %v1871 = vadd.f32 0.0, %v1870
        %v1872 = vpop.f32.mrf.mxu0
        %v1873 = vadd.f32 0.0, %v1872
        %1874 = vmatmul.bf16.gmra.mxu0 %v815
        %v1875 = vpop.f32.mrf.mxu0
        %v1876 = vadd.f32 0.0, %v1875
        %v1877 = vpop.f32.mrf.mxu0
        %v1878 = vadd.f32 0.0, %v1877
        %1879 = vmatmul.bf16.gmra.mxu0 %v818
        %v1880 = vpop.f32.mrf.mxu0
        %v1881 = vadd.f32 0.0, %v1880
        %v1882 = vpop.f32.mrf.mxu0
        %v1883 = vadd.f32 0.0, %v1882
        %1884 = vmatmul.bf16.gmra.mxu0 %v821
        %v1885 = vpop.f32.mrf.mxu0
        %v1886 = vadd.f32 0.0, %v1885
        %v1887 = vpop.f32.mrf.mxu0
        %v1888 = vadd.f32 0.0, %v1887
        %1889 = vmatmul.bf16.gmra.mxu0 %v824
        %v1890 = vpop.f32.mrf.mxu0
        %v1891 = vadd.f32 0.0, %v1890
        %v1892 = vpop.f32.mrf.mxu0
        %v1893 = vadd.f32 0.0, %v1892
        %1894 = vmatmul.bf16.gmra.mxu0 %v827
        %v1895 = vpop.f32.mrf.mxu0
        %v1896 = vadd.f32 0.0, %v1895
        %v1897 = vpop.f32.mrf.mxu0
        %v1898 = vadd.f32 0.0, %v1897
        %1899 = vmatmul.bf16.gmra.mxu0 %v830
        %v1900 = vpop.f32.mrf.mxu0
        %v1901 = vadd.f32 0.0, %v1900
        %v1902 = vpop.f32.mrf.mxu0
        %v1903 = vadd.f32 0.0, %v1902
        %1904 = vmatmul.bf16.gmra.mxu0 %v833
        %v1905 = vpop.f32.mrf.mxu0
        %v1906 = vadd.f32 0.0, %v1905
        %v1907 = vpop.f32.mrf.mxu0
        %v1908 = vadd.f32 0.0, %v1907
        %1909 = vmatmul.bf16.gmra.mxu0 %v836
        %v1910 = vpop.f32.mrf.mxu0
        %v1911 = vadd.f32 0.0, %v1910
        %v1912 = vpop.f32.mrf.mxu0
        %v1913 = vadd.f32 0.0, %v1912
        %1914 = vmatmul.bf16.gmra.mxu0 %v839
        %v1915 = vpop.f32.mrf.mxu0
        %v1916 = vadd.f32 0.0, %v1915
        %v1917 = vpop.f32.mrf.mxu0
        %v1918 = vadd.f32 0.0, %v1917
        %1919 = vmatmul.bf16.gmra.mxu0 %v842
        %v1920 = vpop.f32.mrf.mxu0
        %v1921 = vadd.f32 0.0, %v1920
        %v1922 = vpop.f32.mrf.mxu0
        %v1923 = vadd.f32 0.0, %v1922
        %1924 = vmatmul.bf16.gmra.mxu0 %v845
        %v1925 = vpop.f32.mrf.mxu0
        %v1926 = vadd.f32 0.0, %v1925
        %v1927 = vpop.f32.mrf.mxu0
        %v1928 = vadd.f32 0.0, %v1927
        %1929 = vmatmul.bf16.gmra.mxu0 %v1460
        %v1930 = vpop.f32.mrf.mxu0
        %v1931 = vadd.f32 0.0, %v1930
        %v1932 = vpop.f32.mrf.mxu0
        %v1933 = vadd.f32 0.0, %v1932
        %1934 = vmatmul.bf16.gmra.mxu0 %v800
        %v1935 = vpop.f32.mrf.mxu0
        %v1936 = vadd.f32 0.0, %v1935
        %v1937 = vpop.f32.mrf.mxu0
        %v1938 = vadd.f32 0.0, %v1937
        %1939 = vdwg.mxu0
        %v1940 = vadd.f32 %v1814, %v1861
        %v1941 = vadd.f32 %v1815, %v1863
        %v1942 = vadd.f32 %v1816, %v1866
        %v1943 = vadd.f32 %v1817, %v1868
        %v1944 = vadd.f32 %v1818, %v1871
        %v1945 = vadd.f32 %v1819, %v1873
        %v1946 = vadd.f32 %v1820, %v1876
        %v1947 = vadd.f32 %v1821, %v1878
        %v1948 = vadd.f32 %v1822, %v1881
        %v1949 = vadd.f32 %v1823, %v1883
        %v1950 = vadd.f32 %v1824, %v1886
        %v1951 = vadd.f32 %v1825, %v1888
        %v1952 = vadd.f32 %v1826, %v1891
        %v1953 = vadd.f32 %v1827, %v1893
        %v1954 = vadd.f32 %v1828, %v1896
        %v1955 = vadd.f32 %v1829, %v1898
        %v1956 = vadd.f32 %v1830, %v1901
        %v1957 = vadd.f32 %v1831, %v1903
        %v1958 = vadd.f32 %v1832, %v1906
        %v1959 = vadd.f32 %v1833, %v1908
        %v1960 = vadd.f32 %v1834, %v1911
        %v1961 = vadd.f32 %v1835, %v1913
        %v1962 = vadd.f32 %v1836, %v1916
        %v1963 = vadd.f32 %v1837, %v1918
        %v1964 = vadd.f32 %v1838, %v1921
        %v1965 = vadd.f32 %v1839, %v1923
        %v1966 = vadd.f32 %v1840, %v1926
        %v1967 = vadd.f32 %v1841, %v1928
        %v1968 = vadd.f32 %v1842, %v1931
        %v1969 = vadd.f32 %v1843, %v1933
        %v1970 = vadd.f32 %v1844, %v1936
        %v1971 = vadd.f32 %v1845, %v1938
        %s1972 = scalar_lea.vmem %s1, 16
        %v1973 = vld [vmem:[%s1972] sm:$0x3]
        %v1975 = vsel %vm847, %v1973, 0
        %1977 = vmatpush.bf16.msra.mxu0 0
        %1978 = vmatpush.bf16.msra.mxu0 0
        %1979 = vmatpush.bf16.msra.mxu0 0
        %1980 = vmatpush.bf16.msra.mxu0 0
        %1981 = vmatpush.bf16.msra.mxu0 0
        %1982 = vmatpush.bf16.msra.mxu0 0
        %1983 = vmatpush.bf16.msra.mxu0 0
        %1984 = vmatpush.bf16.msra.mxu0 %v1975
        %1985 = vmatmul.bf16.gmra.mxu0 %v1152
        %v1986 = vpop.f32.mrf.mxu0
        %v1987 = vadd.f32 0.0, %v1986
        %v1988 = vpop.f32.mrf.mxu0
        %v1989 = vadd.f32 0.0, %v1988
        %1990 = vmatmul.bf16.gmra.mxu0 %v1155
        %v1991 = vpop.f32.mrf.mxu0
        %v1992 = vadd.f32 0.0, %v1991
        %v1993 = vpop.f32.mrf.mxu0
        %v1994 = vadd.f32 0.0, %v1993
        %1995 = vmatmul.bf16.gmra.mxu0 %v1158
        %v1996 = vpop.f32.mrf.mxu0
        %v1997 = vadd.f32 0.0, %v1996
        %v1998 = vpop.f32.mrf.mxu0
        %v1999 = vadd.f32 0.0, %v1998
        %2000 = vmatmul.bf16.gmra.mxu0 %v1161
        %v2001 = vpop.f32.mrf.mxu0
        %v2002 = vadd.f32 0.0, %v2001
        %v2003 = vpop.f32.mrf.mxu0
        %v2004 = vadd.f32 0.0, %v2003
        %2005 = vmatmul.bf16.gmra.mxu0 %v1164
        %v2006 = vpop.f32.mrf.mxu0
        %v2007 = vadd.f32 0.0, %v2006
        %v2008 = vpop.f32.mrf.mxu0
        %v2009 = vadd.f32 0.0, %v2008
        %2010 = vmatmul.bf16.gmra.mxu0 %v1167
        %v2011 = vpop.f32.mrf.mxu0
        %v2012 = vadd.f32 0.0, %v2011
        %v2013 = vpop.f32.mrf.mxu0
        %v2014 = vadd.f32 0.0, %v2013
        %2015 = vmatmul.bf16.gmra.mxu0 %v1170
        %v2016 = vpop.f32.mrf.mxu0
        %v2017 = vadd.f32 0.0, %v2016
        %v2018 = vpop.f32.mrf.mxu0
        %v2019 = vadd.f32 0.0, %v2018
        %2020 = vmatmul.bf16.gmra.mxu0 %v1173
        %v2021 = vpop.f32.mrf.mxu0
        %v2022 = vadd.f32 0.0, %v2021
        %v2023 = vpop.f32.mrf.mxu0
        %v2024 = vadd.f32 0.0, %v2023
        %2025 = vmatmul.bf16.gmra.mxu0 %v1176
        %v2026 = vpop.f32.mrf.mxu0
        %v2027 = vadd.f32 0.0, %v2026
        %v2028 = vpop.f32.mrf.mxu0
        %v2029 = vadd.f32 0.0, %v2028
        %2030 = vmatmul.bf16.gmra.mxu0 %v1179
        %v2031 = vpop.f32.mrf.mxu0
        %v2032 = vadd.f32 0.0, %v2031
        %v2033 = vpop.f32.mrf.mxu0
        %v2034 = vadd.f32 0.0, %v2033
        %2035 = vmatmul.bf16.gmra.mxu0 %v1182
        %v2036 = vpop.f32.mrf.mxu0
        %v2037 = vadd.f32 0.0, %v2036
        %v2038 = vpop.f32.mrf.mxu0
        %v2039 = vadd.f32 0.0, %v2038
        %2040 = vmatmul.bf16.gmra.mxu0 %v1185
        %v2041 = vpop.f32.mrf.mxu0
        %v2042 = vadd.f32 0.0, %v2041
        %v2043 = vpop.f32.mrf.mxu0
        %v2044 = vadd.f32 0.0, %v2043
        %2045 = vmatmul.bf16.gmra.mxu0 %v1188
        %v2046 = vpop.f32.mrf.mxu0
        %v2047 = vadd.f32 0.0, %v2046
        %v2048 = vpop.f32.mrf.mxu0
        %v2049 = vadd.f32 0.0, %v2048
        %2050 = vmatmul.bf16.gmra.mxu0 %v1191
        %v2051 = vpop.f32.mrf.mxu0
        %v2052 = vadd.f32 0.0, %v2051
        %v2053 = vpop.f32.mrf.mxu0
        %v2054 = vadd.f32 0.0, %v2053
        %2055 = vmatmul.bf16.gmra.mxu0 %v1594
        %v2056 = vpop.f32.mrf.mxu0
        %v2057 = vadd.f32 0.0, %v2056
        %v2058 = vpop.f32.mrf.mxu0
        %v2059 = vadd.f32 0.0, %v2058
        %2060 = vmatmul.bf16.gmra.mxu0 %v1146
        %v2061 = vpop.f32.mrf.mxu0
        %v2062 = vadd.f32 0.0, %v2061
        %v2063 = vpop.f32.mrf.mxu0
        %v2064 = vadd.f32 0.0, %v2063
        %2065 = vdwg.mxu0
        %v2066 = vadd.f32 %v1940, %v1987
        %v2067 = vadd.f32 %v1941, %v1989
        %v2068 = vadd.f32 %v1942, %v1992
        %v2069 = vadd.f32 %v1943, %v1994
        %v2070 = vadd.f32 %v1944, %v1997
        %v2071 = vadd.f32 %v1945, %v1999
        %v2072 = vadd.f32 %v1946, %v2002
        %v2073 = vadd.f32 %v1947, %v2004
        %v2074 = vadd.f32 %v1948, %v2007
        %v2075 = vadd.f32 %v1949, %v2009
        %v2076 = vadd.f32 %v1950, %v2012
        %v2077 = vadd.f32 %v1951, %v2014
        %v2078 = vadd.f32 %v1952, %v2017
        %v2079 = vadd.f32 %v1953, %v2019
        %v2080 = vadd.f32 %v1954, %v2022
        %v2081 = vadd.f32 %v1955, %v2024
        %v2082 = vadd.f32 %v1956, %v2027
        %v2083 = vadd.f32 %v1957, %v2029
        %v2084 = vadd.f32 %v1958, %v2032
        %v2085 = vadd.f32 %v1959, %v2034
        %v2086 = vadd.f32 %v1960, %v2037
        %v2087 = vadd.f32 %v1961, %v2039
        %v2088 = vadd.f32 %v1962, %v2042
        %v2089 = vadd.f32 %v1963, %v2044
        %v2090 = vadd.f32 %v1964, %v2047
        %v2091 = vadd.f32 %v1965, %v2049
        %v2092 = vadd.f32 %v1966, %v2052
        %v2093 = vadd.f32 %v1967, %v2054
        %v2094 = vadd.f32 %v1968, %v2057
        %v2095 = vadd.f32 %v1969, %v2059
        %v2096 = vadd.f32 %v1970, %v2062
        %v2097 = vadd.f32 %v1971, %v2064
        %v2098 = vld [vmem:[%s2] sm:$0x1]
        %v2100 = vperm.slane %v2098, 0
        %v2102 = vadd.f32 %v2066, %v2100
        %v2103 = vadd.f32 %v2067, %v2100
        %v2104 = vadd.f32 %v2068, %v2100
        %v2105 = vadd.f32 %v2069, %v2100
        %v2106 = vadd.f32 %v2070, %v2100
        %v2107 = vadd.f32 %v2071, %v2100
        %v2108 = vadd.f32 %v2072, %v2100
        %v2109 = vadd.f32 %v2073, %v2100
        %v2110 = vadd.f32 %v2074, %v2100
        %v2111 = vadd.f32 %v2075, %v2100
        %v2112 = vadd.f32 %v2076, %v2100
        %v2113 = vadd.f32 %v2077, %v2100
        %v2114 = vadd.f32 %v2078, %v2100
        %v2115 = vadd.f32 %v2079, %v2100
        %v2116 = vadd.f32 %v2080, %v2100
        %v2117 = vadd.f32 %v2081, %v2100
        %v2118 = vadd.f32 %v2082, %v2100
        %v2119 = vadd.f32 %v2083, %v2100
        %v2120 = vadd.f32 %v2084, %v2100
        %v2121 = vadd.f32 %v2085, %v2100
        %v2122 = vadd.f32 %v2086, %v2100
        %v2123 = vadd.f32 %v2087, %v2100
        %v2124 = vadd.f32 %v2088, %v2100
        %v2125 = vadd.f32 %v2089, %v2100
        %v2126 = vadd.f32 %v2090, %v2100
        %v2127 = vadd.f32 %v2091, %v2100
        %v2128 = vadd.f32 %v2092, %v2100
        %v2129 = vadd.f32 %v2093, %v2100
        %v2130 = vadd.f32 %v2094, %v2100
        %v2131 = vadd.f32 %v2095, %v2100
        %v2132 = vadd.f32 %v2096, %v2100
        %v2133 = vadd.f32 %v2097, %v2100
        %v2134 = vmax.f32 %v2102, 0.0
        %v2135 = vmax.f32 %v2103, 0.0
        %v2136 = vmax.f32 %v2104, 0.0
        %v2137 = vmax.f32 %v2105, 0.0
        %v2138 = vmax.f32 %v2106, 0.0
        %v2139 = vmax.f32 %v2107, 0.0
        %v2140 = vmax.f32 %v2108, 0.0
        %v2141 = vmax.f32 %v2109, 0.0
        %v2142 = vmax.f32 %v2110, 0.0
        %v2143 = vmax.f32 %v2111, 0.0
        %v2144 = vmax.f32 %v2112, 0.0
        %v2145 = vmax.f32 %v2113, 0.0
        %v2146 = vmax.f32 %v2114, 0.0
        %v2147 = vmax.f32 %v2115, 0.0
        %v2148 = vmax.f32 %v2116, 0.0
        %v2149 = vmax.f32 %v2117, 0.0
        %v2150 = vmax.f32 %v2118, 0.0
        %v2151 = vmax.f32 %v2119, 0.0
        %v2152 = vmax.f32 %v2120, 0.0
        %v2153 = vmax.f32 %v2121, 0.0
        %v2154 = vmax.f32 %v2122, 0.0
        %v2155 = vmax.f32 %v2123, 0.0
        %v2156 = vmax.f32 %v2124, 0.0
        %v2157 = vmax.f32 %v2125, 0.0
        %v2158 = vmax.f32 %v2126, 0.0
        %v2159 = vmax.f32 %v2127, 0.0
        %v2160 = vmax.f32 %v2128, 0.0
        %v2161 = vmax.f32 %v2129, 0.0
        %v2162 = vmax.f32 %v2130, 0.0
        %v2163 = vmax.f32 %v2131, 0.0
        %v2164 = vmax.f32 %v2132, 0.0
        %v2165 = vmax.f32 %v2133, 0.0
        %v2166 = vpack.c.bf16 %v2134, %v2134
        %v2167 = vpack.c.bf16 %v2135, %v2135
        %v2168 = vpack.c.bf16 %v2136, %v2136
        %v2169 = vpack.c.bf16 %v2137, %v2137
        %v2170 = vpack.c.bf16 %v2138, %v2138
        %v2171 = vpack.c.bf16 %v2139, %v2139
        %v2172 = vpack.c.bf16 %v2140, %v2140
        %v2173 = vpack.c.bf16 %v2141, %v2141
        %v2174 = vpack.c.bf16 %v2142, %v2142
        %v2175 = vpack.c.bf16 %v2143, %v2143
        %v2176 = vpack.c.bf16 %v2144, %v2144
        %v2177 = vpack.c.bf16 %v2145, %v2145
        %v2178 = vpack.c.bf16 %v2146, %v2146
        %v2179 = vpack.c.bf16 %v2147, %v2147
        %v2180 = vpack.c.bf16 %v2148, %v2148
        %v2181 = vpack.c.bf16 %v2149, %v2149
        %v2182 = vpack.c.bf16 %v2150, %v2150
        %v2183 = vpack.c.bf16 %v2151, %v2151
        %v2184 = vpack.c.bf16 %v2152, %v2152
        %v2185 = vpack.c.bf16 %v2153, %v2153
        %v2186 = vpack.c.bf16 %v2154, %v2154
        %v2187 = vpack.c.bf16 %v2155, %v2155
        %v2188 = vpack.c.bf16 %v2156, %v2156
        %v2189 = vpack.c.bf16 %v2157, %v2157
        %v2190 = vpack.c.bf16 %v2158, %v2158
        %v2191 = vpack.c.bf16 %v2159, %v2159
        %v2192 = vpack.c.bf16 %v2160, %v2160
        %v2193 = vpack.c.bf16 %v2161, %v2161
        %v2194 = vpack.c.bf16 %v2162, %v2162
        %v2195 = vpack.c.bf16 %v2163, %v2163
        %v2196 = vpack.c.bf16 %v2164, %v2164
        %v2197 = vpack.c.bf16 %v2165, %v2165
        %v2230 = vunpack.c.l.b16 %v2166
        %v2231 = vunpack.c.l.b16 %v2167
        %v2232 = vunpack.c.l.b16 %v2168
        %v2233 = vunpack.c.l.b16 %v2169
        %v2234 = vunpack.c.l.b16 %v2170
        %v2235 = vunpack.c.l.b16 %v2171
        %v2236 = vunpack.c.l.b16 %v2172
        %v2237 = vunpack.c.l.b16 %v2173
        %v2238 = vunpack.c.l.b16 %v2174
        %v2239 = vunpack.c.l.b16 %v2175
        %v2240 = vunpack.c.l.b16 %v2176
        %v2241 = vunpack.c.l.b16 %v2177
        %v2242 = vunpack.c.l.b16 %v2178
        %v2243 = vunpack.c.l.b16 %v2179
        %v2244 = vunpack.c.l.b16 %v2180
        %v2245 = vunpack.c.l.b16 %v2181
        %v2246 = vunpack.c.l.b16 %v2182
        %v2247 = vunpack.c.l.b16 %v2183
        %v2248 = vunpack.c.l.b16 %v2184
        %v2249 = vunpack.c.l.b16 %v2185
        %v2250 = vunpack.c.l.b16 %v2186
        %v2251 = vunpack.c.l.b16 %v2187
        %v2252 = vunpack.c.l.b16 %v2188
        %v2253 = vunpack.c.l.b16 %v2189
        %v2254 = vunpack.c.l.b16 %v2190
        %v2255 = vunpack.c.l.b16 %v2191
        %v2256 = vunpack.c.l.b16 %v2192
        %v2257 = vunpack.c.l.b16 %v2193
        %v2258 = vunpack.c.l.b16 %v2194
        %v2259 = vunpack.c.l.b16 %v2195
        %v2260 = vunpack.c.l.b16 %v2196
        %v2261 = vunpack.c.l.b16 %v2197
        %v2262 = vpack.c.b16 %v2231, %v2230
        %v2263 = vpack.c.b16 %v2233, %v2232
        %v2264 = vpack.c.b16 %v2235, %v2234
        %v2265 = vpack.c.b16 %v2237, %v2236
        %v2266 = vpack.c.b16 %v2239, %v2238
        %v2267 = vpack.c.b16 %v2241, %v2240
        %v2268 = vpack.c.b16 %v2243, %v2242
        %v2269 = vpack.c.b16 %v2245, %v2244
        %v2270 = vpack.c.b16 %v2247, %v2246
        %v2271 = vpack.c.b16 %v2249, %v2248
        %v2272 = vpack.c.b16 %v2251, %v2250
        %v2273 = vpack.c.b16 %v2253, %v2252
        %v2274 = vpack.c.b16 %v2255, %v2254
        %v2275 = vpack.c.b16 %v2257, %v2256
        %v2276 = vpack.c.b16 %v2259, %v2258
        %v2277 = vpack.c.b16 %v2261, %v2260
        %v2279 = vshrl.u32 %v2262, 16
        %v2281 = vrot.slane %v2279, 7
        %v2282 = vshll.u32 %v2262, 16
        %v2284 = vor.u32 %v2281, %v2282
        %v2286 = vshrl.u32 %v2263, 16
        %v2288 = vrot.slane %v2286, 7
        %v2289 = vshll.u32 %v2263, 16
        %v2291 = vor.u32 %v2288, %v2289
        %v2293 = vshrl.u32 %v2264, 16
        %v2295 = vrot.slane %v2293, 7
        %v2296 = vshll.u32 %v2264, 16
        %v2298 = vor.u32 %v2295, %v2296
        %v2300 = vshrl.u32 %v2265, 16
        %v2302 = vrot.slane %v2300, 7
        %v2303 = vshll.u32 %v2265, 16
        %v2305 = vor.u32 %v2302, %v2303
        %v2307 = vshrl.u32 %v2266, 16
        %v2309 = vrot.slane %v2307, 7
        %v2310 = vshll.u32 %v2266, 16
        %v2312 = vor.u32 %v2309, %v2310
        %v2314 = vshrl.u32 %v2267, 16
        %v2316 = vrot.slane %v2314, 7
        %v2317 = vshll.u32 %v2267, 16
        %v2319 = vor.u32 %v2316, %v2317
        %v2321 = vshrl.u32 %v2268, 16
        %v2323 = vrot.slane %v2321, 7
        %v2324 = vshll.u32 %v2268, 16
        %v2326 = vor.u32 %v2323, %v2324
        %v2328 = vshrl.u32 %v2269, 16
        %v2330 = vrot.slane %v2328, 7
        %v2331 = vshll.u32 %v2269, 16
        %v2333 = vor.u32 %v2330, %v2331
        %v2335 = vshrl.u32 %v2270, 16
        %v2337 = vrot.slane %v2335, 7
        %v2338 = vshll.u32 %v2270, 16
        %v2340 = vor.u32 %v2337, %v2338
        %v2342 = vshrl.u32 %v2271, 16
        %v2344 = vrot.slane %v2342, 7
        %v2345 = vshll.u32 %v2271, 16
        %v2347 = vor.u32 %v2344, %v2345
        %v2349 = vshrl.u32 %v2272, 16
        %v2351 = vrot.slane %v2349, 7
        %v2352 = vshll.u32 %v2272, 16
        %v2354 = vor.u32 %v2351, %v2352
        %v2356 = vshrl.u32 %v2273, 16
        %v2358 = vrot.slane %v2356, 7
        %v2359 = vshll.u32 %v2273, 16
        %v2361 = vor.u32 %v2358, %v2359
        %v2363 = vshrl.u32 %v2274, 16
        %v2365 = vrot.slane %v2363, 7
        %v2366 = vshll.u32 %v2274, 16
        %v2368 = vor.u32 %v2365, %v2366
        %v2370 = vshrl.u32 %v2275, 16
        %v2372 = vrot.slane %v2370, 7
        %v2373 = vshll.u32 %v2275, 16
        %v2375 = vor.u32 %v2372, %v2373
        %v2377 = vshrl.u32 %v2276, 16
        %v2379 = vrot.slane %v2377, 7
        %v2380 = vshll.u32 %v2276, 16
        %v2382 = vor.u32 %v2379, %v2380
        %v2384 = vshrl.u32 %v2277, 16
        %v2386 = vrot.slane %v2384, 7
        %v2387 = vshll.u32 %v2277, 16
        %v2389 = vor.u32 %v2386, %v2387
        %v2422 = vsel %vm573, 0, %v2284
        %v2423 = vsel %vm573, 0, %v2291
        %v2424 = vsel %vm573, 0, %v2298
        %v2425 = vsel %vm573, 0, %v2305
        %v2426 = vsel %vm573, 0, %v2312
        %v2427 = vsel %vm573, 0, %v2319
        %v2428 = vsel %vm573, 0, %v2326
        %v2429 = vsel %vm573, 0, %v2333
        %v2430 = vsel %vm573, 0, %v2340
        %v2431 = vsel %vm573, 0, %v2347
        %v2432 = vsel %vm573, 0, %v2354
        %v2433 = vsel %vm573, 0, %v2361
        %v2434 = vsel %vm573, 0, %v2368
        %v2435 = vsel %vm573, 0, %v2375
        %v2436 = vsel %vm573, 0, %v2382
        %v2437 = vsel %vm573, 0, %v2389
        %v2438 = vsel %vm573, %v2281, 0
        %v2439 = vsel %vm573, %v2288, 0
        %v2440 = vsel %vm573, %v2295, 0
        %v2441 = vsel %vm573, %v2302, 0
        %v2442 = vsel %vm573, %v2309, 0
        %v2443 = vsel %vm573, %v2316, 0
        %v2444 = vsel %vm573, %v2323, 0
        %v2445 = vsel %vm573, %v2330, 0
        %v2446 = vsel %vm573, %v2337, 0
        %v2447 = vsel %vm573, %v2344, 0
        %v2448 = vsel %vm573, %v2351, 0
        %v2449 = vsel %vm573, %v2358, 0
        %v2450 = vsel %vm573, %v2365, 0
        %v2451 = vsel %vm573, %v2372, 0
        %v2452 = vsel %vm573, %v2379, 0
        %v2453 = vsel %vm573, %v2386, 0
        %v2455 = vshrl.u32 %v2422, 16
        %v2457 = vshll.u32 %v2422, 16
        %v2459 = vrot.slane %v2457, 1
        %v2460 = vor.u32 %v2455, %v2459
        %v2462 = vshll.u32 %v2438, 16
        %v2464 = vrot.slane %v2462, 1
        %v2465 = vsel %vm607, %v2460, %v2464
        %v2467 = vshrl.u32 %v2423, 16
        %v2469 = vshll.u32 %v2423, 16
        %v2471 = vrot.slane %v2469, 1
        %v2472 = vor.u32 %v2467, %v2471
        %v2474 = vshll.u32 %v2439, 16
        %v2476 = vrot.slane %v2474, 1
        %v2477 = vsel %vm607, %v2472, %v2476
        %v2479 = vshrl.u32 %v2424, 16
        %v2481 = vshll.u32 %v2424, 16
        %v2483 = vrot.slane %v2481, 1
        %v2484 = vor.u32 %v2479, %v2483
        %v2486 = vshll.u32 %v2440, 16
        %v2488 = vrot.slane %v2486, 1
        %v2489 = vsel %vm607, %v2484, %v2488
        %v2491 = vshrl.u32 %v2425, 16
        %v2493 = vshll.u32 %v2425, 16
        %v2495 = vrot.slane %v2493, 1
        %v2496 = vor.u32 %v2491, %v2495
        %v2498 = vshll.u32 %v2441, 16
        %v2500 = vrot.slane %v2498, 1
        %v2501 = vsel %vm607, %v2496, %v2500
        %v2503 = vshrl.u32 %v2426, 16
        %v2505 = vshll.u32 %v2426, 16
        %v2507 = vrot.slane %v2505, 1
        %v2508 = vor.u32 %v2503, %v2507
        %v2510 = vshll.u32 %v2442, 16
        %v2512 = vrot.slane %v2510, 1
        %v2513 = vsel %vm607, %v2508, %v2512
        %v2515 = vshrl.u32 %v2427, 16
        %v2517 = vshll.u32 %v2427, 16
        %v2519 = vrot.slane %v2517, 1
        %v2520 = vor.u32 %v2515, %v2519
        %v2522 = vshll.u32 %v2443, 16
        %v2524 = vrot.slane %v2522, 1
        %v2525 = vsel %vm607, %v2520, %v2524
        %v2527 = vshrl.u32 %v2428, 16
        %v2529 = vshll.u32 %v2428, 16
        %v2531 = vrot.slane %v2529, 1
        %v2532 = vor.u32 %v2527, %v2531
        %v2534 = vshll.u32 %v2444, 16
        %v2536 = vrot.slane %v2534, 1
        %v2537 = vsel %vm607, %v2532, %v2536
        %v2539 = vshrl.u32 %v2429, 16
        %v2541 = vshll.u32 %v2429, 16
        %v2543 = vrot.slane %v2541, 1
        %v2544 = vor.u32 %v2539, %v2543
        %v2546 = vshll.u32 %v2445, 16
        %v2548 = vrot.slane %v2546, 1
        %v2549 = vsel %vm607, %v2544, %v2548
        %v2551 = vshrl.u32 %v2430, 16
        %v2553 = vshll.u32 %v2430, 16
        %v2555 = vrot.slane %v2553, 1
        %v2556 = vor.u32 %v2551, %v2555
        %v2558 = vshll.u32 %v2446, 16
        %v2560 = vrot.slane %v2558, 1
        %v2561 = vsel %vm607, %v2556, %v2560
        %v2563 = vshrl.u32 %v2431, 16
        %v2565 = vshll.u32 %v2431, 16
        %v2567 = vrot.slane %v2565, 1
        %v2568 = vor.u32 %v2563, %v2567
        %v2570 = vshll.u32 %v2447, 16
        %v2572 = vrot.slane %v2570, 1
        %v2573 = vsel %vm607, %v2568, %v2572
        %v2575 = vshrl.u32 %v2432, 16
        %v2577 = vshll.u32 %v2432, 16
        %v2579 = vrot.slane %v2577, 1
        %v2580 = vor.u32 %v2575, %v2579
        %v2582 = vshll.u32 %v2448, 16
        %v2584 = vrot.slane %v2582, 1
        %v2585 = vsel %vm607, %v2580, %v2584
        %v2587 = vshrl.u32 %v2433, 16
        %v2589 = vshll.u32 %v2433, 16
        %v2591 = vrot.slane %v2589, 1
        %v2592 = vor.u32 %v2587, %v2591
        %v2594 = vshll.u32 %v2449, 16
        %v2596 = vrot.slane %v2594, 1
        %v2597 = vsel %vm607, %v2592, %v2596
        %v2599 = vshrl.u32 %v2434, 16
        %v2601 = vshll.u32 %v2434, 16
        %v2603 = vrot.slane %v2601, 1
        %v2604 = vor.u32 %v2599, %v2603
        %v2606 = vshll.u32 %v2450, 16
        %v2608 = vrot.slane %v2606, 1
        %v2609 = vsel %vm607, %v2604, %v2608
        %v2611 = vshrl.u32 %v2435, 16
        %v2613 = vshll.u32 %v2435, 16
        %v2615 = vrot.slane %v2613, 1
        %v2616 = vor.u32 %v2611, %v2615
        %v2618 = vshll.u32 %v2451, 16
        %v2620 = vrot.slane %v2618, 1
        %v2621 = vsel %vm607, %v2616, %v2620
        %v2623 = vshrl.u32 %v2436, 16
        %v2625 = vshll.u32 %v2436, 16
        %v2627 = vrot.slane %v2625, 1
        %v2628 = vor.u32 %v2623, %v2627
        %v2630 = vshll.u32 %v2452, 16
        %v2632 = vrot.slane %v2630, 1
        %v2633 = vsel %vm607, %v2628, %v2632
        %2634 = vrot.lane.b32.xlu0 %v615, 64
        %v2635 = vpop.permute.xlu0 %2634
        %2636 = vrot.lane.b32.xlu0 %v2465, 64
        %v2637 = vpop.permute.xlu0 %2636
        %2638 = vrot.lane.b32.xlu0 %v2477, 64
        %v2639 = vpop.permute.xlu0 %2638
        %2640 = vrot.lane.b32.xlu0 %v2489, 64
        %v2641 = vpop.permute.xlu0 %2640
        %2642 = vrot.lane.b32.xlu0 %v2501, 64
        %v2643 = vpop.permute.xlu0 %2642
        %2644 = vrot.lane.b32.xlu0 %v2513, 64
        %v2645 = vpop.permute.xlu0 %2644
        %2646 = vrot.lane.b32.xlu0 %v2525, 64
        %v2647 = vpop.permute.xlu0 %2646
        %2648 = vrot.lane.b32.xlu0 %v2537, 64
        %v2649 = vpop.permute.xlu0 %2648
        %2650 = vrot.lane.b32.xlu0 %v2549, 64
        %v2651 = vpop.permute.xlu0 %2650
        %2652 = vrot.lane.b32.xlu0 %v2561, 64
        %v2653 = vpop.permute.xlu0 %2652
        %2654 = vrot.lane.b32.xlu0 %v2573, 64
        %v2655 = vpop.permute.xlu0 %2654
        %2656 = vrot.lane.b32.xlu0 %v2585, 64
        %v2657 = vpop.permute.xlu0 %2656
        %2658 = vrot.lane.b32.xlu0 %v2597, 64
        %v2659 = vpop.permute.xlu0 %2658
        %2660 = vrot.lane.b32.xlu0 %v2609, 64
        %v2661 = vpop.permute.xlu0 %2660
        %2662 = vrot.lane.b32.xlu0 %v2621, 64
        %v2663 = vpop.permute.xlu0 %2662
        %2664 = vrot.lane.b32.xlu0 %v2633, 64
        %v2665 = vpop.permute.xlu0 %2664
        %v2696 = vrot.slane %v2422, 1
        %v2697 = vrot.slane %v2438, 1
        %v2698 = vsel %vm1095, %v2696, %v2697
        %v2699 = vrot.slane %v2423, 1
        %v2700 = vrot.slane %v2439, 1
        %v2701 = vsel %vm1095, %v2699, %v2700
        %v2702 = vrot.slane %v2424, 1
        %v2703 = vrot.slane %v2440, 1
        %v2704 = vsel %vm1095, %v2702, %v2703
        %v2705 = vrot.slane %v2425, 1
        %v2706 = vrot.slane %v2441, 1
        %v2707 = vsel %vm1095, %v2705, %v2706
        %v2708 = vrot.slane %v2426, 1
        %v2709 = vrot.slane %v2442, 1
        %v2710 = vsel %vm1095, %v2708, %v2709
        %v2711 = vrot.slane %v2427, 1
        %v2712 = vrot.slane %v2443, 1
        %v2713 = vsel %vm1095, %v2711, %v2712
        %v2714 = vrot.slane %v2428, 1
        %v2715 = vrot.slane %v2444, 1
        %v2716 = vsel %vm1095, %v2714, %v2715
        %v2717 = vrot.slane %v2429, 1
        %v2718 = vrot.slane %v2445, 1
        %v2719 = vsel %vm1095, %v2717, %v2718
        %v2720 = vrot.slane %v2430, 1
        %v2721 = vrot.slane %v2446, 1
        %v2722 = vsel %vm1095, %v2720, %v2721
        %v2723 = vrot.slane %v2431, 1
        %v2724 = vrot.slane %v2447, 1
        %v2725 = vsel %vm1095, %v2723, %v2724
        %v2726 = vrot.slane %v2432, 1
        %v2727 = vrot.slane %v2448, 1
        %v2728 = vsel %vm1095, %v2726, %v2727
        %v2729 = vrot.slane %v2433, 1
        %v2730 = vrot.slane %v2449, 1
        %v2731 = vsel %vm1095, %v2729, %v2730
        %v2732 = vrot.slane %v2434, 1
        %v2733 = vrot.slane %v2450, 1
        %v2734 = vsel %vm1095, %v2732, %v2733
        %v2735 = vrot.slane %v2435, 1
        %v2736 = vrot.slane %v2451, 1
        %v2737 = vsel %vm1095, %v2735, %v2736
        %v2738 = vrot.slane %v2436, 1
        %v2739 = vrot.slane %v2452, 1
        %v2740 = vsel %vm1095, %v2738, %v2739
        %2742 = vrot.lane.b32.xlu0 %v2422, 64
        %v2743 = vpop.permute.xlu0 %2742
        %2744 = vrot.lane.b32.xlu0 %v2423, 64
        %v2745 = vpop.permute.xlu0 %2744
        %2746 = vrot.lane.b32.xlu0 %v2424, 64
        %v2747 = vpop.permute.xlu0 %2746
        %2748 = vrot.lane.b32.xlu0 %v2425, 64
        %v2749 = vpop.permute.xlu0 %2748
        %2750 = vrot.lane.b32.xlu0 %v2426, 64
        %v2751 = vpop.permute.xlu0 %2750
        %2752 = vrot.lane.b32.xlu0 %v2427, 64
        %v2753 = vpop.permute.xlu0 %2752
        %2754 = vrot.lane.b32.xlu0 %v2428, 64
        %v2755 = vpop.permute.xlu0 %2754
        %2756 = vrot.lane.b32.xlu0 %v2429, 64
        %v2757 = vpop.permute.xlu0 %2756
        %2758 = vrot.lane.b32.xlu0 %v2430, 64
        %v2759 = vpop.permute.xlu0 %2758
        %2760 = vrot.lane.b32.xlu0 %v2431, 64
        %v2761 = vpop.permute.xlu0 %2760
        %2762 = vrot.lane.b32.xlu0 %v2432, 64
        %v2763 = vpop.permute.xlu0 %2762
        %2764 = vrot.lane.b32.xlu0 %v2433, 64
        %v2765 = vpop.permute.xlu0 %2764
        %2766 = vrot.lane.b32.xlu0 %v2434, 64
        %v2767 = vpop.permute.xlu0 %2766
        %2768 = vrot.lane.b32.xlu0 %v2435, 64
        %v2769 = vpop.permute.xlu0 %2768
        %2770 = vrot.lane.b32.xlu0 %v2436, 64
        %v2771 = vpop.permute.xlu0 %2770
        %2772 = vrot.lane.b32.xlu0 %v2437, 64
        %v2773 = vpop.permute.xlu0 %2772
        %v2775 = vshrl.u32 %v2437, 16
        %v2777 = vshll.u32 %v2437, 16
        %v2779 = vrot.slane %v2777, 1
        %v2780 = vor.u32 %v2775, %v2779
        %v2782 = vshll.u32 %v2453, 16
        %v2784 = vrot.slane %v2782, 1
        %v2785 = vsel %vm607, %v2780, %v2784
        %v2787 = vrot.slane %v2437, 1
        %v2788 = vrot.slane %v2453, 1
        %v2789 = vsel %vm1095, %v2787, %v2788
        %2790 = vrot.lane.b32.xlu0 %v2698, 64
        %v2791 = vpop.permute.xlu0 %2790
        %2792 = vrot.lane.b32.xlu0 %v2701, 64
        %v2793 = vpop.permute.xlu0 %2792
        %2794 = vrot.lane.b32.xlu0 %v2704, 64
        %v2795 = vpop.permute.xlu0 %2794
        %2796 = vrot.lane.b32.xlu0 %v2707, 64
        %v2797 = vpop.permute.xlu0 %2796
        %2798 = vrot.lane.b32.xlu0 %v2710, 64
        %v2799 = vpop.permute.xlu0 %2798
        %2800 = vrot.lane.b32.xlu0 %v2713, 64
        %v2801 = vpop.permute.xlu0 %2800
        %2802 = vrot.lane.b32.xlu0 %v2716, 64
        %v2803 = vpop.permute.xlu0 %2802
        %2804 = vrot.lane.b32.xlu0 %v2719, 64
        %v2805 = vpop.permute.xlu0 %2804
        %2806 = vrot.lane.b32.xlu0 %v2722, 64
        %v2807 = vpop.permute.xlu0 %2806
        %2808 = vrot.lane.b32.xlu0 %v2725, 64
        %v2809 = vpop.permute.xlu0 %2808
        %2810 = vrot.lane.b32.xlu0 %v2728, 64
        %v2811 = vpop.permute.xlu0 %2810
        %2812 = vrot.lane.b32.xlu0 %v2731, 64
        %v2813 = vpop.permute.xlu0 %2812
        %2814 = vrot.lane.b32.xlu0 %v2734, 64
        %v2815 = vpop.permute.xlu0 %2814
        %2816 = vrot.lane.b32.xlu0 %v2737, 64
        %v2817 = vpop.permute.xlu0 %2816
        %2818 = vrot.lane.b32.xlu0 %v2740, 64
        %v2819 = vpop.permute.xlu0 %2818
        %2820 = vrot.lane.b32.xlu0 %v2789, 64
        %v2821 = vpop.permute.xlu0 %2820
        %2822 = vrot.lane.b32.xlu0 %v2785, 64
        %v2823 = vpop.permute.xlu0 %2822
        %vm2824 = vcmask 523264
        %v2826 = vsel %vm2824, 0, %v2635
        %v2829 = vsel %vm2824, %v2422, %v2637
        %v2832 = vsel %vm2824, %v2423, %v2639
        %v2835 = vsel %vm2824, %v2424, %v2641
        %v2838 = vsel %vm2824, %v2425, %v2643
        %v2841 = vsel %vm2824, %v2426, %v2645
        %v2844 = vsel %vm2824, %v2427, %v2647
        %v2847 = vsel %vm2824, %v2428, %v2649
        %v2850 = vsel %vm2824, %v2429, %v2651
        %v2853 = vsel %vm2824, %v2430, %v2653
        %v2856 = vsel %vm2824, %v2431, %v2655
        %v2859 = vsel %vm2824, %v2432, %v2657
        %v2862 = vsel %vm2824, %v2433, %v2659
        %v2865 = vsel %vm2824, %v2434, %v2661
        %v2868 = vsel %vm2824, %v2435, %v2663
        %v2871 = vsel %vm2824, %v2436, %v2665
        %v2874 = vsel %vm2824, %v1097, %v2743
        %v2878 = vsel %vm2824, %v2698, %v2745
        %v2882 = vsel %vm2824, %v2701, %v2747
        %v2886 = vsel %vm2824, %v2704, %v2749
        %v2890 = vsel %vm2824, %v2707, %v2751
        %v2894 = vsel %vm2824, %v2710, %v2753
        %v2898 = vsel %vm2824, %v2713, %v2755
        %v2902 = vsel %vm2824, %v2716, %v2757
        %v2906 = vsel %vm2824, %v2719, %v2759
        %v2910 = vsel %vm2824, %v2722, %v2761
        %v2914 = vsel %vm2824, %v2725, %v2763
        %v2918 = vsel %vm2824, %v2728, %v2765
        %v2922 = vsel %vm2824, %v2731, %v2767
        %v2926 = vsel %vm2824, %v2734, %v2769
        %v2930 = vsel %vm2824, %v2737, %v2771
        %v2934 = vsel %vm2824, %v2740, %v2773
        %v2938 = vsel %vm2824, %v2465, %v2791
        %v2942 = vsel %vm2824, %v2477, %v2793
        %v2946 = vsel %vm2824, %v2489, %v2795
        %v2950 = vsel %vm2824, %v2501, %v2797
        %v2954 = vsel %vm2824, %v2513, %v2799
        %v2958 = vsel %vm2824, %v2525, %v2801
        %v2962 = vsel %vm2824, %v2537, %v2803
        %v2966 = vsel %vm2824, %v2549, %v2805
        %v2970 = vsel %vm2824, %v2561, %v2807
        %v2974 = vsel %vm2824, %v2573, %v2809
        %v2978 = vsel %vm2824, %v2585, %v2811
        %v2982 = vsel %vm2824, %v2597, %v2813
        %v2986 = vsel %vm2824, %v2609, %v2815
        %v2990 = vsel %vm2824, %v2621, %v2817
        %v2994 = vsel %vm2824, %v2633, %v2819
        %v2998 = vsel %vm2824, %v2785, %v2821
        %v3001 = vsel %vm2824, %v2437, %v2823
        %v3003 = vld [vmem:[%s3] sm:$0xf]
        %v3004 = vld [vmem:[%s3 + $0x4] sm:$0xf]
        %v3005 = vld [vmem:[%s3 + $0x8] sm:$0xf]
        %v3006 = vld [vmem:[%s3 + $0xc] sm:$0xf]
        %v3007 = vld [vmem:[%s3 + $0x10] sm:$0xf]
        %v3008 = vld [vmem:[%s3 + $0x14] sm:$0xf]
        %v3009 = vld [vmem:[%s3 + $0x18] sm:$0xf]
        %v3010 = vld [vmem:[%s3 + $0x1c] sm:$0xf]
        %v3011 = vld [vmem:[%s3 + $0x20] sm:$0xf]
        %v3012 = vld [vmem:[%s3 + $0x24] sm:$0xf]
        %v3013 = vld [vmem:[%s3 + $0x28] sm:$0xf]
        %v3014 = vld [vmem:[%s3 + $0x2c] sm:$0xf]
        %v3015 = vld [vmem:[%s3 + $0x30] sm:$0xf]
        %v3016 = vld [vmem:[%s3 + $0x34] sm:$0xf]
        %v3017 = vld [vmem:[%s3 + $0x38] sm:$0xf]
        %v3018 = vld [vmem:[%s3 + $0x3c] sm:$0xf]
        %v3019 = vld [vmem:[%s3 + $0x40] sm:$0xf]
        %v3020 = vld [vmem:[%s3 + $0x44] sm:$0xf]
        %v3021 = vld [vmem:[%s3 + $0x48] sm:$0xf]
        %v3022 = vld [vmem:[%s3 + $0x4c] sm:$0xf]
        %v3023 = vld [vmem:[%s3 + $0x50] sm:$0xf]
        %v3024 = vld [vmem:[%s3 + $0x54] sm:$0xf]
        %v3025 = vld [vmem:[%s3 + $0x58] sm:$0xf]
        %v3026 = vld [vmem:[%s3 + $0x5c] sm:$0xf]
        %v3027 = vld [vmem:[%s3 + $0x60] sm:$0xf]
        %v3028 = vld [vmem:[%s3 + $0x64] sm:$0xf]
        %v3029 = vld [vmem:[%s3 + $0x68] sm:$0xf]
        %v3030 = vld [vmem:[%s3 + $0x6c] sm:$0xf]
        %v3031 = vld [vmem:[%s3 + $0x70] sm:$0xf]
        %v3032 = vld [vmem:[%s3 + $0x74] sm:$0xf]
        %v3033 = vld [vmem:[%s3 + $0x78] sm:$0xf]
        %v3034 = vld [vmem:[%s3 + $0x7c] sm:$0xf]
        %v3035 = vld [vmem:[%s3 + $0x80] sm:$0xf]
        %v3036 = vld [vmem:[%s3 + $0x84] sm:$0xf]
        %v3037 = vld [vmem:[%s3 + $0x88] sm:$0xf]
        %v3038 = vld [vmem:[%s3 + $0x8c] sm:$0xf]
        %v3039 = vld [vmem:[%s3 + $0x90] sm:$0xf]
        %v3040 = vld [vmem:[%s3 + $0x94] sm:$0xf]
        %v3041 = vld [vmem:[%s3 + $0x98] sm:$0xf]
        %v3042 = vld [vmem:[%s3 + $0x9c] sm:$0xf]
        %v3043 = vld [vmem:[%s3 + $0xa0] sm:$0xf]
        %v3044 = vld [vmem:[%s3 + $0xa4] sm:$0xf]
        %v3045 = vld [vmem:[%s3 + $0xa8] sm:$0xf]
        %v3046 = vld [vmem:[%s3 + $0xac] sm:$0xf]
        %v3047 = vld [vmem:[%s3 + $0xb0] sm:$0xf]
        %v3048 = vld [vmem:[%s3 + $0xb4] sm:$0xf]
        %v3049 = vld [vmem:[%s3 + $0xb8] sm:$0xf]
        %v3050 = vld [vmem:[%s3 + $0xbc] sm:$0xf]
        %v3051 = vld [vmem:[%s3 + $0xc0] sm:$0xf]
        %v3052 = vld [vmem:[%s3 + $0xc4] sm:$0xf]
        %v3053 = vld [vmem:[%s3 + $0xc8] sm:$0xf]
        %v3054 = vld [vmem:[%s3 + $0xcc] sm:$0xf]
        %v3055 = vld [vmem:[%s3 + $0xd0] sm:$0xf]
        %v3056 = vld [vmem:[%s3 + $0xd4] sm:$0xf]
        %v3057 = vld [vmem:[%s3 + $0xd8] sm:$0xf]
        %v3058 = vld [vmem:[%s3 + $0xdc] sm:$0xf]
        %v3059 = vld [vmem:[%s3 + $0xe0] sm:$0xf]
        %v3060 = vld [vmem:[%s3 + $0xe4] sm:$0xf]
        %v3061 = vld [vmem:[%s3 + $0xe8] sm:$0xf]
        %v3062 = vld [vmem:[%s3 + $0xec] sm:$0xf]
        %v3063 = vld [vmem:[%s3 + $0xf0] sm:$0xf]
        %v3064 = vld [vmem:[%s3 + $0xf4] sm:$0xf]
        %v3065 = vld [vmem:[%s3 + $0xf8] sm:$0xf]
        %v3066 = vld [vmem:[%s3 + $0xfc] sm:$0xf]
        %v3067 = vld [vmem:[%s3 + $0x100] sm:$0xf]
        %v3068 = vld [vmem:[%s3 + $0x104] sm:$0xf]
        %v3069 = vld [vmem:[%s3 + $0x108] sm:$0xf]
        %v3070 = vld [vmem:[%s3 + $0x10c] sm:$0xf]
        %v3071 = vld [vmem:[%s3 + $0x110] sm:$0xf]
        %v3072 = vld [vmem:[%s3 + $0x114] sm:$0xf]
        %v3073 = vld [vmem:[%s3 + $0x118] sm:$0xf]
        %v3074 = vld [vmem:[%s3 + $0x11c] sm:$0xf]
        %v3075 = vld [vmem:[%s4] sm:$0x1]
        %v3077 = vperm.slane %v3075, 0
        %v3151 = vunpack.c.l.b16 %v3003
        %v3152 = vunpack.c.l.b16 %v3004
        %v3153 = vunpack.c.l.b16 %v3005
        %v3154 = vunpack.c.l.b16 %v3006
        %v3155 = vunpack.c.l.b16 %v3007
        %v3156 = vunpack.c.l.b16 %v3008
        %v3157 = vunpack.c.l.b16 %v3009
        %v3158 = vunpack.c.l.b16 %v3010
        %v3159 = vunpack.c.l.b16 %v3011
        %v3160 = vunpack.c.l.b16 %v3012
        %v3161 = vunpack.c.l.b16 %v3013
        %v3162 = vunpack.c.l.b16 %v3014
        %v3163 = vunpack.c.l.b16 %v3015
        %v3164 = vunpack.c.l.b16 %v3016
        %v3165 = vunpack.c.l.b16 %v3017
        %v3166 = vunpack.c.l.b16 %v3018
        %v3167 = vunpack.c.l.b16 %v3019
        %v3168 = vunpack.c.l.b16 %v3020
        %v3169 = vunpack.c.l.b16 %v3021
        %v3170 = vunpack.c.l.b16 %v3022
        %v3171 = vunpack.c.l.b16 %v3023
        %v3172 = vunpack.c.l.b16 %v3024
        %v3173 = vunpack.c.l.b16 %v3025
        %v3174 = vunpack.c.l.b16 %v3026
        %v3175 = vunpack.c.l.b16 %v3027
        %v3176 = vunpack.c.l.b16 %v3028
        %v3177 = vunpack.c.l.b16 %v3029
        %v3178 = vunpack.c.l.b16 %v3030
        %v3179 = vunpack.c.l.b16 %v3031
        %v3180 = vunpack.c.l.b16 %v3032
        %v3181 = vunpack.c.l.b16 %v3033
        %v3182 = vunpack.c.l.b16 %v3034
        %v3183 = vunpack.c.l.b16 %v3035
        %v3184 = vunpack.c.l.b16 %v3036
        %v3185 = vunpack.c.l.b16 %v3037
        %v3186 = vunpack.c.l.b16 %v3038
        %v3187 = vunpack.c.l.b16 %v3039
        %v3188 = vunpack.c.l.b16 %v3040
        %v3189 = vunpack.c.l.b16 %v3041
        %v3190 = vunpack.c.l.b16 %v3042
        %v3191 = vunpack.c.l.b16 %v3043
        %v3192 = vunpack.c.l.b16 %v3044
        %v3193 = vunpack.c.l.b16 %v3045
        %v3194 = vunpack.c.l.b16 %v3046
        %v3195 = vunpack.c.l.b16 %v3047
        %v3196 = vunpack.c.l.b16 %v3048
        %v3197 = vunpack.c.l.b16 %v3049
        %v3198 = vunpack.c.l.b16 %v3050
        %v3199 = vunpack.c.l.b16 %v3051
        %v3200 = vunpack.c.l.b16 %v3052
        %v3201 = vunpack.c.l.b16 %v3053
        %v3202 = vunpack.c.l.b16 %v3054
        %v3203 = vunpack.c.l.b16 %v3055
        %v3204 = vunpack.c.l.b16 %v3056
        %v3205 = vunpack.c.l.b16 %v3057
        %v3206 = vunpack.c.l.b16 %v3058
        %v3207 = vunpack.c.l.b16 %v3059
        %v3208 = vunpack.c.l.b16 %v3060
        %v3209 = vunpack.c.l.b16 %v3061
        %v3210 = vunpack.c.l.b16 %v3062
        %v3211 = vunpack.c.l.b16 %v3063
        %v3212 = vunpack.c.l.b16 %v3064
        %v3213 = vunpack.c.l.b16 %v3065
        %v3214 = vunpack.c.l.b16 %v3066
        %v3215 = vunpack.c.l.b16 %v3067
        %v3216 = vunpack.c.l.b16 %v3068
        %v3217 = vunpack.c.l.b16 %v3069
        %v3218 = vunpack.c.l.b16 %v3070
        %v3219 = vunpack.c.l.b16 %v3071
        %v3220 = vunpack.c.l.b16 %v3072
        %v3221 = vunpack.c.l.b16 %v3073
        %v3222 = vunpack.c.l.b16 %v3074
        %v3223 = vpack.c.b16 %v3152, %v3151
        %v3224 = vpack.c.b16 %v3154, %v3153
        %v3225 = vpack.c.b16 %v3156, %v3155
        %v3226 = vpack.c.b16 %v3158, %v3157
        %v3227 = vpack.c.b16 %v3160, %v3159
        %v3228 = vpack.c.b16 %v3162, %v3161
        %v3229 = vpack.c.b16 %v3164, %v3163
        %v3230 = vpack.c.b16 %v3166, %v3165
        %v3231 = vpack.c.b16 %v3168, %v3167
        %v3232 = vpack.c.b16 %v3170, %v3169
        %v3233 = vpack.c.b16 %v3172, %v3171
        %v3234 = vpack.c.b16 %v3174, %v3173
        %v3235 = vpack.c.b16 %v3176, %v3175
        %v3236 = vpack.c.b16 %v3178, %v3177
        %v3237 = vpack.c.b16 %v3180, %v3179
        %v3238 = vpack.c.b16 %v3182, %v3181
        %v3239 = vpack.c.b16 %v3184, %v3183
        %v3240 = vpack.c.b16 %v3186, %v3185
        %v3241 = vpack.c.b16 %v3188, %v3187
        %v3242 = vpack.c.b16 %v3190, %v3189
        %v3243 = vpack.c.b16 %v3192, %v3191
        %v3244 = vpack.c.b16 %v3194, %v3193
        %v3245 = vpack.c.b16 %v3196, %v3195
        %v3246 = vpack.c.b16 %v3198, %v3197
        %v3247 = vpack.c.b16 %v3200, %v3199
        %v3248 = vpack.c.b16 %v3202, %v3201
        %v3249 = vpack.c.b16 %v3204, %v3203
        %v3250 = vpack.c.b16 %v3206, %v3205
        %v3251 = vpack.c.b16 %v3208, %v3207
        %v3252 = vpack.c.b16 %v3210, %v3209
        %v3253 = vpack.c.b16 %v3212, %v3211
        %v3254 = vpack.c.b16 %v3214, %v3213
        %v3255 = vpack.c.b16 %v3216, %v3215
        %v3256 = vpack.c.b16 %v3218, %v3217
        %v3257 = vpack.c.b16 %v3220, %v3219
        %v3258 = vpack.c.b16 %v3222, %v3221
        %v3295 = vsel %vm2824, %v2701, 0
        %v3297 = vsel %vm2824, %v2704, 0
        %v3299 = vsel %vm2824, %v2707, 0
        %v3301 = vsel %vm2824, %v2710, 0
        %v3303 = vsel %vm2824, %v2713, 0
        %v3305 = vsel %vm2824, %v2716, 0
        %v3307 = vsel %vm2824, %v2719, 0
        %v3309 = vsel %vm2824, %v2722, 0
        %v3311 = vsel %vm2824, %v2725, 0
        %v3313 = vsel %vm2824, %v2728, 0
        %v3315 = vsel %vm2824, %v2731, 0
        %v3317 = vsel %vm2824, %v2734, 0
        %v3319 = vsel %vm2824, %v2737, 0
        %v3321 = vsel %vm2824, %v2740, 0
        %v3324 = vsel %vm2824, %v2789, 0
        %v3326 = vsel %vm2824, %v1097, 0
        %3328 = vmatpush.bf16.msra.mxu0 %v3230
        %3329 = vmatpush.bf16.msra.mxu0 %v3229
        %3330 = vmatpush.bf16.msra.mxu0 %v3228
        %3331 = vmatpush.bf16.msra.mxu0 %v3227
        %3332 = vmatpush.bf16.msra.mxu0 %v3226
        %3333 = vmatpush.bf16.msra.mxu0 %v3225
        %3334 = vmatpush.bf16.msra.mxu0 %v3224
        %3335 = vmatpush.bf16.msra.mxu0 %v3223
        %3336 = vmatmul.bf16.gmra.mxu0 %v2826
        %v3337 = vpop.f32.mrf.mxu0
        %v3338 = vadd.f32 %v3077, %v3337
        %v3339 = vpop.f32.mrf.mxu0
        %v3340 = vadd.f32 %v3077, %v3339
        %3341 = vmatmul.bf16.gmra.mxu0 %v2829
        %v3342 = vpop.f32.mrf.mxu0
        %v3343 = vadd.f32 %v3077, %v3342
        %v3344 = vpop.f32.mrf.mxu0
        %v3345 = vadd.f32 %v3077, %v3344
        %3346 = vmatmul.bf16.gmra.mxu0 %v2832
        %v3347 = vpop.f32.mrf.mxu0
        %v3348 = vadd.f32 %v3077, %v3347
        %v3349 = vpop.f32.mrf.mxu0
        %v3350 = vadd.f32 %v3077, %v3349
        %3351 = vmatmul.bf16.gmra.mxu0 %v2835
        %v3352 = vpop.f32.mrf.mxu0
        %v3353 = vadd.f32 %v3077, %v3352
        %v3354 = vpop.f32.mrf.mxu0
        %v3355 = vadd.f32 %v3077, %v3354
        %3356 = vmatmul.bf16.gmra.mxu0 %v2838
        %v3357 = vpop.f32.mrf.mxu0
        %v3358 = vadd.f32 %v3077, %v3357
        %v3359 = vpop.f32.mrf.mxu0
        %v3360 = vadd.f32 %v3077, %v3359
        %3361 = vmatmul.bf16.gmra.mxu0 %v2841
        %v3362 = vpop.f32.mrf.mxu0
        %v3363 = vadd.f32 %v3077, %v3362
        %v3364 = vpop.f32.mrf.mxu0
        %v3365 = vadd.f32 %v3077, %v3364
        %3366 = vmatmul.bf16.gmra.mxu0 %v2844
        %v3367 = vpop.f32.mrf.mxu0
        %v3368 = vadd.f32 %v3077, %v3367
        %v3369 = vpop.f32.mrf.mxu0
        %v3370 = vadd.f32 %v3077, %v3369
        %3371 = vmatmul.bf16.gmra.mxu0 %v2847
        %v3372 = vpop.f32.mrf.mxu0
        %v3373 = vadd.f32 %v3077, %v3372
        %v3374 = vpop.f32.mrf.mxu0
        %v3375 = vadd.f32 %v3077, %v3374
        %3376 = vmatmul.bf16.gmra.mxu0 %v2850
        %v3377 = vpop.f32.mrf.mxu0
        %v3378 = vadd.f32 %v3077, %v3377
        %v3379 = vpop.f32.mrf.mxu0
        %v3380 = vadd.f32 %v3077, %v3379
        %3381 = vmatmul.bf16.gmra.mxu0 %v2853
        %v3382 = vpop.f32.mrf.mxu0
        %v3383 = vadd.f32 %v3077, %v3382
        %v3384 = vpop.f32.mrf.mxu0
        %v3385 = vadd.f32 %v3077, %v3384
        %3386 = vmatmul.bf16.gmra.mxu0 %v2856
        %v3387 = vpop.f32.mrf.mxu0
        %v3388 = vadd.f32 %v3077, %v3387
        %v3389 = vpop.f32.mrf.mxu0
        %v3390 = vadd.f32 %v3077, %v3389
        %3391 = vmatmul.bf16.gmra.mxu0 %v2859
        %v3392 = vpop.f32.mrf.mxu0
        %v3393 = vadd.f32 %v3077, %v3392
        %v3394 = vpop.f32.mrf.mxu0
        %v3395 = vadd.f32 %v3077, %v3394
        %3396 = vmatmul.bf16.gmra.mxu0 %v2862
        %v3397 = vpop.f32.mrf.mxu0
        %v3398 = vadd.f32 %v3077, %v3397
        %v3399 = vpop.f32.mrf.mxu0
        %v3400 = vadd.f32 %v3077, %v3399
        %3401 = vmatmul.bf16.gmra.mxu0 %v2865
        %v3402 = vpop.f32.mrf.mxu0
        %v3403 = vadd.f32 %v3077, %v3402
        %v3404 = vpop.f32.mrf.mxu0
        %v3405 = vadd.f32 %v3077, %v3404
        %3406 = vmatmul.bf16.gmra.mxu0 %v2868
        %v3407 = vpop.f32.mrf.mxu0
        %v3408 = vadd.f32 %v3077, %v3407
        %v3409 = vpop.f32.mrf.mxu0
        %v3410 = vadd.f32 %v3077, %v3409
        %3411 = vmatmul.bf16.gmra.mxu0 %v2871
        %v3412 = vpop.f32.mrf.mxu0
        %v3413 = vadd.f32 %v3077, %v3412
        %v3414 = vpop.f32.mrf.mxu0
        %v3415 = vadd.f32 %v3077, %v3414
        %3416 = vdwg.mxu0
        %3417 = vmatpush.bf16.msra.mxu0 %v3238
        %3418 = vmatpush.bf16.msra.mxu0 %v3237
        %3419 = vmatpush.bf16.msra.mxu0 %v3236
        %3420 = vmatpush.bf16.msra.mxu0 %v3235
        %3421 = vmatpush.bf16.msra.mxu0 %v3234
        %3422 = vmatpush.bf16.msra.mxu0 %v3233
        %3423 = vmatpush.bf16.msra.mxu0 %v3232
        %3424 = vmatpush.bf16.msra.mxu0 %v3231
        %3425 = vmatmul.bf16.gmra.mxu0 %v2874
        %v3426 = vpop.f32.mrf.mxu0
        %v3427 = vadd.f32 %v3338, %v3426
        %v3428 = vpop.f32.mrf.mxu0
        %v3429 = vadd.f32 %v3340, %v3428
        %3430 = vmatmul.bf16.gmra.mxu0 %v2878
        %v3431 = vpop.f32.mrf.mxu0
        %v3432 = vadd.f32 %v3343, %v3431
        %v3433 = vpop.f32.mrf.mxu0
        %v3434 = vadd.f32 %v3345, %v3433
        %3435 = vmatmul.bf16.gmra.mxu0 %v2882
        %v3436 = vpop.f32.mrf.mxu0
        %v3437 = vadd.f32 %v3348, %v3436
        %v3438 = vpop.f32.mrf.mxu0
        %v3439 = vadd.f32 %v3350, %v3438
        %3440 = vmatmul.bf16.gmra.mxu0 %v2886
        %v3441 = vpop.f32.mrf.mxu0
        %v3442 = vadd.f32 %v3353, %v3441
        %v3443 = vpop.f32.mrf.mxu0
        %v3444 = vadd.f32 %v3355, %v3443
        %3445 = vmatmul.bf16.gmra.mxu0 %v2890
        %v3446 = vpop.f32.mrf.mxu0
        %v3447 = vadd.f32 %v3358, %v3446
        %v3448 = vpop.f32.mrf.mxu0
        %v3449 = vadd.f32 %v3360, %v3448
        %3450 = vmatmul.bf16.gmra.mxu0 %v2894
        %v3451 = vpop.f32.mrf.mxu0
        %v3452 = vadd.f32 %v3363, %v3451
        %v3453 = vpop.f32.mrf.mxu0
        %v3454 = vadd.f32 %v3365, %v3453
        %3455 = vmatmul.bf16.gmra.mxu0 %v2898
        %v3456 = vpop.f32.mrf.mxu0
        %v3457 = vadd.f32 %v3368, %v3456
        %v3458 = vpop.f32.mrf.mxu0
        %v3459 = vadd.f32 %v3370, %v3458
        %3460 = vmatmul.bf16.gmra.mxu0 %v2902
        %v3461 = vpop.f32.mrf.mxu0
        %v3462 = vadd.f32 %v3373, %v3461
        %v3463 = vpop.f32.mrf.mxu0
        %v3464 = vadd.f32 %v3375, %v3463
        %3465 = vmatmul.bf16.gmra.mxu0 %v2906
        %v3466 = vpop.f32.mrf.mxu0
        %v3467 = vadd.f32 %v3378, %v3466
        %v3468 = vpop.f32.mrf.mxu0
        %v3469 = vadd.f32 %v3380, %v3468
        %3470 = vmatmul.bf16.gmra.mxu0 %v2910
        %v3471 = vpop.f32.mrf.mxu0
        %v3472 = vadd.f32 %v3383, %v3471
        %v3473 = vpop.f32.mrf.mxu0
        %v3474 = vadd.f32 %v3385, %v3473
        %3475 = vmatmul.bf16.gmra.mxu0 %v2914
        %v3476 = vpop.f32.mrf.mxu0
        %v3477 = vadd.f32 %v3388, %v3476
        %v3478 = vpop.f32.mrf.mxu0
        %v3479 = vadd.f32 %v3390, %v3478
        %3480 = vmatmul.bf16.gmra.mxu0 %v2918
        %v3481 = vpop.f32.mrf.mxu0
        %v3482 = vadd.f32 %v3393, %v3481
        %v3483 = vpop.f32.mrf.mxu0
        %v3484 = vadd.f32 %v3395, %v3483
        %3485 = vmatmul.bf16.gmra.mxu0 %v2922
        %v3486 = vpop.f32.mrf.mxu0
        %v3487 = vadd.f32 %v3398, %v3486
        %v3488 = vpop.f32.mrf.mxu0
        %v3489 = vadd.f32 %v3400, %v3488
        %3490 = vmatmul.bf16.gmra.mxu0 %v2926
        %v3491 = vpop.f32.mrf.mxu0
        %v3492 = vadd.f32 %v3403, %v3491
        %v3493 = vpop.f32.mrf.mxu0
        %v3494 = vadd.f32 %v3405, %v3493
        %3495 = vmatmul.bf16.gmra.mxu0 %v2930
        %v3496 = vpop.f32.mrf.mxu0
        %v3497 = vadd.f32 %v3408, %v3496
        %v3498 = vpop.f32.mrf.mxu0
        %v3499 = vadd.f32 %v3410, %v3498
        %3500 = vmatmul.bf16.gmra.mxu0 %v2934
        %v3501 = vpop.f32.mrf.mxu0
        %v3502 = vadd.f32 %v3413, %v3501
        %v3503 = vpop.f32.mrf.mxu0
        %v3504 = vadd.f32 %v3415, %v3503
        %3505 = vdwg.mxu0
        %3506 = vmatpush.bf16.msra.mxu0 %v3246
        %3507 = vmatpush.bf16.msra.mxu0 %v3245
        %3508 = vmatpush.bf16.msra.mxu0 %v3244
        %3509 = vmatpush.bf16.msra.mxu0 %v3243
        %3510 = vmatpush.bf16.msra.mxu0 %v3242
        %3511 = vmatpush.bf16.msra.mxu0 %v3241
        %3512 = vmatpush.bf16.msra.mxu0 %v3240
        %3513 = vmatpush.bf16.msra.mxu0 %v3239
        %3514 = vmatmul.bf16.gmra.mxu0 %v2938
        %v3515 = vpop.f32.mrf.mxu0
        %v3516 = vadd.f32 %v3427, %v3515
        %v3517 = vpop.f32.mrf.mxu0
        %v3518 = vadd.f32 %v3429, %v3517
        %3519 = vmatmul.bf16.gmra.mxu0 %v2942
        %v3520 = vpop.f32.mrf.mxu0
        %v3521 = vadd.f32 %v3432, %v3520
        %v3522 = vpop.f32.mrf.mxu0
        %v3523 = vadd.f32 %v3434, %v3522
        %3524 = vmatmul.bf16.gmra.mxu0 %v2946
        %v3525 = vpop.f32.mrf.mxu0
        %v3526 = vadd.f32 %v3437, %v3525
        %v3527 = vpop.f32.mrf.mxu0
        %v3528 = vadd.f32 %v3439, %v3527
        %3529 = vmatmul.bf16.gmra.mxu0 %v2950
        %v3530 = vpop.f32.mrf.mxu0
        %v3531 = vadd.f32 %v3442, %v3530
        %v3532 = vpop.f32.mrf.mxu0
        %v3533 = vadd.f32 %v3444, %v3532
        %3534 = vmatmul.bf16.gmra.mxu0 %v2954
        %v3535 = vpop.f32.mrf.mxu0
        %v3536 = vadd.f32 %v3447, %v3535
        %v3537 = vpop.f32.mrf.mxu0
        %v3538 = vadd.f32 %v3449, %v3537
        %3539 = vmatmul.bf16.gmra.mxu0 %v2958
        %v3540 = vpop.f32.mrf.mxu0
        %v3541 = vadd.f32 %v3452, %v3540
        %v3542 = vpop.f32.mrf.mxu0
        %v3543 = vadd.f32 %v3454, %v3542
        %3544 = vmatmul.bf16.gmra.mxu0 %v2962
        %v3545 = vpop.f32.mrf.mxu0
        %v3546 = vadd.f32 %v3457, %v3545
        %v3547 = vpop.f32.mrf.mxu0
        %v3548 = vadd.f32 %v3459, %v3547
        %3549 = vmatmul.bf16.gmra.mxu0 %v2966
        %v3550 = vpop.f32.mrf.mxu0
        %v3551 = vadd.f32 %v3462, %v3550
        %v3552 = vpop.f32.mrf.mxu0
        %v3553 = vadd.f32 %v3464, %v3552
        %3554 = vmatmul.bf16.gmra.mxu0 %v2970
        %v3555 = vpop.f32.mrf.mxu0
        %v3556 = vadd.f32 %v3467, %v3555
        %v3557 = vpop.f32.mrf.mxu0
        %v3558 = vadd.f32 %v3469, %v3557
        %3559 = vmatmul.bf16.gmra.mxu0 %v2974
        %v3560 = vpop.f32.mrf.mxu0
        %v3561 = vadd.f32 %v3472, %v3560
        %v3562 = vpop.f32.mrf.mxu0
        %v3563 = vadd.f32 %v3474, %v3562
        %3564 = vmatmul.bf16.gmra.mxu0 %v2978
        %v3565 = vpop.f32.mrf.mxu0
        %v3566 = vadd.f32 %v3477, %v3565
        %v3567 = vpop.f32.mrf.mxu0
        %v3568 = vadd.f32 %v3479, %v3567
        %3569 = vmatmul.bf16.gmra.mxu0 %v2982
        %v3570 = vpop.f32.mrf.mxu0
        %v3571 = vadd.f32 %v3482, %v3570
        %v3572 = vpop.f32.mrf.mxu0
        %v3573 = vadd.f32 %v3484, %v3572
        %3574 = vmatmul.bf16.gmra.mxu0 %v2986
        %v3575 = vpop.f32.mrf.mxu0
        %v3576 = vadd.f32 %v3487, %v3575
        %v3577 = vpop.f32.mrf.mxu0
        %v3578 = vadd.f32 %v3489, %v3577
        %3579 = vmatmul.bf16.gmra.mxu0 %v2990
        %v3580 = vpop.f32.mrf.mxu0
        %v3581 = vadd.f32 %v3492, %v3580
        %v3582 = vpop.f32.mrf.mxu0
        %v3583 = vadd.f32 %v3494, %v3582
        %3584 = vmatmul.bf16.gmra.mxu0 %v2994
        %v3585 = vpop.f32.mrf.mxu0
        %v3586 = vadd.f32 %v3497, %v3585
        %v3587 = vpop.f32.mrf.mxu0
        %v3588 = vadd.f32 %v3499, %v3587
        %3589 = vmatmul.bf16.gmra.mxu0 %v2998
        %v3590 = vpop.f32.mrf.mxu0
        %v3591 = vadd.f32 %v3502, %v3590
        %v3592 = vpop.f32.mrf.mxu0
        %v3593 = vadd.f32 %v3504, %v3592
        %3594 = vdwg.mxu0
        %3595 = vmatpush.bf16.msra.mxu0 %v3254
        %3596 = vmatpush.bf16.msra.mxu0 %v3253
        %3597 = vmatpush.bf16.msra.mxu0 %v3252
        %3598 = vmatpush.bf16.msra.mxu0 %v3251
        %3599 = vmatpush.bf16.msra.mxu0 %v3250
        %3600 = vmatpush.bf16.msra.mxu0 %v3249
        %3601 = vmatpush.bf16.msra.mxu0 %v3248
        %3602 = vmatpush.bf16.msra.mxu0 %v3247
        %3603 = vmatmul.bf16.gmra.mxu0 %v2832
        %v3604 = vpop.f32.mrf.mxu0
        %v3605 = vadd.f32 %v3516, %v3604
        %v3606 = vpop.f32.mrf.mxu0
        %v3607 = vadd.f32 %v3518, %v3606
        %3608 = vmatmul.bf16.gmra.mxu0 %v2835
        %v3609 = vpop.f32.mrf.mxu0
        %v3610 = vadd.f32 %v3521, %v3609
        %v3611 = vpop.f32.mrf.mxu0
        %v3612 = vadd.f32 %v3523, %v3611
        %3613 = vmatmul.bf16.gmra.mxu0 %v2838
        %v3614 = vpop.f32.mrf.mxu0
        %v3615 = vadd.f32 %v3526, %v3614
        %v3616 = vpop.f32.mrf.mxu0
        %v3617 = vadd.f32 %v3528, %v3616
        %3618 = vmatmul.bf16.gmra.mxu0 %v2841
        %v3619 = vpop.f32.mrf.mxu0
        %v3620 = vadd.f32 %v3531, %v3619
        %v3621 = vpop.f32.mrf.mxu0
        %v3622 = vadd.f32 %v3533, %v3621
        %3623 = vmatmul.bf16.gmra.mxu0 %v2844
        %v3624 = vpop.f32.mrf.mxu0
        %v3625 = vadd.f32 %v3536, %v3624
        %v3626 = vpop.f32.mrf.mxu0
        %v3627 = vadd.f32 %v3538, %v3626
        %3628 = vmatmul.bf16.gmra.mxu0 %v2847
        %v3629 = vpop.f32.mrf.mxu0
        %v3630 = vadd.f32 %v3541, %v3629
        %v3631 = vpop.f32.mrf.mxu0
        %v3632 = vadd.f32 %v3543, %v3631
        %3633 = vmatmul.bf16.gmra.mxu0 %v2850
        %v3634 = vpop.f32.mrf.mxu0
        %v3635 = vadd.f32 %v3546, %v3634
        %v3636 = vpop.f32.mrf.mxu0
        %v3637 = vadd.f32 %v3548, %v3636
        %3638 = vmatmul.bf16.gmra.mxu0 %v2853
        %v3639 = vpop.f32.mrf.mxu0
        %v3640 = vadd.f32 %v3551, %v3639
        %v3641 = vpop.f32.mrf.mxu0
        %v3642 = vadd.f32 %v3553, %v3641
        %3643 = vmatmul.bf16.gmra.mxu0 %v2856
        %v3644 = vpop.f32.mrf.mxu0
        %v3645 = vadd.f32 %v3556, %v3644
        %v3646 = vpop.f32.mrf.mxu0
        %v3647 = vadd.f32 %v3558, %v3646
        %3648 = vmatmul.bf16.gmra.mxu0 %v2859
        %v3649 = vpop.f32.mrf.mxu0
        %v3650 = vadd.f32 %v3561, %v3649
        %v3651 = vpop.f32.mrf.mxu0
        %v3652 = vadd.f32 %v3563, %v3651
        %3653 = vmatmul.bf16.gmra.mxu0 %v2862
        %v3654 = vpop.f32.mrf.mxu0
        %v3655 = vadd.f32 %v3566, %v3654
        %v3656 = vpop.f32.mrf.mxu0
        %v3657 = vadd.f32 %v3568, %v3656
        %3658 = vmatmul.bf16.gmra.mxu0 %v2865
        %v3659 = vpop.f32.mrf.mxu0
        %v3660 = vadd.f32 %v3571, %v3659
        %v3661 = vpop.f32.mrf.mxu0
        %v3662 = vadd.f32 %v3573, %v3661
        %3663 = vmatmul.bf16.gmra.mxu0 %v2868
        %v3664 = vpop.f32.mrf.mxu0
        %v3665 = vadd.f32 %v3576, %v3664
        %v3666 = vpop.f32.mrf.mxu0
        %v3667 = vadd.f32 %v3578, %v3666
        %3668 = vmatmul.bf16.gmra.mxu0 %v2871
        %v3669 = vpop.f32.mrf.mxu0
        %v3670 = vadd.f32 %v3581, %v3669
        %v3671 = vpop.f32.mrf.mxu0
        %v3672 = vadd.f32 %v3583, %v3671
        %3673 = vmatmul.bf16.gmra.mxu0 %v3001
        %v3674 = vpop.f32.mrf.mxu0
        %v3675 = vadd.f32 %v3586, %v3674
        %v3676 = vpop.f32.mrf.mxu0
        %v3677 = vadd.f32 %v3588, %v3676
        %3678 = vmatmul.bf16.gmra.mxu0 %v2826
        %v3679 = vpop.f32.mrf.mxu0
        %v3680 = vadd.f32 %v3591, %v3679
        %v3681 = vpop.f32.mrf.mxu0
        %v3682 = vadd.f32 %v3593, %v3681
        %3683 = vdwg.mxu0
        %3684 = vmatpush.bf16.msra.mxu0 0
        %3685 = vmatpush.bf16.msra.mxu0 0
        %3686 = vmatpush.bf16.msra.mxu0 0
        %3687 = vmatpush.bf16.msra.mxu0 0
        %3688 = vmatpush.bf16.msra.mxu0 %v3258
        %3689 = vmatpush.bf16.msra.mxu0 %v3257
        %3690 = vmatpush.bf16.msra.mxu0 %v3256
        %3691 = vmatpush.bf16.msra.mxu0 %v3255
        %3692 = vmatmul.bf16.gmra.mxu0 %v3295
        %v3693 = vpop.f32.mrf.mxu0
        %v3694 = vadd.f32 %v3605, %v3693
        %v3695 = vpop.f32.mrf.mxu0
        %v3696 = vadd.f32 %v3607, %v3695
        %3697 = vmatmul.bf16.gmra.mxu0 %v3297
        %v3698 = vpop.f32.mrf.mxu0
        %v3699 = vadd.f32 %v3610, %v3698
        %v3700 = vpop.f32.mrf.mxu0
        %v3701 = vadd.f32 %v3612, %v3700
        %3702 = vmatmul.bf16.gmra.mxu0 %v3299
        %v3703 = vpop.f32.mrf.mxu0
        %v3704 = vadd.f32 %v3615, %v3703
        %v3705 = vpop.f32.mrf.mxu0
        %v3706 = vadd.f32 %v3617, %v3705
        %3707 = vmatmul.bf16.gmra.mxu0 %v3301
        %v3708 = vpop.f32.mrf.mxu0
        %v3709 = vadd.f32 %v3620, %v3708
        %v3710 = vpop.f32.mrf.mxu0
        %v3711 = vadd.f32 %v3622, %v3710
        %3712 = vmatmul.bf16.gmra.mxu0 %v3303
        %v3713 = vpop.f32.mrf.mxu0
        %v3714 = vadd.f32 %v3625, %v3713
        %v3715 = vpop.f32.mrf.mxu0
        %v3716 = vadd.f32 %v3627, %v3715
        %3717 = vmatmul.bf16.gmra.mxu0 %v3305
        %v3718 = vpop.f32.mrf.mxu0
        %v3719 = vadd.f32 %v3630, %v3718
        %v3720 = vpop.f32.mrf.mxu0
        %v3721 = vadd.f32 %v3632, %v3720
        %3722 = vmatmul.bf16.gmra.mxu0 %v3307
        %v3723 = vpop.f32.mrf.mxu0
        %v3724 = vadd.f32 %v3635, %v3723
        %v3725 = vpop.f32.mrf.mxu0
        %v3726 = vadd.f32 %v3637, %v3725
        %3727 = vmatmul.bf16.gmra.mxu0 %v3309
        %v3728 = vpop.f32.mrf.mxu0
        %v3729 = vadd.f32 %v3640, %v3728
        %v3730 = vpop.f32.mrf.mxu0
        %v3731 = vadd.f32 %v3642, %v3730
        %3732 = vmatmul.bf16.gmra.mxu0 %v3311
        %v3733 = vpop.f32.mrf.mxu0
        %v3734 = vadd.f32 %v3645, %v3733
        %v3735 = vpop.f32.mrf.mxu0
        %v3736 = vadd.f32 %v3647, %v3735
        %3737 = vmatmul.bf16.gmra.mxu0 %v3313
        %v3738 = vpop.f32.mrf.mxu0
        %v3739 = vadd.f32 %v3650, %v3738
        %v3740 = vpop.f32.mrf.mxu0
        %v3741 = vadd.f32 %v3652, %v3740
        %3742 = vmatmul.bf16.gmra.mxu0 %v3315
        %v3743 = vpop.f32.mrf.mxu0
        %v3744 = vadd.f32 %v3655, %v3743
        %v3745 = vpop.f32.mrf.mxu0
        %v3746 = vadd.f32 %v3657, %v3745
        %3747 = vmatmul.bf16.gmra.mxu0 %v3317
        %v3748 = vpop.f32.mrf.mxu0
        %v3749 = vadd.f32 %v3660, %v3748
        %v3750 = vpop.f32.mrf.mxu0
        %v3751 = vadd.f32 %v3662, %v3750
        %3752 = vmatmul.bf16.gmra.mxu0 %v3319
        %v3753 = vpop.f32.mrf.mxu0
        %v3754 = vadd.f32 %v3665, %v3753
        %v3755 = vpop.f32.mrf.mxu0
        %v3756 = vadd.f32 %v3667, %v3755
        %3757 = vmatmul.bf16.gmra.mxu0 %v3321
        %v3758 = vpop.f32.mrf.mxu0
        %v3759 = vadd.f32 %v3670, %v3758
        %v3760 = vpop.f32.mrf.mxu0
        %v3761 = vadd.f32 %v3672, %v3760
        %3762 = vmatmul.bf16.gmra.mxu0 %v3324
        %v3763 = vpop.f32.mrf.mxu0
        %v3764 = vadd.f32 %v3675, %v3763
        %v3765 = vpop.f32.mrf.mxu0
        %v3766 = vadd.f32 %v3677, %v3765
        %3767 = vmatmul.bf16.gmra.mxu0 %v3326
        %v3768 = vpop.f32.mrf.mxu0
        %v3769 = vadd.f32 %v3680, %v3768
        %v3770 = vpop.f32.mrf.mxu0
        %v3771 = vadd.f32 %v3682, %v3770
        %3772 = vdwg.mxu0
        %v3773 = vld [vmem:[%s5] sm:$0xf]
        %v3775 = vsel %vm798, %v251, 0
        %v3778 = vsel %vm798, %v252, 0
        %v3781 = vsel %vm798, %v253, 0
        %v3784 = vsel %vm798, %v254, 0
        %v3787 = vsel %vm798, %v255, 0
        %v3790 = vsel %vm798, %v256, 0
        %v3793 = vsel %vm798, %v257, 0
        %v3796 = vsel %vm798, %v258, 0
        %v3799 = vsel %vm798, %v259, 0
        %v3802 = vsel %vm798, %v260, 0
        %v3805 = vsel %vm798, %v261, 0
        %v3808 = vsel %vm798, %v262, 0
        %v3811 = vsel %vm798, %v263, 0
        %v3814 = vsel %vm798, %v264, 0
        %v3817 = vsel %vm798, %v265, 0
        %v3820 = vsel %vm798, %v266, 0
        %v3823 = vsel %vm798, %v267, 0
        %v3826 = vsel %vm798, %v268, 0
        %v3829 = vsel %vm798, %v269, 0
        %v3832 = vsel %vm798, %v270, 0
        %v3835 = vsel %vm798, %v271, 0
        %v3838 = vsel %vm798, %v272, 0
        %v3841 = vsel %vm798, %v273, 0
        %v3844 = vsel %vm798, %v274, 0
        %v3847 = vsel %vm798, %v275, 0
        %v3850 = vsel %vm798, %v276, 0
        %v3853 = vsel %vm798, %v277, 0
        %v3856 = vsel %vm798, %v278, 0
        %v3859 = vsel %vm798, %v279, 0
        %v3862 = vsel %vm798, %v280, 0
        %v3865 = vsel %vm798, %v281, 0
        %v3868 = vsel %vm798, %v282, 0
        %vm3870 = vcmask 1043456
        %v3872 = vsel %vm3870, %v3773, 0
        %3874 = vmatpush.msra.mxu0 0.0
        %3875 = vmatpush.msra.mxu0 0.0
        %3876 = vmatpush.msra.mxu0 0.0
        %3877 = vmatpush.msra.mxu0 0.0
        %3878 = vmatpush.msra.mxu0 0.0
        %3879 = vmatpush.msra.mxu0 0.0
        %3880 = vmatpush.msra.mxu0 0.0
        %3881 = vmatpush.msra.mxu0 0.0
        %3882 = vmatpush.msra.mxu0 0.0
        %3883 = vmatpush.msra.mxu0 0.0
        %3884 = vmatpush.msra.mxu0 0.0
        %3885 = vmatpush.msra.mxu0 0.0
        %3886 = vmatpush.msra.mxu0 0.0
        %3887 = vmatpush.msra.mxu0 0.0
        %3888 = vmatpush.msra.mxu0 0.0
        %3889 = vmatpush.msra.mxu0 %v3872
        %3890 = vmatmul.f32.gmra.mxu0 %v3775
        %v3891 = vpop.f32.mrf.mxu0
        %v3892 = vadd.f32 0.0, %v3891
        %3893 = vmatmul.f32.gmra.mxu0 %v3778
        %v3894 = vpop.f32.mrf.mxu0
        %v3895 = vadd.f32 0.0, %v3894
        %3896 = vmatmul.f32.gmra.mxu0 %v3781
        %v3897 = vpop.f32.mrf.mxu0
        %v3898 = vadd.f32 0.0, %v3897
        %3899 = vmatmul.f32.gmra.mxu0 %v3784
        %v3900 = vpop.f32.mrf.mxu0
        %v3901 = vadd.f32 0.0, %v3900
        %3902 = vmatmul.f32.gmra.mxu0 %v3787
        %v3903 = vpop.f32.mrf.mxu0
        %v3904 = vadd.f32 0.0, %v3903
        %3905 = vmatmul.f32.gmra.mxu0 %v3790
        %v3906 = vpop.f32.mrf.mxu0
        %v3907 = vadd.f32 0.0, %v3906
        %3908 = vmatmul.f32.gmra.mxu0 %v3793
        %v3909 = vpop.f32.mrf.mxu0
        %v3910 = vadd.f32 0.0, %v3909
        %3911 = vmatmul.f32.gmra.mxu0 %v3796
        %v3912 = vpop.f32.mrf.mxu0
        %v3913 = vadd.f32 0.0, %v3912
        %3914 = vmatmul.f32.gmra.mxu0 %v3799
        %v3915 = vpop.f32.mrf.mxu0
        %v3916 = vadd.f32 0.0, %v3915
        %3917 = vmatmul.f32.gmra.mxu0 %v3802
        %v3918 = vpop.f32.mrf.mxu0
        %v3919 = vadd.f32 0.0, %v3918
        %3920 = vmatmul.f32.gmra.mxu0 %v3805
        %v3921 = vpop.f32.mrf.mxu0
        %v3922 = vadd.f32 0.0, %v3921
        %3923 = vmatmul.f32.gmra.mxu0 %v3808
        %v3924 = vpop.f32.mrf.mxu0
        %v3925 = vadd.f32 0.0, %v3924
        %3926 = vmatmul.f32.gmra.mxu0 %v3811
        %v3927 = vpop.f32.mrf.mxu0
        %v3928 = vadd.f32 0.0, %v3927
        %3929 = vmatmul.f32.gmra.mxu0 %v3814
        %v3930 = vpop.f32.mrf.mxu0
        %v3931 = vadd.f32 0.0, %v3930
        %3932 = vmatmul.f32.gmra.mxu0 %v3817
        %v3933 = vpop.f32.mrf.mxu0
        %v3934 = vadd.f32 0.0, %v3933
        %3935 = vmatmul.f32.gmra.mxu0 %v3820
        %v3936 = vpop.f32.mrf.mxu0
        %v3937 = vadd.f32 0.0, %v3936
        %3938 = vmatmul.f32.gmra.mxu0 %v3823
        %v3939 = vpop.f32.mrf.mxu0
        %v3940 = vadd.f32 0.0, %v3939
        %3941 = vmatmul.f32.gmra.mxu0 %v3826
        %v3942 = vpop.f32.mrf.mxu0
        %v3943 = vadd.f32 0.0, %v3942
        %3944 = vmatmul.f32.gmra.mxu0 %v3829
        %v3945 = vpop.f32.mrf.mxu0
        %v3946 = vadd.f32 0.0, %v3945
        %3947 = vmatmul.f32.gmra.mxu0 %v3832
        %v3948 = vpop.f32.mrf.mxu0
        %v3949 = vadd.f32 0.0, %v3948
        %3950 = vmatmul.f32.gmra.mxu0 %v3835
        %v3951 = vpop.f32.mrf.mxu0
        %v3952 = vadd.f32 0.0, %v3951
        %3953 = vmatmul.f32.gmra.mxu0 %v3838
        %v3954 = vpop.f32.mrf.mxu0
        %v3955 = vadd.f32 0.0, %v3954
        %3956 = vmatmul.f32.gmra.mxu0 %v3841
        %v3957 = vpop.f32.mrf.mxu0
        %v3958 = vadd.f32 0.0, %v3957
        %3959 = vmatmul.f32.gmra.mxu0 %v3844
        %v3960 = vpop.f32.mrf.mxu0
        %v3961 = vadd.f32 0.0, %v3960
        %3962 = vmatmul.f32.gmra.mxu0 %v3847
        %v3963 = vpop.f32.mrf.mxu0
        %v3964 = vadd.f32 0.0, %v3963
        %3965 = vmatmul.f32.gmra.mxu0 %v3850
        %v3966 = vpop.f32.mrf.mxu0
        %v3967 = vadd.f32 0.0, %v3966
        %3968 = vmatmul.f32.gmra.mxu0 %v3853
        %v3969 = vpop.f32.mrf.mxu0
        %v3970 = vadd.f32 0.0, %v3969
        %3971 = vmatmul.f32.gmra.mxu0 %v3856
        %v3972 = vpop.f32.mrf.mxu0
        %v3973 = vadd.f32 0.0, %v3972
        %3974 = vmatmul.f32.gmra.mxu0 %v3859
        %v3975 = vpop.f32.mrf.mxu0
        %v3976 = vadd.f32 0.0, %v3975
        %3977 = vmatmul.f32.gmra.mxu0 %v3862
        %v3978 = vpop.f32.mrf.mxu0
        %v3979 = vadd.f32 0.0, %v3978
        %3980 = vmatmul.f32.gmra.mxu0 %v3865
        %v3981 = vpop.f32.mrf.mxu0
        %v3982 = vadd.f32 0.0, %v3981
        %3983 = vmatmul.f32.gmra.mxu0 %v3868
        %v3984 = vpop.f32.mrf.mxu0
        %v3985 = vadd.f32 0.0, %v3984
        %3986 = vdwg.mxu0
        %v3987 = vadd.f32 %v3694, %v3892
        %v3988 = vadd.f32 %v3696, %v3895
        %v3989 = vadd.f32 %v3699, %v3898
        %v3990 = vadd.f32 %v3701, %v3901
        %v3991 = vadd.f32 %v3704, %v3904
        %v3992 = vadd.f32 %v3706, %v3907
        %v3993 = vadd.f32 %v3709, %v3910
        %v3994 = vadd.f32 %v3711, %v3913
        %v3995 = vadd.f32 %v3714, %v3916
        %v3996 = vadd.f32 %v3716, %v3919
        %v3997 = vadd.f32 %v3719, %v3922
        %v3998 = vadd.f32 %v3721, %v3925
        %v3999 = vadd.f32 %v3724, %v3928
        %v4000 = vadd.f32 %v3726, %v3931
        %v4001 = vadd.f32 %v3729, %v3934
        %v4002 = vadd.f32 %v3731, %v3937
        %v4003 = vadd.f32 %v3734, %v3940
        %v4004 = vadd.f32 %v3736, %v3943
        %v4005 = vadd.f32 %v3739, %v3946
        %v4006 = vadd.f32 %v3741, %v3949
        %v4007 = vadd.f32 %v3744, %v3952
        %v4008 = vadd.f32 %v3746, %v3955
        %v4009 = vadd.f32 %v3749, %v3958
        %v4010 = vadd.f32 %v3751, %v3961
        %v4011 = vadd.f32 %v3754, %v3964
        %v4012 = vadd.f32 %v3756, %v3967
        %v4013 = vadd.f32 %v3759, %v3970
        %v4014 = vadd.f32 %v3761, %v3973
        %v4015 = vadd.f32 %v3764, %v3976
        %v4016 = vadd.f32 %v3766, %v3979
        %v4017 = vadd.f32 %v3769, %v3982
        %v4018 = vadd.f32 %v3771, %v3985
        %4019 = vst [vmem:[%s244] sm:$0xff] %v3987
        %4020 = vst [vmem:[%s244 + $0x8] sm:$0xff] %v3988
        %4021 = vst [vmem:[%s244 + $0x10] sm:$0xff] %v3989
        %4022 = vst [vmem:[%s244 + $0x18] sm:$0xff] %v3990
        %4023 = vst [vmem:[%s244 + $0x20] sm:$0xff] %v3991
        %4024 = vst [vmem:[%s244 + $0x28] sm:$0xff] %v3992
        %4025 = vst [vmem:[%s244 + $0x30] sm:$0xff] %v3993
        %4026 = vst [vmem:[%s244 + $0x38] sm:$0xff] %v3994
        %4027 = vst [vmem:[%s244 + $0x40] sm:$0xff] %v3995
        %4028 = vst [vmem:[%s244 + $0x48] sm:$0xff] %v3996
        %4029 = vst [vmem:[%s244 + $0x50] sm:$0xff] %v3997
        %4030 = vst [vmem:[%s244 + $0x58] sm:$0xff] %v3998
        %4031 = vst [vmem:[%s244 + $0x60] sm:$0xff] %v3999
        %4032 = vst [vmem:[%s244 + $0x68] sm:$0xff] %v4000
        %4033 = vst [vmem:[%s244 + $0x70] sm:$0xff] %v4001
        %4034 = vst [vmem:[%s244 + $0x78] sm:$0xff] %v4002
        %4035 = vst [vmem:[%s244 + $0x80] sm:$0xff] %v4003
        %4036 = vst [vmem:[%s244 + $0x88] sm:$0xff] %v4004
        %4037 = vst [vmem:[%s244 + $0x90] sm:$0xff] %v4005
        %4038 = vst [vmem:[%s244 + $0x98] sm:$0xff] %v4006
        %4039 = vst [vmem:[%s244 + $0xa0] sm:$0xff] %v4007
        %4040 = vst [vmem:[%s244 + $0xa8] sm:$0xff] %v4008
        %4041 = vst [vmem:[%s244 + $0xb0] sm:$0xff] %v4009
        %4042 = vst [vmem:[%s244 + $0xb8] sm:$0xff] %v4010
        %4043 = vst [vmem:[%s244 + $0xc0] sm:$0xff] %v4011
        %4044 = vst [vmem:[%s244 + $0xc8] sm:$0xff] %v4012
        %4045 = vst [vmem:[%s244 + $0xd0] sm:$0xff] %v4013
        %4046 = vst [vmem:[%s244 + $0xd8] sm:$0xff] %v4014
        %4047 = vst [vmem:[%s244 + $0xe0] sm:$0xff] %v4015
        %4048 = vst [vmem:[%s244 + $0xe8] sm:$0xff] %v4016
        %4049 = vst [vmem:[%s244 + $0xf0] sm:$0xff] %v4017
        %4050 = vst [vmem:[%s244 + $0xf8] sm:$0xff] %v4018
        %s4051 = sand.u32 %s159, 1
        %s4052 = scalar_lea.sflag [#allocation3], %s4051
        %s4053 = sand.u32 %s159, 1
        %s4054 = smul.addr %s4053, 256
        %s4055 = scalar_lea.vmem [#allocation2], %s4054
        // Predicated region
        $region45: #{tpu_custom_call.1} parent=43 // pred_check
          %p4056 = pneg %p169
        $region46: #{tpu_custom_call.1} parent=43 // pred_check_branch
          %4058 = sbr.rel (%p4056) target = $region48
        $region47: #{tpu_custom_call.1} parent=43 // pred_region
          %4060 = vsyncadd %s4052, 0
          %s4061 = smul.addr %s20, 32
          %s4062 = smul.addr %s4061, 8
          %s4063 = scalar_lea.hbm %s6, %s4062
          %s4064 = sshll.u32 %s4055, 4
          %s4065 = int_to_ptr.vmem [resolvable:$true] %s4064
          %s4066 = sshll.u32 %s4063, 4
          %s4067 = int_to_ptr.hbm [resolvable:$true] %s4066
          %4072 = dma.vmem_to_hbm [thread:$0]  %s4065, 4096, %s4067, %s4052, 128, 128, 8
        $region48: #{tpu_custom_call.1} parent=43 // pred_fallthru
          _
      $region44: #{tpu_custom_call.1} parent=5 // pred_fallthru
        _
      %p4073 = scmp.le.s32.totalorder 2, %s15
      // Predicated region
      $region49: #{tpu_custom_call.1} parent=5 // pred_check
        %p4074 = pneg %p4073
      $region50: #{tpu_custom_call.1} parent=5 // pred_check_branch
        %4076 = sbr.rel (%p4074) target = $region52
      $region51: #{tpu_custom_call.1} parent=5 // pred_region
        %s4077 = ssub.s32 %s15, 2
        // Predicated region
        $region53: #{tpu_custom_call.1} parent=51 // pred_check
          %p4078 = pneg %p175
        $region54: #{tpu_custom_call.1} parent=51 // pred_check_branch
          %4080 = sbr.rel (%p4078) target = $region56
        $region55: #{tpu_custom_call.1} parent=51 // pred_region
          %s4081 = sand.u32 %s160, 1
          %s4082 = scalar_lea.sflag [#allocation3], %s4081
          %s4083 = sand.u32 %s160, 1
          %s4084 = smul.addr %s4083, 256
          %s4085 = scalar_lea.vmem [#allocation2], %s4084
          %4087 = dma.done %s4082, 4096
        $region56: #{tpu_custom_call.1} parent=51 // pred_fallthru
          _
      $region52: #{tpu_custom_call.1} parent=5 // pred_fallthru
        _
    $region6: #{tpu_custom_call.1} parent=1 // loop_footer
      %s19 = sadd.s32 1, %s15
    $region7: #{tpu_custom_call.1} parent=1 // loop_footer_branch
      %14 = sbr.rel target = $region3
    $region8: #{tpu_custom_call.1} parent=1 // loop_exit
      _
    %4088 = vsyncpa [#allocation3], 1
    %s4089 = scalar_lea.sflag [#allocation3], 1
    %4090 = vsyncpa %s4089, 1

</llo_original>
